<compile_context>
chip_gen: v6e
topology: v6e:2x2x1
jax: 0.10.0
libtpu: 0.0.40
codegen_flags: <defaults>
</compile_context>

<pallas_src>
import functools

import jax
import jax.numpy as jnp
from jax.experimental import pallas as pl
from jax.experimental.pallas import tpu as pltpu


# ----------------------------------------------------------------------------
# Model dimensions (scaled-down, see header note)
# ----------------------------------------------------------------------------
SIZE_Y = 16
SIZE_X = 16
D_IN = SIZE_Y * SIZE_X * 3  # 768
ENC_DIMS = [D_IN, 512, 256, 128, 64]
DEC_DIMS = [64, 128, 256, 512, D_IN]
N_ENC = len(ENC_DIMS) - 1
N_DEC = len(DEC_DIMS) - 1
BOTTLENECK = ENC_DIMS[-1]          # 64
ENC_PAD = 128                      # lane-dense padded bottleneck width


def _round_up(n, m):
    return ((n + m - 1) // m) * m


# ----------------------------------------------------------------------------
# Fused whole-network kernel: one batch tile per grid step, weights resident
# ----------------------------------------------------------------------------
def _ae_fused_kernel(x_ref, *refs, n_enc, n_dec):
    """refs = (w0, b0, w1, b1, ..., enc_out_ref, rec_out_ref)."""
    enc_ref, rec_ref = refs[-2], refs[-1]
    wb = refs[:-2]

    def layer(h, w_ref, b_ref, act):
        # bf16 x bf16 MXU matmul with f32 accumulation.
        y = jnp.dot(h, w_ref[...], preferred_element_type=jnp.float32)
        y = y + b_ref[...]                 # bias + activation epilogue in f32
        if act == "relu":
            y = jnp.maximum(y, 0.0)
        elif act == "tanh":
            y = jnp.tanh(y)
        return y.astype(jnp.bfloat16)      # carry activation in bf16

    h = x_ref[...]                         # (tb, D_IN) bf16 tile

    # encoder: Linear+ReLU x3, then plain Linear -> x_enc
    # (last encoder layer is zero-padded to 128 output lanes => unmasked store)
    idx = 0
    for i in range(n_enc):
        act = "relu" if i < n_enc - 1 else None
        h = layer(h, wb[idx], wb[idx + 1], act)
        idx += 2
    enc_ref[...] = h.astype(enc_ref.dtype)

    # decoder: Linear+ReLU x3, then Linear+Tanh -> x_rec
    # (first decoder weight has zero-padded input rows matching the enc pad)
    for i in range(n_dec):
        act = "relu" if i < n_dec - 1 else "tanh"
        h = layer(h, wb[idx], wb[idx + 1], act)
        idx += 2
    rec_ref[...] = h.astype(rec_ref.dtype)


# ----------------------------------------------------------------------------
# Wrapper: flatten + pad params, pick batch tile, build specs, call kernel
# ----------------------------------------------------------------------------
def _flatten_params(params):
    """bf16 weights [D_in, D_out], f32 biases as (1, N) lane rows.

    The bottleneck is zero-padded 64 -> 128 on the last encoder layer's
    output dim and the first decoder layer's input dim (numerically a no-op,
    keeps the x_enc store lane-dense)."""
    flat = []
    enc = params["encoder"]
    dec = params["decoder"]
    for li, (w, b) in enumerate(enc):
        w = w.astype(jnp.bfloat16)
        b = b.astype(jnp.float32)
        if li == len(enc) - 1:
            pad = ENC_PAD - w.shape[1]
            w = jnp.pad(w, ((0, 0), (0, pad)))
            b = jnp.pad(b, ((0, pad),))
        flat += [w, b.reshape(1, -1)]
    for li, (w, b) in enumerate(dec):
        w = w.astype(jnp.bfloat16)
        b = b.astype(jnp.float32)
        if li == 0:
            pad = ENC_PAD - w.shape[0]
            w = jnp.pad(w, ((0, pad), (0, 0)))
        flat += [w, b.reshape(1, -1)]
    return flat


def _default_batch_tile(B):
    # Biggest tile that still gives >=2 grid steps (so the "parallel" batch
    # axis can shard across v7x's 2 TensorCores), capped at 512 so the bf16
    # footprint stays well under v5e's 16 MiB scoped-VMEM default.
    for tb in (512, 256, 128, 64, 32, 16, 8):
        if B >= 2 * tb:
            return tb
    return _round_up(max(B, 1), 8)


def autoencoder_forward(params, x, *, batch_tile=None):
    """Fused autoencoder forward.  Returns (x_enc, x_rec) in bf16.

    Callers that want f32 can cast outside; pass x in bf16 to avoid the
    boundary cast entirely."""
    B, D = x.shape
    assert D == D_IN, (D, D_IN)

    x = x.astype(jnp.bfloat16)
    flat = _flatten_params(params)

    # Batch tiling (+ padding so every tile is full -- never one giant tile).
    tb = batch_tile if batch_tile is not None else _default_batch_tile(B)
    tb = _round_up(tb, 8)
    B_pad = _round_up(B, tb)
    if B_pad != B:
        x = jnp.pad(x, ((0, B_pad - B), (0, 0)))
    grid = (B_pad // tb,)

    # x tiled over batch; weight/bias block indices are constant across the
    # grid (VMEM-resident, no re-DMA) and single-buffered to save VMEM.
    in_specs = [pl.BlockSpec((tb, D_IN), lambda i: (i, 0))]
    for a in flat:
        in_specs.append(
            pl.BlockSpec(a.shape, lambda i: (0, 0), pipeline_mode=pl.Buffered(1))
        )

    out_specs = (
        pl.BlockSpec((tb, ENC_PAD), lambda i: (i, 0)),
        pl.BlockSpec((tb, D_IN), lambda i: (i, 0)),
    )
    out_shape = (
        jax.ShapeDtypeStruct((B_pad, ENC_PAD), jnp.bfloat16),
        jax.ShapeDtypeStruct((B_pad, D_IN), jnp.bfloat16),
    )

    kernel = functools.partial(_ae_fused_kernel, n_enc=N_ENC, n_dec=N_DEC)

    enc_pad, rec_pad = pl.pallas_call(
        kernel,
        out_shape=out_shape,
        grid=grid,
        in_specs=in_specs,
        out_specs=out_specs,
        compiler_params=pltpu.CompilerParams(
            dimension_semantics=("parallel",),
            vmem_limit_bytes=48 * 1024 * 1024,
        ),
    )(x, *flat)

    # Strip the lane pad on x_enc and the batch pad on both outputs.
    x_enc = enc_pad[:B, :BOTTLENECK]
    x_rec = rec_pad[:B]
    return x_enc, x_rec


# ----------------------------------------------------------------------------
# Parameter init (PyTorch-style nn.Linear init: U(-1/sqrt(fan_in), +...))
# ----------------------------------------------------------------------------
def init_params(key, weight_dtype=jnp.bfloat16):
    params = {"encoder": [], "decoder": []}
    for name, dims in (("encoder", ENC_DIMS), ("decoder", DEC_DIMS)):
        for i in range(len(dims) - 1):
            fan_in, fan_out = dims[i], dims[i + 1]
            key, kw, kb = jax.random.split(key, 3)
            bound = 1.0 / (fan_in ** 0.5)
            w = jax.random.uniform(
                kw, (fan_in, fan_out), jnp.float32, -bound, bound
            ).astype(weight_dtype)
            b = jax.random.uniform(kb, (fan_out,), jnp.float32, -bound, bound)
            params[name].append((w, b))
    return params


if __name__ == "__main__":
    key = jax.random.PRNGKey(0)
    key, kx = jax.random.split(key)

    batch = 8  # small, sublane-aligned example batch
    x = jax.random.normal(kx, (batch, D_IN), jnp.float32)

    params = init_params(key)

    fwd = jax.jit(autoencoder_forward)
    x_enc, x_rec = fwd(params, x)
    jax.block_until_ready((x_enc, x_rec))

    # light sanity checks on shapes / ranges
    assert x_enc.shape == (batch, BOTTLENECK)
    assert x_rec.shape == (batch, D_IN)
    x_rec_f32 = x_rec.astype(jnp.float32)
    x_enc_f32 = x_enc.astype(jnp.float32)
    assert bool(jnp.all(jnp.abs(x_rec_f32) <= 1.0 + 1e-6))  # tanh output range
    assert bool(jnp.all(jnp.isfinite(x_enc_f32)))
    assert bool(jnp.all(jnp.isfinite(x_rec_f32)))

    print("KERNEL_OK")
</pallas_src>

<mosaic_0001>
module attributes {stable_mosaic.version = 11 : i64} {
  func.func @_ae_fused_kernel(%arg0: i32, %arg1: memref<8x768xbf16, #tpu.memory_space<vmem>>, %arg2: memref<768x512xbf16, #tpu.memory_space<vmem>>, %arg3: memref<1x512xf32, #tpu.memory_space<vmem>>, %arg4: memref<512x256xbf16, #tpu.memory_space<vmem>>, %arg5: memref<1x256xf32, #tpu.memory_space<vmem>>, %arg6: memref<256x128xbf16, #tpu.memory_space<vmem>>, %arg7: memref<1x128xf32, #tpu.memory_space<vmem>>, %arg8: memref<128x128xbf16, #tpu.memory_space<vmem>>, %arg9: memref<1x128xf32, #tpu.memory_space<vmem>>, %arg10: memref<128x128xbf16, #tpu.memory_space<vmem>>, %arg11: memref<1x128xf32, #tpu.memory_space<vmem>>, %arg12: memref<128x256xbf16, #tpu.memory_space<vmem>>, %arg13: memref<1x256xf32, #tpu.memory_space<vmem>>, %arg14: memref<256x512xbf16, #tpu.memory_space<vmem>>, %arg15: memref<1x512xf32, #tpu.memory_space<vmem>>, %arg16: memref<512x768xbf16, #tpu.memory_space<vmem>>, %arg17: memref<1x768xf32, #tpu.memory_space<vmem>>, %arg18: memref<8x128xbf16, #tpu.memory_space<vmem>>, %arg19: memref<8x768xbf16, #tpu.memory_space<vmem>>) attributes {dimension_semantics = [#tpu.dimension_semantics<parallel>], iteration_bounds = array<i64: 1>, scalar_prefetch = 0 : i64, scratch_operands = 0 : i64, tpu.core_type = #tpu.core_type<tc>, window_params = [{transform_indices = @transform_0, window_bounds = array<i64: 8, 768>}, {pipeline_mode = #tpu.pipeline_mode<synchronous>, transform_indices = @transform_1, window_bounds = array<i64: 768, 512>}, {pipeline_mode = #tpu.pipeline_mode<synchronous>, transform_indices = @transform_2, window_bounds = array<i64: 1, 512>}, {pipeline_mode = #tpu.pipeline_mode<synchronous>, transform_indices = @transform_3, window_bounds = array<i64: 512, 256>}, {pipeline_mode = #tpu.pipeline_mode<synchronous>, transform_indices = @transform_4, window_bounds = array<i64: 1, 256>}, {pipeline_mode = #tpu.pipeline_mode<synchronous>, transform_indices = @transform_5, window_bounds = array<i64: 256, 128>}, {pipeline_mode = #tpu.pipeline_mode<synchronous>, transform_indices = @transform_6, window_bounds = array<i64: 1, 128>}, {pipeline_mode = #tpu.pipeline_mode<synchronous>, transform_indices = @transform_7, window_bounds = array<i64: 128, 128>}, {pipeline_mode = #tpu.pipeline_mode<synchronous>, transform_indices = @transform_8, window_bounds = array<i64: 1, 128>}, {pipeline_mode = #tpu.pipeline_mode<synchronous>, transform_indices = @transform_9, window_bounds = array<i64: 128, 128>}, {pipeline_mode = #tpu.pipeline_mode<synchronous>, transform_indices = @transform_10, window_bounds = array<i64: 1, 128>}, {pipeline_mode = #tpu.pipeline_mode<synchronous>, transform_indices = @transform_11, window_bounds = array<i64: 128, 256>}, {pipeline_mode = #tpu.pipeline_mode<synchronous>, transform_indices = @transform_12, window_bounds = array<i64: 1, 256>}, {pipeline_mode = #tpu.pipeline_mode<synchronous>, transform_indices = @transform_13, window_bounds = array<i64: 256, 512>}, {pipeline_mode = #tpu.pipeline_mode<synchronous>, transform_indices = @transform_14, window_bounds = array<i64: 1, 512>}, {pipeline_mode = #tpu.pipeline_mode<synchronous>, transform_indices = @transform_15, window_bounds = array<i64: 512, 768>}, {pipeline_mode = #tpu.pipeline_mode<synchronous>, transform_indices = @transform_16, window_bounds = array<i64: 1, 768>}, {transform_indices = @transform_17, window_bounds = array<i64: 8, 128>}, {transform_indices = @transform_18, window_bounds = array<i64: 8, 768>}]} {
    %c0 = arith.constant 0 : index
    %c0_0 = arith.constant 0 : index
    %0 = vector.load %arg1[%c0, %c0_0] : memref<8x768xbf16, #tpu.memory_space<vmem>>, vector<8x768xbf16>
    %c0_1 = arith.constant 0 : index
    %c0_2 = arith.constant 0 : index
    %1 = vector.load %arg2[%c0_1, %c0_2] : memref<768x512xbf16, #tpu.memory_space<vmem>>, vector<768x512xbf16>
    %cst = arith.constant dense<0.000000e+00> : vector<8x512xf32>
    %2 = tpu.matmul %0, %1, %cst {dimension_numbers = #tpu.dot_dimension_numbers<[1], [0], [0], [1], [0, 0, 1, 1], [], []>} : vector<8x768xbf16>, vector<768x512xbf16>, vector<8x512xf32> -> vector<8x512xf32>
    %c0_3 = arith.constant 0 : index
    %c0_4 = arith.constant 0 : index
    %3 = vector.load %arg3[%c0_3, %c0_4] : memref<1x512xf32, #tpu.memory_space<vmem>>, vector<1x512xf32>
    %4 = vector.broadcast %3 : vector<1x512xf32> to vector<8x512xf32>
    %5 = arith.addf %2, %4 : vector<8x512xf32>
    %cst_5 = arith.constant 0.000000e+00 : f32
    %6 = vector.broadcast %cst_5 : f32 to vector<8x512xf32>
    %7 = arith.maximumf %5, %6 : vector<8x512xf32>
    %8 = arith.truncf %7 : vector<8x512xf32> to vector<8x512xbf16>
    %c0_6 = arith.constant 0 : index
    %c0_7 = arith.constant 0 : index
    %9 = vector.load %arg4[%c0_6, %c0_7] : memref<512x256xbf16, #tpu.memory_space<vmem>>, vector<512x256xbf16>
    %cst_8 = arith.constant dense<0.000000e+00> : vector<8x256xf32>
    %10 = tpu.matmul %8, %9, %cst_8 {dimension_numbers = #tpu.dot_dimension_numbers<[1], [0], [0], [1], [0, 0, 1, 1], [], []>} : vector<8x512xbf16>, vector<512x256xbf16>, vector<8x256xf32> -> vector<8x256xf32>
    %c0_9 = arith.constant 0 : index
    %c0_10 = arith.constant 0 : index
    %11 = vector.load %arg5[%c0_9, %c0_10] : memref<1x256xf32, #tpu.memory_space<vmem>>, vector<1x256xf32>
    %12 = vector.broadcast %11 : vector<1x256xf32> to vector<8x256xf32>
    %13 = arith.addf %10, %12 : vector<8x256xf32>
    %cst_11 = arith.constant 0.000000e+00 : f32
    %14 = vector.broadcast %cst_11 : f32 to vector<8x256xf32>
    %15 = arith.maximumf %13, %14 : vector<8x256xf32>
    %16 = arith.truncf %15 : vector<8x256xf32> to vector<8x256xbf16>
    %c0_12 = arith.constant 0 : index
    %c0_13 = arith.constant 0 : index
    %17 = vector.load %arg6[%c0_12, %c0_13] : memref<256x128xbf16, #tpu.memory_space<vmem>>, vector<256x128xbf16>
    %cst_14 = arith.constant dense<0.000000e+00> : vector<8x128xf32>
    %18 = tpu.matmul %16, %17, %cst_14 {dimension_numbers = #tpu.dot_dimension_numbers<[1], [0], [0], [1], [0, 0, 1, 1], [], []>} : vector<8x256xbf16>, vector<256x128xbf16>, vector<8x128xf32> -> vector<8x128xf32>
    %c0_15 = arith.constant 0 : index
    %c0_16 = arith.constant 0 : index
    %19 = vector.load %arg7[%c0_15, %c0_16] : memref<1x128xf32, #tpu.memory_space<vmem>>, vector<1x128xf32>
    %20 = vector.broadcast %19 : vector<1x128xf32> to vector<8x128xf32>
    %21 = arith.addf %18, %20 : vector<8x128xf32>
    %cst_17 = arith.constant 0.000000e+00 : f32
    %22 = vector.broadcast %cst_17 : f32 to vector<8x128xf32>
    %23 = arith.maximumf %21, %22 : vector<8x128xf32>
    %24 = arith.truncf %23 : vector<8x128xf32> to vector<8x128xbf16>
    %c0_18 = arith.constant 0 : index
    %c0_19 = arith.constant 0 : index
    %25 = vector.load %arg8[%c0_18, %c0_19] : memref<128x128xbf16, #tpu.memory_space<vmem>>, vector<128x128xbf16>
    %cst_20 = arith.constant dense<0.000000e+00> : vector<8x128xf32>
    %26 = tpu.matmul %24, %25, %cst_20 {dimension_numbers = #tpu.dot_dimension_numbers<[1], [0], [0], [1], [0, 0, 1, 1], [], []>} : vector<8x128xbf16>, vector<128x128xbf16>, vector<8x128xf32> -> vector<8x128xf32>
    %c0_21 = arith.constant 0 : index
    %c0_22 = arith.constant 0 : index
    %27 = vector.load %arg9[%c0_21, %c0_22] : memref<1x128xf32, #tpu.memory_space<vmem>>, vector<1x128xf32>
    %28 = vector.broadcast %27 : vector<1x128xf32> to vector<8x128xf32>
    %29 = arith.addf %26, %28 : vector<8x128xf32>
    %30 = arith.truncf %29 : vector<8x128xf32> to vector<8x128xbf16>
    %c0_23 = arith.constant 0 : index
    %c0_24 = arith.constant 0 : index
    %31 = vector.load %arg18[%c0_23, %c0_24] : memref<8x128xbf16, #tpu.memory_space<vmem>>, vector<8x128xbf16>
    tpu.vector_store %arg18[%c0_23, %c0_24], %30 {strides = array<i32>} : memref<8x128xbf16, #tpu.memory_space<vmem>>, vector<8x128xbf16>,
    %c0_25 = arith.constant 0 : index
    %c0_26 = arith.constant 0 : index
    %32 = vector.load %arg10[%c0_25, %c0_26] : memref<128x128xbf16, #tpu.memory_space<vmem>>, vector<128x128xbf16>
    %cst_27 = arith.constant dense<0.000000e+00> : vector<8x128xf32>
    %33 = tpu.matmul %30, %32, %cst_27 {dimension_numbers = #tpu.dot_dimension_numbers<[1], [0], [0], [1], [0, 0, 1, 1], [], []>} : vector<8x128xbf16>, vector<128x128xbf16>, vector<8x128xf32> -> vector<8x128xf32>
    %c0_28 = arith.constant 0 : index
    %c0_29 = arith.constant 0 : index
    %34 = vector.load %arg11[%c0_28, %c0_29] : memref<1x128xf32, #tpu.memory_space<vmem>>, vector<1x128xf32>
    %35 = vector.broadcast %34 : vector<1x128xf32> to vector<8x128xf32>
    %36 = arith.addf %33, %35 : vector<8x128xf32>
    %cst_30 = arith.constant 0.000000e+00 : f32
    %37 = vector.broadcast %cst_30 : f32 to vector<8x128xf32>
    %38 = arith.maximumf %36, %37 : vector<8x128xf32>
    %39 = arith.truncf %38 : vector<8x128xf32> to vector<8x128xbf16>
    %c0_31 = arith.constant 0 : index
    %c0_32 = arith.constant 0 : index
    %40 = vector.load %arg12[%c0_31, %c0_32] : memref<128x256xbf16, #tpu.memory_space<vmem>>, vector<128x256xbf16>
    %cst_33 = arith.constant dense<0.000000e+00> : vector<8x256xf32>
    %41 = tpu.matmul %39, %40, %cst_33 {dimension_numbers = #tpu.dot_dimension_numbers<[1], [0], [0], [1], [0, 0, 1, 1], [], []>} : vector<8x128xbf16>, vector<128x256xbf16>, vector<8x256xf32> -> vector<8x256xf32>
    %c0_34 = arith.constant 0 : index
    %c0_35 = arith.constant 0 : index
    %42 = vector.load %arg13[%c0_34, %c0_35] : memref<1x256xf32, #tpu.memory_space<vmem>>, vector<1x256xf32>
    %43 = vector.broadcast %42 : vector<1x256xf32> to vector<8x256xf32>
    %44 = arith.addf %41, %43 : vector<8x256xf32>
    %cst_36 = arith.constant 0.000000e+00 : f32
    %45 = vector.broadcast %cst_36 : f32 to vector<8x256xf32>
    %46 = arith.maximumf %44, %45 : vector<8x256xf32>
    %47 = arith.truncf %46 : vector<8x256xf32> to vector<8x256xbf16>
    %c0_37 = arith.constant 0 : index
    %c0_38 = arith.constant 0 : index
    %48 = vector.load %arg14[%c0_37, %c0_38] : memref<256x512xbf16, #tpu.memory_space<vmem>>, vector<256x512xbf16>
    %cst_39 = arith.constant dense<0.000000e+00> : vector<8x512xf32>
    %49 = tpu.matmul %47, %48, %cst_39 {dimension_numbers = #tpu.dot_dimension_numbers<[1], [0], [0], [1], [0, 0, 1, 1], [], []>} : vector<8x256xbf16>, vector<256x512xbf16>, vector<8x512xf32> -> vector<8x512xf32>
    %c0_40 = arith.constant 0 : index
    %c0_41 = arith.constant 0 : index
    %50 = vector.load %arg15[%c0_40, %c0_41] : memref<1x512xf32, #tpu.memory_space<vmem>>, vector<1x512xf32>
    %51 = vector.broadcast %50 : vector<1x512xf32> to vector<8x512xf32>
    %52 = arith.addf %49, %51 : vector<8x512xf32>
    %cst_42 = arith.constant 0.000000e+00 : f32
    %53 = vector.broadcast %cst_42 : f32 to vector<8x512xf32>
    %54 = arith.maximumf %52, %53 : vector<8x512xf32>
    %55 = arith.truncf %54 : vector<8x512xf32> to vector<8x512xbf16>
    %c0_43 = arith.constant 0 : index
    %c0_44 = arith.constant 0 : index
    %56 = vector.load %arg16[%c0_43, %c0_44] : memref<512x768xbf16, #tpu.memory_space<vmem>>, vector<512x768xbf16>
    %cst_45 = arith.constant dense<0.000000e+00> : vector<8x768xf32>
    %57 = tpu.matmul %55, %56, %cst_45 {dimension_numbers = #tpu.dot_dimension_numbers<[1], [0], [0], [1], [0, 0, 1, 1], [], []>} : vector<8x512xbf16>, vector<512x768xbf16>, vector<8x768xf32> -> vector<8x768xf32>
    %c0_46 = arith.constant 0 : index
    %c0_47 = arith.constant 0 : index
    %58 = vector.load %arg17[%c0_46, %c0_47] : memref<1x768xf32, #tpu.memory_space<vmem>>, vector<1x768xf32>
    %59 = vector.broadcast %58 : vector<1x768xf32> to vector<8x768xf32>
    %60 = arith.addf %57, %59 : vector<8x768xf32>
    %61 = math.tanh %60 : vector<8x768xf32>
    %62 = arith.truncf %61 : vector<8x768xf32> to vector<8x768xbf16>
    %c0_48 = arith.constant 0 : index
    %c0_49 = arith.constant 0 : index
    %63 = vector.load %arg19[%c0_48, %c0_49] : memref<8x768xbf16, #tpu.memory_space<vmem>>, vector<8x768xbf16>
    tpu.vector_store %arg19[%c0_48, %c0_49], %62 {strides = array<i32>} : memref<8x768xbf16, #tpu.memory_space<vmem>>, vector<8x768xbf16>,
    return
  }
  func.func @transform_0(%arg0: i32) -> (i32, i32) {
    %c0_i32 = arith.constant 0 : i32
    %c0_i32_0 = arith.constant 0 : i32
    return %arg0, %c0_i32 : i32, i32
  }
  func.func @transform_1(%arg0: i32) -> (i32, i32) {
    %c0_i32 = arith.constant 0 : i32
    %c0_i32_0 = arith.constant 0 : i32
    %c0_i32_1 = arith.constant 0 : i32
    return %c0_i32, %c0_i32_0 : i32, i32
  }
  func.func @transform_2(%arg0: i32) -> (i32, i32) {
    %c0_i32 = arith.constant 0 : i32
    %c0_i32_0 = arith.constant 0 : i32
    %c0_i32_1 = arith.constant 0 : i32
    return %c0_i32, %c0_i32_0 : i32, i32
  }
  func.func @transform_3(%arg0: i32) -> (i32, i32) {
    %c0_i32 = arith.constant 0 : i32
    %c0_i32_0 = arith.constant 0 : i32
    %c0_i32_1 = arith.constant 0 : i32
    return %c0_i32, %c0_i32_0 : i32, i32
  }
  func.func @transform_4(%arg0: i32) -> (i32, i32) {
    %c0_i32 = arith.constant 0 : i32
    %c0_i32_0 = arith.constant 0 : i32
    %c0_i32_1 = arith.constant 0 : i32
    return %c0_i32, %c0_i32_0 : i32, i32
  }
  func.func @transform_5(%arg0: i32) -> (i32, i32) {
    %c0_i32 = arith.constant 0 : i32
    %c0_i32_0 = arith.constant 0 : i32
    %c0_i32_1 = arith.constant 0 : i32
    return %c0_i32, %c0_i32_0 : i32, i32
  }
  func.func @transform_6(%arg0: i32) -> (i32, i32) {
    %c0_i32 = arith.constant 0 : i32
    %c0_i32_0 = arith.constant 0 : i32
    %c0_i32_1 = arith.constant 0 : i32
    return %c0_i32, %c0_i32_0 : i32, i32
  }
  func.func @transform_7(%arg0: i32) -> (i32, i32) {
    %c0_i32 = arith.constant 0 : i32
    %c0_i32_0 = arith.constant 0 : i32
    %c0_i32_1 = arith.constant 0 : i32
    return %c0_i32, %c0_i32_0 : i32, i32
  }
  func.func @transform_8(%arg0: i32) -> (i32, i32) {
    %c0_i32 = arith.constant 0 : i32
    %c0_i32_0 = arith.constant 0 : i32
    %c0_i32_1 = arith.constant 0 : i32
    return %c0_i32, %c0_i32_0 : i32, i32
  }
  func.func @transform_9(%arg0: i32) -> (i32, i32) {
    %c0_i32 = arith.constant 0 : i32
    %c0_i32_0 = arith.constant 0 : i32
    %c0_i32_1 = arith.constant 0 : i32
    return %c0_i32, %c0_i32_0 : i32, i32
  }
  func.func @transform_10(%arg0: i32) -> (i32, i32) {
    %c0_i32 = arith.constant 0 : i32
    %c0_i32_0 = arith.constant 0 : i32
    %c0_i32_1 = arith.constant 0 : i32
    return %c0_i32, %c0_i32_0 : i32, i32
  }
  func.func @transform_11(%arg0: i32) -> (i32, i32) {
    %c0_i32 = arith.constant 0 : i32
    %c0_i32_0 = arith.constant 0 : i32
    %c0_i32_1 = arith.constant 0 : i32
    return %c0_i32, %c0_i32_0 : i32, i32
  }
  func.func @transform_12(%arg0: i32) -> (i32, i32) {
    %c0_i32 = arith.constant 0 : i32
    %c0_i32_0 = arith.constant 0 : i32
    %c0_i32_1 = arith.constant 0 : i32
    return %c0_i32, %c0_i32_0 : i32, i32
  }
  func.func @transform_13(%arg0: i32) -> (i32, i32) {
    %c0_i32 = arith.constant 0 : i32
    %c0_i32_0 = arith.constant 0 : i32
    %c0_i32_1 = arith.constant 0 : i32
    return %c0_i32, %c0_i32_0 : i32, i32
  }
  func.func @transform_14(%arg0: i32) -> (i32, i32) {
    %c0_i32 = arith.constant 0 : i32
    %c0_i32_0 = arith.constant 0 : i32
    %c0_i32_1 = arith.constant 0 : i32
    return %c0_i32, %c0_i32_0 : i32, i32
  }
  func.func @transform_15(%arg0: i32) -> (i32, i32) {
    %c0_i32 = arith.constant 0 : i32
    %c0_i32_0 = arith.constant 0 : i32
    %c0_i32_1 = arith.constant 0 : i32
    return %c0_i32, %c0_i32_0 : i32, i32
  }
  func.func @transform_16(%arg0: i32) -> (i32, i32) {
    %c0_i32 = arith.constant 0 : i32
    %c0_i32_0 = arith.constant 0 : i32
    %c0_i32_1 = arith.constant 0 : i32
    return %c0_i32, %c0_i32_0 : i32, i32
  }
  func.func @transform_17(%arg0: i32) -> (i32, i32) {
    %c0_i32 = arith.constant 0 : i32
    %c0_i32_0 = arith.constant 0 : i32
    return %arg0, %c0_i32 : i32, i32
  }
  func.func @transform_18(%arg0: i32) -> (i32, i32) {
    %c0_i32 = arith.constant 0 : i32
    %c0_i32_0 = arith.constant 0 : i32
    return %arg0, %c0_i32 : i32, i32
  }
}

</mosaic_0001>

<llo_original>
// kernel: autoencoder_forward.1
$region0: #{autoencoder_forward.1}
  #allocation0 [shape = 'u32[]', space=smem, size = 0x4, offset = 0x4, fixed_abs, tag = 'smem constant byte address 0x4 - core index']
  #allocation1 [shape = 'u32[144,128]{1,0:T(1,128)}', space=vmem, size = 0x12000, scoped, tag = 'internal scratch']
  %s0 = inlined_call_operand.vmem [shape: bf16[8,768], index: 0, kind: input, shape index: {}]
  %s1 = inlined_call_operand.hbm [shape: bf16[768,512], index: 1, kind: input, shape index: {}]
  %s2 = inlined_call_operand.vmem [shape: f32[1,512], index: 2, kind: input, shape index: {}]
  %s3 = inlined_call_operand.hbm [shape: bf16[512,256], index: 3, kind: input, shape index: {}]
  %s4 = inlined_call_operand.vmem [shape: f32[1,256], index: 4, kind: input, shape index: {}]
  %s5 = inlined_call_operand.vmem [shape: bf16[256,128], index: 5, kind: input, shape index: {}]
  %s6 = inlined_call_operand.vmem [shape: f32[1,128], index: 6, kind: input, shape index: {}]
  %s7 = inlined_call_operand.vmem [shape: bf16[128,128], index: 7, kind: input, shape index: {}]
  %s8 = inlined_call_operand.vmem [shape: f32[1,128], index: 8, kind: input, shape index: {}]
  %s9 = inlined_call_operand.vmem [shape: bf16[128,128], index: 9, kind: input, shape index: {}]
  %s10 = inlined_call_operand.vmem [shape: f32[1,128], index: 10, kind: input, shape index: {}]
  %s11 = inlined_call_operand.vmem [shape: bf16[128,256], index: 11, kind: input, shape index: {}]
  %s12 = inlined_call_operand.vmem [shape: f32[1,256], index: 12, kind: input, shape index: {}]
  %s13 = inlined_call_operand.hbm [shape: bf16[256,512], index: 13, kind: input, shape index: {}]
  %s14 = inlined_call_operand.vmem [shape: f32[1,512], index: 14, kind: input, shape index: {}]
  %s15 = inlined_call_operand.hbm [shape: bf16[512,768], index: 15, kind: input, shape index: {}]
  %s16 = inlined_call_operand.vmem [shape: f32[1,768], index: 16, kind: input, shape index: {}]
  %s17 = inlined_call_operand.hbm [shape: bf16[8,128], index: 17, kind: output, shape index: {0}]
  %s18 = inlined_call_operand.hbm [shape: bf16[8,768], index: 18, kind: output, shape index: {1}]
  %19 = xla_tuple %s17, %s18
  %s20 = sld [smem:[#allocation0]]
  $region102: #{autoencoder_forward.1} parent=0
    _
  %s22 = ssub.s32 1, %s20
  %s23 = scalar_select 0, %s22, %s20
  $region1: #{autoencoder_forward.1} parent=0
    #allocation2 [shape = 'u8[786432]{0}', space=vmem, size = 0xc0000, scoped, tag = 'input window, operand 1, single buffered']
    #allocation3 [shape = 's32[1]{0}', space=sflag, size = 0x4, scoped, tag = 'scoped memory for autoencoder_forward.1']
    #allocation4 [shape = 's32[1]{0}', space=sflag, size = 0x4, scoped, tag = 'scoped memory for autoencoder_forward.1']
    #allocation5 [shape = 'u8[262144]{0}', space=vmem, size = 0x40000, scoped, tag = 'input window, operand 3, single buffered']
    #allocation6 [shape = 's32[1]{0}', space=sflag, size = 0x4, scoped, tag = 'scoped memory for autoencoder_forward.1']
    #allocation7 [shape = 'u8[262144]{0}', space=vmem, size = 0x40000, scoped, tag = 'input window, operand 13, single buffered']
    #allocation8 [shape = 'u8[786432]{0}', space=vmem, size = 0xc0000, scoped, tag = 'input window, operand 15, single buffered']
    #allocation9 [shape = 's32[1]{0}', space=sflag, size = 0x4, scoped, tag = 'scoped memory for autoencoder_forward.1']
    #allocation10 [shape = 'u8[2048]{0}', space=vmem, size = 0x800, scoped, tag = 'output window, operand 0, single buffered']
    #allocation11 [shape = 'u8[12288]{0}', space=vmem, size = 0x3000, scoped, tag = 'output window, operand 1, single buffered']
    #allocation12 [shape = 's32[1]{0}', space=sflag, size = 0x4, scoped, tag = 'scoped memory for autoencoder_forward.1']
    %24 = vsyncpa [#allocation3], 0
    %25 = vsyncpa [#allocation6], 0
    %26 = vsyncpa [#allocation9], 0
    %27 = vsyncpa [#allocation4], 0
    %28 = vsyncpa [#allocation12], 0
    // Predicated region
    $region2: #{autoencoder_forward.1} parent=1 // pred_check
      _
    $region3: #{autoencoder_forward.1} parent=1 // pred_check_branch
      %30 = sbr.rel (0) target = $region5
    $region4: #{autoencoder_forward.1} parent=1 // pred_region
      _
    $region5: #{autoencoder_forward.1} parent=1 // pred_fallthru
      _
    // Predicated region
    $region6: #{autoencoder_forward.1} parent=1 // pred_check
      _
    $region7: #{autoencoder_forward.1} parent=1 // pred_check_branch
      %32 = sbr.rel (0) target = $region9
    $region8: #{autoencoder_forward.1} parent=1 // pred_region
      %s34 = ssub.s32 24576, 24576
      %35 = vsyncadd [#allocation3], %s34
      %s36 = sshll.u32 [#allocation2], 4
      %s37 = int_to_ptr.vmem [resolvable:$true] %s36
      %42 = dma.hbm_to_vmem [thread:$0]  %s1, 24576, %s37, [#allocation3], 256, 256, 16
    $region9: #{autoencoder_forward.1} parent=1 // pred_fallthru
      _
    // Predicated region
    $region10: #{autoencoder_forward.1} parent=1 // pred_check
      _
    $region11: #{autoencoder_forward.1} parent=1 // pred_check_branch
      %44 = sbr.rel (0) target = $region13
    $region12: #{autoencoder_forward.1} parent=1 // pred_region
      _
    $region13: #{autoencoder_forward.1} parent=1 // pred_fallthru
      _
    // Predicated region
    $region14: #{autoencoder_forward.1} parent=1 // pred_check
      _
    $region15: #{autoencoder_forward.1} parent=1 // pred_check_branch
      %46 = sbr.rel (0) target = $region17
    $region16: #{autoencoder_forward.1} parent=1 // pred_region
      %s48 = ssub.s32 8192, 8192
      %49 = vsyncadd [#allocation6], %s48
      %s50 = sshll.u32 [#allocation5], 4
      %s51 = int_to_ptr.vmem [resolvable:$true] %s50
      %56 = dma.hbm_to_vmem [thread:$0]  %s3, 8192, %s51, [#allocation6], 128, 128, 8
    $region17: #{autoencoder_forward.1} parent=1 // pred_fallthru
      _
    // Predicated region
    $region18: #{autoencoder_forward.1} parent=1 // pred_check
      _
    $region19: #{autoencoder_forward.1} parent=1 // pred_check_branch
      %58 = sbr.rel (0) target = $region21
    $region20: #{autoencoder_forward.1} parent=1 // pred_region
      _
    $region21: #{autoencoder_forward.1} parent=1 // pred_fallthru
      _
    // Predicated region
    $region22: #{autoencoder_forward.1} parent=1 // pred_check
      _
    $region23: #{autoencoder_forward.1} parent=1 // pred_check_branch
      %60 = sbr.rel (0) target = $region25
    $region24: #{autoencoder_forward.1} parent=1 // pred_region
      _
    $region25: #{autoencoder_forward.1} parent=1 // pred_fallthru
      _
    // Predicated region
    $region26: #{autoencoder_forward.1} parent=1 // pred_check
      _
    $region27: #{autoencoder_forward.1} parent=1 // pred_check_branch
      %62 = sbr.rel (0) target = $region29
    $region28: #{autoencoder_forward.1} parent=1 // pred_region
      _
    $region29: #{autoencoder_forward.1} parent=1 // pred_fallthru
      _
    // Predicated region
    $region30: #{autoencoder_forward.1} parent=1 // pred_check
      _
    $region31: #{autoencoder_forward.1} parent=1 // pred_check_branch
      %64 = sbr.rel (0) target = $region33
    $region32: #{autoencoder_forward.1} parent=1 // pred_region
      _
    $region33: #{autoencoder_forward.1} parent=1 // pred_fallthru
      _
    // Predicated region
    $region34: #{autoencoder_forward.1} parent=1 // pred_check
      _
    $region35: #{autoencoder_forward.1} parent=1 // pred_check_branch
      %66 = sbr.rel (0) target = $region37
    $region36: #{autoencoder_forward.1} parent=1 // pred_region
      _
    $region37: #{autoencoder_forward.1} parent=1 // pred_fallthru
      _
    // Predicated region
    $region38: #{autoencoder_forward.1} parent=1 // pred_check
      _
    $region39: #{autoencoder_forward.1} parent=1 // pred_check_branch
      %68 = sbr.rel (0) target = $region41
    $region40: #{autoencoder_forward.1} parent=1 // pred_region
      _
    $region41: #{autoencoder_forward.1} parent=1 // pred_fallthru
      _
    // Predicated region
    $region42: #{autoencoder_forward.1} parent=1 // pred_check
      _
    $region43: #{autoencoder_forward.1} parent=1 // pred_check_branch
      %70 = sbr.rel (0) target = $region45
    $region44: #{autoencoder_forward.1} parent=1 // pred_region
      _
    $region45: #{autoencoder_forward.1} parent=1 // pred_fallthru
      _
    // Predicated region
    $region46: #{autoencoder_forward.1} parent=1 // pred_check
      _
    $region47: #{autoencoder_forward.1} parent=1 // pred_check_branch
      %72 = sbr.rel (0) target = $region49
    $region48: #{autoencoder_forward.1} parent=1 // pred_region
      _
    $region49: #{autoencoder_forward.1} parent=1 // pred_fallthru
      _
    // Predicated region
    $region50: #{autoencoder_forward.1} parent=1 // pred_check
      _
    $region51: #{autoencoder_forward.1} parent=1 // pred_check_branch
      %74 = sbr.rel (0) target = $region53
    $region52: #{autoencoder_forward.1} parent=1 // pred_region
      _
    $region53: #{autoencoder_forward.1} parent=1 // pred_fallthru
      _
    // Predicated region
    $region54: #{autoencoder_forward.1} parent=1 // pred_check
      _
    $region55: #{autoencoder_forward.1} parent=1 // pred_check_branch
      %76 = sbr.rel (0) target = $region57
    $region56: #{autoencoder_forward.1} parent=1 // pred_region
      %s78 = ssub.s32 8192, 8192
      %79 = vsyncadd [#allocation6], %s78
      %s80 = sshll.u32 [#allocation7], 4
      %s81 = int_to_ptr.vmem [resolvable:$true] %s80
      %86 = dma.hbm_to_vmem [thread:$0]  %s13, 8192, %s81, [#allocation6], 256, 256, 16
    $region57: #{autoencoder_forward.1} parent=1 // pred_fallthru
      _
    // Predicated region
    $region58: #{autoencoder_forward.1} parent=1 // pred_check
      _
    $region59: #{autoencoder_forward.1} parent=1 // pred_check_branch
      %88 = sbr.rel (0) target = $region61
    $region60: #{autoencoder_forward.1} parent=1 // pred_region
      _
    $region61: #{autoencoder_forward.1} parent=1 // pred_fallthru
      _
    // Predicated region
    $region62: #{autoencoder_forward.1} parent=1 // pred_check
      _
    $region63: #{autoencoder_forward.1} parent=1 // pred_check_branch
      %90 = sbr.rel (0) target = $region65
    $region64: #{autoencoder_forward.1} parent=1 // pred_region
      %s92 = ssub.s32 24576, 24576
      %93 = vsyncadd [#allocation9], %s92
      %s94 = sshll.u32 [#allocation8], 4
      %s95 = int_to_ptr.vmem [resolvable:$true] %s94
      %100 = dma.hbm_to_vmem [thread:$0]  %s15, 24576, %s95, [#allocation9], 384, 384, 24
    $region65: #{autoencoder_forward.1} parent=1 // pred_fallthru
      _
    // Predicated region
    $region66: #{autoencoder_forward.1} parent=1 // pred_check
      _
    $region67: #{autoencoder_forward.1} parent=1 // pred_check_branch
      %102 = sbr.rel (0) target = $region69
    $region68: #{autoencoder_forward.1} parent=1 // pred_region
      _
    $region69: #{autoencoder_forward.1} parent=1 // pred_fallthru
      _
    // Predicated region
    $region70: #{autoencoder_forward.1} parent=1 // pred_check
      _
    $region71: #{autoencoder_forward.1} parent=1 // pred_check_branch
      %104 = sbr.rel (0) target = $region73
    $region72: #{autoencoder_forward.1} parent=1 // pred_region
      %105 = dma.done [#allocation3], 24576
    $region73: #{autoencoder_forward.1} parent=1 // pred_fallthru
      _
    // Predicated region
    $region74: #{autoencoder_forward.1} parent=1 // pred_check
      _
    $region75: #{autoencoder_forward.1} parent=1 // pred_check_branch
      %107 = sbr.rel (0) target = $region77
    $region76: #{autoencoder_forward.1} parent=1 // pred_region
      %108 = dma.done [#allocation6], 8192
    $region77: #{autoencoder_forward.1} parent=1 // pred_fallthru
      _
    // Predicated region
    $region78: #{autoencoder_forward.1} parent=1 // pred_check
      _
    $region79: #{autoencoder_forward.1} parent=1 // pred_check_branch
      %110 = sbr.rel (0) target = $region81
    $region80: #{autoencoder_forward.1} parent=1 // pred_region
      %111 = dma.done [#allocation6], 8192
    $region81: #{autoencoder_forward.1} parent=1 // pred_fallthru
      _
    // Predicated region
    $region82: #{autoencoder_forward.1} parent=1 // pred_check
      _
    $region83: #{autoencoder_forward.1} parent=1 // pred_check_branch
      %113 = sbr.rel (0) target = $region85
    $region84: #{autoencoder_forward.1} parent=1 // pred_region
      %114 = dma.done [#allocation9], 24576
    $region85: #{autoencoder_forward.1} parent=1 // pred_fallthru
      _
    %v116 = vld [vmem:[%s0] sm:$0xff]
    %v117 = vld [vmem:[%s0 + $0x8] sm:$0xff]
    %v118 = vld [vmem:[%s0 + $0x10] sm:$0xff]
    %v119 = vld [vmem:[#allocation2] sm:$0xff]
    %v120 = vld [vmem:[#allocation2 + $0x8] sm:$0xff]
    %v121 = vld [vmem:[#allocation2 + $0x10] sm:$0xff]
    %v122 = vld [vmem:[#allocation2 + $0x18] sm:$0xff]
    %v123 = vld [vmem:[#allocation2 + $0x20] sm:$0xff]
    %v124 = vld [vmem:[#allocation2 + $0x28] sm:$0xff]
    %v125 = vld [vmem:[#allocation2 + $0x30] sm:$0xff]
    %v126 = vld [vmem:[#allocation2 + $0x38] sm:$0xff]
    %v127 = vld [vmem:[#allocation2 + $0x40] sm:$0xff]
    %v128 = vld [vmem:[#allocation2 + $0x48] sm:$0xff]
    %v129 = vld [vmem:[#allocation2 + $0x50] sm:$0xff]
    %v130 = vld [vmem:[#allocation2 + $0x58] sm:$0xff]
    %v131 = vld [vmem:[#allocation2 + $0x60] sm:$0xff]
    %v132 = vld [vmem:[#allocation2 + $0x68] sm:$0xff]
    %v133 = vld [vmem:[#allocation2 + $0x70] sm:$0xff]
    %v134 = vld [vmem:[#allocation2 + $0x78] sm:$0xff]
    %v135 = vld [vmem:[#allocation2 + $0x80] sm:$0xff]
    %v136 = vld [vmem:[#allocation2 + $0x88] sm:$0xff]
    %v137 = vld [vmem:[#allocation2 + $0x90] sm:$0xff]
    %v138 = vld [vmem:[#allocation2 + $0x98] sm:$0xff]
    %v139 = vld [vmem:[#allocation2 + $0xa0] sm:$0xff]
    %v140 = vld [vmem:[#allocation2 + $0xa8] sm:$0xff]
    %v141 = vld [vmem:[#allocation2 + $0xb0] sm:$0xff]
    %v142 = vld [vmem:[#allocation2 + $0xb8] sm:$0xff]
    %v143 = vld [vmem:[#allocation2 + $0xc0] sm:$0xff]
    %v144 = vld [vmem:[#allocation2 + $0xc8] sm:$0xff]
    %v145 = vld [vmem:[#allocation2 + $0xd0] sm:$0xff]
    %v146 = vld [vmem:[#allocation2 + $0xd8] sm:$0xff]
    %v147 = vld [vmem:[#allocation2 + $0xe0] sm:$0xff]
    %v148 = vld [vmem:[#allocation2 + $0xe8] sm:$0xff]
    %v149 = vld [vmem:[#allocation2 + $0xf0] sm:$0xff]
    %v150 = vld [vmem:[#allocation2 + $0xf8] sm:$0xff]
    %v151 = vld [vmem:[#allocation2 + $0x100] sm:$0xff]
    %v152 = vld [vmem:[#allocation2 + $0x108] sm:$0xff]
    %v153 = vld [vmem:[#allocation2 + $0x110] sm:$0xff]
    %v154 = vld [vmem:[#allocation2 + $0x118] sm:$0xff]
    %v155 = vld [vmem:[#allocation2 + $0x120] sm:$0xff]
    %v156 = vld [vmem:[#allocation2 + $0x128] sm:$0xff]
    %v157 = vld [vmem:[#allocation2 + $0x130] sm:$0xff]
    %v158 = vld [vmem:[#allocation2 + $0x138] sm:$0xff]
    %v159 = vld [vmem:[#allocation2 + $0x140] sm:$0xff]
    %v160 = vld [vmem:[#allocation2 + $0x148] sm:$0xff]
    %v161 = vld [vmem:[#allocation2 + $0x150] sm:$0xff]
    %v162 = vld [vmem:[#allocation2 + $0x158] sm:$0xff]
    %v163 = vld [vmem:[#allocation2 + $0x160] sm:$0xff]
    %v164 = vld [vmem:[#allocation2 + $0x168] sm:$0xff]
    %v165 = vld [vmem:[#allocation2 + $0x170] sm:$0xff]
    %v166 = vld [vmem:[#allocation2 + $0x178] sm:$0xff]
    %v167 = vld [vmem:[#allocation2 + $0x180] sm:$0xff]
    %v168 = vld [vmem:[#allocation2 + $0x188] sm:$0xff]
    %v169 = vld [vmem:[#allocation2 + $0x190] sm:$0xff]
    %v170 = vld [vmem:[#allocation2 + $0x198] sm:$0xff]
    %v171 = vld [vmem:[#allocation2 + $0x1a0] sm:$0xff]
    %v172 = vld [vmem:[#allocation2 + $0x1a8] sm:$0xff]
    %v173 = vld [vmem:[#allocation2 + $0x1b0] sm:$0xff]
    %v174 = vld [vmem:[#allocation2 + $0x1b8] sm:$0xff]
    %v175 = vld [vmem:[#allocation2 + $0x1c0] sm:$0xff]
    %v176 = vld [vmem:[#allocation2 + $0x1c8] sm:$0xff]
    %v177 = vld [vmem:[#allocation2 + $0x1d0] sm:$0xff]
    %v178 = vld [vmem:[#allocation2 + $0x1d8] sm:$0xff]
    %v179 = vld [vmem:[#allocation2 + $0x1e0] sm:$0xff]
    %v180 = vld [vmem:[#allocation2 + $0x1e8] sm:$0xff]
    %v181 = vld [vmem:[#allocation2 + $0x1f0] sm:$0xff]
    %v182 = vld [vmem:[#allocation2 + $0x1f8] sm:$0xff]
    %v183 = vld [vmem:[#allocation2 + $0x200] sm:$0xff]
    %v184 = vld [vmem:[#allocation2 + $0x208] sm:$0xff]
    %v185 = vld [vmem:[#allocation2 + $0x210] sm:$0xff]
    %v186 = vld [vmem:[#allocation2 + $0x218] sm:$0xff]
    %v187 = vld [vmem:[#allocation2 + $0x220] sm:$0xff]
    %v188 = vld [vmem:[#allocation2 + $0x228] sm:$0xff]
    %v189 = vld [vmem:[#allocation2 + $0x230] sm:$0xff]
    %v190 = vld [vmem:[#allocation2 + $0x238] sm:$0xff]
    %v191 = vld [vmem:[#allocation2 + $0x240] sm:$0xff]
    %v192 = vld [vmem:[#allocation2 + $0x248] sm:$0xff]
    %v193 = vld [vmem:[#allocation2 + $0x250] sm:$0xff]
    %v194 = vld [vmem:[#allocation2 + $0x258] sm:$0xff]
    %v195 = vld [vmem:[#allocation2 + $0x260] sm:$0xff]
    %v196 = vld [vmem:[#allocation2 + $0x268] sm:$0xff]
    %v197 = vld [vmem:[#allocation2 + $0x270] sm:$0xff]
    %v198 = vld [vmem:[#allocation2 + $0x278] sm:$0xff]
    %v199 = vld [vmem:[#allocation2 + $0x280] sm:$0xff]
    %v200 = vld [vmem:[#allocation2 + $0x288] sm:$0xff]
    %v201 = vld [vmem:[#allocation2 + $0x290] sm:$0xff]
    %v202 = vld [vmem:[#allocation2 + $0x298] sm:$0xff]
    %v203 = vld [vmem:[#allocation2 + $0x2a0] sm:$0xff]
    %v204 = vld [vmem:[#allocation2 + $0x2a8] sm:$0xff]
    %v205 = vld [vmem:[#allocation2 + $0x2b0] sm:$0xff]
    %v206 = vld [vmem:[#allocation2 + $0x2b8] sm:$0xff]
    %v207 = vld [vmem:[#allocation2 + $0x2c0] sm:$0xff]
    %v208 = vld [vmem:[#allocation2 + $0x2c8] sm:$0xff]
    %v209 = vld [vmem:[#allocation2 + $0x2d0] sm:$0xff]
    %v210 = vld [vmem:[#allocation2 + $0x2d8] sm:$0xff]
    %v211 = vld [vmem:[#allocation2 + $0x2e0] sm:$0xff]
    %v212 = vld [vmem:[#allocation2 + $0x2e8] sm:$0xff]
    %v213 = vld [vmem:[#allocation2 + $0x2f0] sm:$0xff]
    %v214 = vld [vmem:[#allocation2 + $0x2f8] sm:$0xff]
    %v215 = vld [vmem:[#allocation2 + $0x300] sm:$0xff]
    %v216 = vld [vmem:[#allocation2 + $0x308] sm:$0xff]
    %v217 = vld [vmem:[#allocation2 + $0x310] sm:$0xff]
    %v218 = vld [vmem:[#allocation2 + $0x318] sm:$0xff]
    %v219 = vld [vmem:[#allocation2 + $0x320] sm:$0xff]
    %v220 = vld [vmem:[#allocation2 + $0x328] sm:$0xff]
    %v221 = vld [vmem:[#allocation2 + $0x330] sm:$0xff]
    %v222 = vld [vmem:[#allocation2 + $0x338] sm:$0xff]
    %v223 = vld [vmem:[#allocation2 + $0x340] sm:$0xff]
    %v224 = vld [vmem:[#allocation2 + $0x348] sm:$0xff]
    %v225 = vld [vmem:[#allocation2 + $0x350] sm:$0xff]
    %v226 = vld [vmem:[#allocation2 + $0x358] sm:$0xff]
    %v227 = vld [vmem:[#allocation2 + $0x360] sm:$0xff]
    %v228 = vld [vmem:[#allocation2 + $0x368] sm:$0xff]
    %v229 = vld [vmem:[#allocation2 + $0x370] sm:$0xff]
    %v230 = vld [vmem:[#allocation2 + $0x378] sm:$0xff]
    %v231 = vld [vmem:[#allocation2 + $0x380] sm:$0xff]
    %v232 = vld [vmem:[#allocation2 + $0x388] sm:$0xff]
    %v233 = vld [vmem:[#allocation2 + $0x390] sm:$0xff]
    %v234 = vld [vmem:[#allocation2 + $0x398] sm:$0xff]
    %v235 = vld [vmem:[#allocation2 + $0x3a0] sm:$0xff]
    %v236 = vld [vmem:[#allocation2 + $0x3a8] sm:$0xff]
    %v237 = vld [vmem:[#allocation2 + $0x3b0] sm:$0xff]
    %v238 = vld [vmem:[#allocation2 + $0x3b8] sm:$0xff]
    %v239 = vld [vmem:[#allocation2 + $0x3c0] sm:$0xff]
    %v240 = vld [vmem:[#allocation2 + $0x3c8] sm:$0xff]
    %v241 = vld [vmem:[#allocation2 + $0x3d0] sm:$0xff]
    %v242 = vld [vmem:[#allocation2 + $0x3d8] sm:$0xff]
    %v243 = vld [vmem:[#allocation2 + $0x3e0] sm:$0xff]
    %v244 = vld [vmem:[#allocation2 + $0x3e8] sm:$0xff]
    %v245 = vld [vmem:[#allocation2 + $0x3f0] sm:$0xff]
    %v246 = vld [vmem:[#allocation2 + $0x3f8] sm:$0xff]
    %v247 = vld [vmem:[#allocation2 + $0x400] sm:$0xff]
    %v248 = vld [vmem:[#allocation2 + $0x408] sm:$0xff]
    %v249 = vld [vmem:[#allocation2 + $0x410] sm:$0xff]
    %v250 = vld [vmem:[#allocation2 + $0x418] sm:$0xff]
    %v251 = vld [vmem:[#allocation2 + $0x420] sm:$0xff]
    %v252 = vld [vmem:[#allocation2 + $0x428] sm:$0xff]
    %v253 = vld [vmem:[#allocation2 + $0x430] sm:$0xff]
    %v254 = vld [vmem:[#allocation2 + $0x438] sm:$0xff]
    %v255 = vld [vmem:[#allocation2 + $0x440] sm:$0xff]
    %v256 = vld [vmem:[#allocation2 + $0x448] sm:$0xff]
    %v257 = vld [vmem:[#allocation2 + $0x450] sm:$0xff]
    %v258 = vld [vmem:[#allocation2 + $0x458] sm:$0xff]
    %v259 = vld [vmem:[#allocation2 + $0x460] sm:$0xff]
    %v260 = vld [vmem:[#allocation2 + $0x468] sm:$0xff]
    %v261 = vld [vmem:[#allocation2 + $0x470] sm:$0xff]
    %v262 = vld [vmem:[#allocation2 + $0x478] sm:$0xff]
    %v263 = vld [vmem:[#allocation2 + $0x480] sm:$0xff]
    %v264 = vld [vmem:[#allocation2 + $0x488] sm:$0xff]
    %v265 = vld [vmem:[#allocation2 + $0x490] sm:$0xff]
    %v266 = vld [vmem:[#allocation2 + $0x498] sm:$0xff]
    %v267 = vld [vmem:[#allocation2 + $0x4a0] sm:$0xff]
    %v268 = vld [vmem:[#allocation2 + $0x4a8] sm:$0xff]
    %v269 = vld [vmem:[#allocation2 + $0x4b0] sm:$0xff]
    %v270 = vld [vmem:[#allocation2 + $0x4b8] sm:$0xff]
    %v271 = vld [vmem:[#allocation2 + $0x4c0] sm:$0xff]
    %v272 = vld [vmem:[#allocation2 + $0x4c8] sm:$0xff]
    %v273 = vld [vmem:[#allocation2 + $0x4d0] sm:$0xff]
    %v274 = vld [vmem:[#allocation2 + $0x4d8] sm:$0xff]
    %v275 = vld [vmem:[#allocation2 + $0x4e0] sm:$0xff]
    %v276 = vld [vmem:[#allocation2 + $0x4e8] sm:$0xff]
    %v277 = vld [vmem:[#allocation2 + $0x4f0] sm:$0xff]
    %v278 = vld [vmem:[#allocation2 + $0x4f8] sm:$0xff]
    %v279 = vld [vmem:[#allocation2 + $0x500] sm:$0xff]
    %v280 = vld [vmem:[#allocation2 + $0x508] sm:$0xff]
    %v281 = vld [vmem:[#allocation2 + $0x510] sm:$0xff]
    %v282 = vld [vmem:[#allocation2 + $0x518] sm:$0xff]
    %v283 = vld [vmem:[#allocation2 + $0x520] sm:$0xff]
    %v284 = vld [vmem:[#allocation2 + $0x528] sm:$0xff]
    %v285 = vld [vmem:[#allocation2 + $0x530] sm:$0xff]
    %v286 = vld [vmem:[#allocation2 + $0x538] sm:$0xff]
    %v287 = vld [vmem:[#allocation2 + $0x540] sm:$0xff]
    %v288 = vld [vmem:[#allocation2 + $0x548] sm:$0xff]
    %v289 = vld [vmem:[#allocation2 + $0x550] sm:$0xff]
    %v290 = vld [vmem:[#allocation2 + $0x558] sm:$0xff]
    %v291 = vld [vmem:[#allocation2 + $0x560] sm:$0xff]
    %v292 = vld [vmem:[#allocation2 + $0x568] sm:$0xff]
    %v293 = vld [vmem:[#allocation2 + $0x570] sm:$0xff]
    %v294 = vld [vmem:[#allocation2 + $0x578] sm:$0xff]
    %v295 = vld [vmem:[#allocation2 + $0x580] sm:$0xff]
    %v296 = vld [vmem:[#allocation2 + $0x588] sm:$0xff]
    %v297 = vld [vmem:[#allocation2 + $0x590] sm:$0xff]
    %v298 = vld [vmem:[#allocation2 + $0x598] sm:$0xff]
    %v299 = vld [vmem:[#allocation2 + $0x5a0] sm:$0xff]
    %v300 = vld [vmem:[#allocation2 + $0x5a8] sm:$0xff]
    %v301 = vld [vmem:[#allocation2 + $0x5b0] sm:$0xff]
    %v302 = vld [vmem:[#allocation2 + $0x5b8] sm:$0xff]
    %v303 = vld [vmem:[#allocation2 + $0x5c0] sm:$0xff]
    %v304 = vld [vmem:[#allocation2 + $0x5c8] sm:$0xff]
    %v305 = vld [vmem:[#allocation2 + $0x5d0] sm:$0xff]
    %v306 = vld [vmem:[#allocation2 + $0x5d8] sm:$0xff]
    %v307 = vld [vmem:[#allocation2 + $0x5e0] sm:$0xff]
    %v308 = vld [vmem:[#allocation2 + $0x5e8] sm:$0xff]
    %v309 = vld [vmem:[#allocation2 + $0x5f0] sm:$0xff]
    %v310 = vld [vmem:[#allocation2 + $0x5f8] sm:$0xff]
    %v311 = vld [vmem:[%s2] sm:$0xf]
    %v313 = vlaneseq
    %v314 = vshrl.u32 %v313, 7
    %v315 = vsub.s32 0, %v314
    %v316 = vrot.slane %v311, %v315
    %v317 = vlaneseq
    %v318 = vshrl.u32 %v317, 7
    %v319 = vsub.s32 1, %v318
    %v320 = vrot.slane %v311, %v319
    %v321 = vlaneseq
    %v322 = vshrl.u32 %v321, 7
    %v323 = vsub.s32 2, %v322
    %v324 = vrot.slane %v311, %v323
    %v325 = vlaneseq
    %v326 = vshrl.u32 %v325, 7
    %v327 = vsub.s32 3, %v326
    %v328 = vrot.slane %v311, %v327
    %v336 = vunpack.c.l.b16 %v116
    %v337 = vunpack.c.h.b16 %v116
    %v338 = vunpack.c.l.b16 %v117
    %v339 = vunpack.c.h.b16 %v117
    %v340 = vunpack.c.l.b16 %v118
    %v341 = vunpack.c.h.b16 %v118
    %v342 = vpack.c.b16 %v336, %v336
    %v343 = vpack.c.b16 %v337, %v337
    %v344 = vpack.c.b16 %v338, %v338
    %v345 = vpack.c.b16 %v339, %v339
    %v346 = vpack.c.b16 %v340, %v340
    %v347 = vpack.c.b16 %v341, %v341
    %v546 = vunpack.c.l.b16 %v119
    %v547 = vunpack.c.h.b16 %v119
    %v548 = vunpack.c.l.b16 %v120
    %v549 = vunpack.c.h.b16 %v120
    %v550 = vunpack.c.l.b16 %v121
    %v551 = vunpack.c.h.b16 %v121
    %v552 = vunpack.c.l.b16 %v122
    %v553 = vunpack.c.h.b16 %v122
    %v554 = vunpack.c.l.b16 %v123
    %v555 = vunpack.c.h.b16 %v123
    %v556 = vunpack.c.l.b16 %v124
    %v557 = vunpack.c.h.b16 %v124
    %v558 = vunpack.c.l.b16 %v125
    %v559 = vunpack.c.h.b16 %v125
    %v560 = vunpack.c.l.b16 %v126
    %v561 = vunpack.c.h.b16 %v126
    %v562 = vunpack.c.l.b16 %v127
    %v563 = vunpack.c.h.b16 %v127
    %v564 = vunpack.c.l.b16 %v128
    %v565 = vunpack.c.h.b16 %v128
    %v566 = vunpack.c.l.b16 %v129
    %v567 = vunpack.c.h.b16 %v129
    %v568 = vunpack.c.l.b16 %v130
    %v569 = vunpack.c.h.b16 %v130
    %v570 = vunpack.c.l.b16 %v131
    %v571 = vunpack.c.h.b16 %v131
    %v572 = vunpack.c.l.b16 %v132
    %v573 = vunpack.c.h.b16 %v132
    %v574 = vunpack.c.l.b16 %v133
    %v575 = vunpack.c.h.b16 %v133
    %v576 = vunpack.c.l.b16 %v134
    %v577 = vunpack.c.h.b16 %v134
    %v578 = vunpack.c.l.b16 %v135
    %v579 = vunpack.c.h.b16 %v135
    %v580 = vunpack.c.l.b16 %v136
    %v581 = vunpack.c.h.b16 %v136
    %v582 = vunpack.c.l.b16 %v137
    %v583 = vunpack.c.h.b16 %v137
    %v584 = vunpack.c.l.b16 %v138
    %v585 = vunpack.c.h.b16 %v138
    %v586 = vunpack.c.l.b16 %v139
    %v587 = vunpack.c.h.b16 %v139
    %v588 = vunpack.c.l.b16 %v140
    %v589 = vunpack.c.h.b16 %v140
    %v590 = vunpack.c.l.b16 %v141
    %v591 = vunpack.c.h.b16 %v141
    %v592 = vunpack.c.l.b16 %v142
    %v593 = vunpack.c.h.b16 %v142
    %v594 = vunpack.c.l.b16 %v143
    %v595 = vunpack.c.h.b16 %v143
    %v596 = vunpack.c.l.b16 %v144
    %v597 = vunpack.c.h.b16 %v144
    %v598 = vunpack.c.l.b16 %v145
    %v599 = vunpack.c.h.b16 %v145
    %v600 = vunpack.c.l.b16 %v146
    %v601 = vunpack.c.h.b16 %v146
    %v602 = vunpack.c.l.b16 %v147
    %v603 = vunpack.c.h.b16 %v147
    %v604 = vunpack.c.l.b16 %v148
    %v605 = vunpack.c.h.b16 %v148
    %v606 = vunpack.c.l.b16 %v149
    %v607 = vunpack.c.h.b16 %v149
    %v608 = vunpack.c.l.b16 %v150
    %v609 = vunpack.c.h.b16 %v150
    %v610 = vunpack.c.l.b16 %v151
    %v611 = vunpack.c.h.b16 %v151
    %v612 = vunpack.c.l.b16 %v152
    %v613 = vunpack.c.h.b16 %v152
    %v614 = vunpack.c.l.b16 %v153
    %v615 = vunpack.c.h.b16 %v153
    %v616 = vunpack.c.l.b16 %v154
    %v617 = vunpack.c.h.b16 %v154
    %v618 = vunpack.c.l.b16 %v155
    %v619 = vunpack.c.h.b16 %v155
    %v620 = vunpack.c.l.b16 %v156
    %v621 = vunpack.c.h.b16 %v156
    %v622 = vunpack.c.l.b16 %v157
    %v623 = vunpack.c.h.b16 %v157
    %v624 = vunpack.c.l.b16 %v158
    %v625 = vunpack.c.h.b16 %v158
    %v626 = vunpack.c.l.b16 %v159
    %v627 = vunpack.c.h.b16 %v159
    %v628 = vunpack.c.l.b16 %v160
    %v629 = vunpack.c.h.b16 %v160
    %v630 = vunpack.c.l.b16 %v161
    %v631 = vunpack.c.h.b16 %v161
    %v632 = vunpack.c.l.b16 %v162
    %v633 = vunpack.c.h.b16 %v162
    %v634 = vunpack.c.l.b16 %v163
    %v635 = vunpack.c.h.b16 %v163
    %v636 = vunpack.c.l.b16 %v164
    %v637 = vunpack.c.h.b16 %v164
    %v638 = vunpack.c.l.b16 %v165
    %v639 = vunpack.c.h.b16 %v165
    %v640 = vunpack.c.l.b16 %v166
    %v641 = vunpack.c.h.b16 %v166
    %v642 = vunpack.c.l.b16 %v167
    %v643 = vunpack.c.h.b16 %v167
    %v644 = vunpack.c.l.b16 %v168
    %v645 = vunpack.c.h.b16 %v168
    %v646 = vunpack.c.l.b16 %v169
    %v647 = vunpack.c.h.b16 %v169
    %v648 = vunpack.c.l.b16 %v170
    %v649 = vunpack.c.h.b16 %v170
    %v650 = vunpack.c.l.b16 %v171
    %v651 = vunpack.c.h.b16 %v171
    %v652 = vunpack.c.l.b16 %v172
    %v653 = vunpack.c.h.b16 %v172
    %v654 = vunpack.c.l.b16 %v173
    %v655 = vunpack.c.h.b16 %v173
    %v656 = vunpack.c.l.b16 %v174
    %v657 = vunpack.c.h.b16 %v174
    %v658 = vunpack.c.l.b16 %v175
    %v659 = vunpack.c.h.b16 %v175
    %v660 = vunpack.c.l.b16 %v176
    %v661 = vunpack.c.h.b16 %v176
    %v662 = vunpack.c.l.b16 %v177
    %v663 = vunpack.c.h.b16 %v177
    %v664 = vunpack.c.l.b16 %v178
    %v665 = vunpack.c.h.b16 %v178
    %v666 = vunpack.c.l.b16 %v179
    %v667 = vunpack.c.h.b16 %v179
    %v668 = vunpack.c.l.b16 %v180
    %v669 = vunpack.c.h.b16 %v180
    %v670 = vunpack.c.l.b16 %v181
    %v671 = vunpack.c.h.b16 %v181
    %v672 = vunpack.c.l.b16 %v182
    %v673 = vunpack.c.h.b16 %v182
    %v674 = vunpack.c.l.b16 %v183
    %v675 = vunpack.c.h.b16 %v183
    %v676 = vunpack.c.l.b16 %v184
    %v677 = vunpack.c.h.b16 %v184
    %v678 = vunpack.c.l.b16 %v185
    %v679 = vunpack.c.h.b16 %v185
    %v680 = vunpack.c.l.b16 %v186
    %v681 = vunpack.c.h.b16 %v186
    %v682 = vunpack.c.l.b16 %v187
    %v683 = vunpack.c.h.b16 %v187
    %v684 = vunpack.c.l.b16 %v188
    %v685 = vunpack.c.h.b16 %v188
    %v686 = vunpack.c.l.b16 %v189
    %v687 = vunpack.c.h.b16 %v189
    %v688 = vunpack.c.l.b16 %v190
    %v689 = vunpack.c.h.b16 %v190
    %v690 = vunpack.c.l.b16 %v191
    %v691 = vunpack.c.h.b16 %v191
    %v692 = vunpack.c.l.b16 %v192
    %v693 = vunpack.c.h.b16 %v192
    %v694 = vunpack.c.l.b16 %v193
    %v695 = vunpack.c.h.b16 %v193
    %v696 = vunpack.c.l.b16 %v194
    %v697 = vunpack.c.h.b16 %v194
    %v698 = vunpack.c.l.b16 %v195
    %v699 = vunpack.c.h.b16 %v195
    %v700 = vunpack.c.l.b16 %v196
    %v701 = vunpack.c.h.b16 %v196
    %v702 = vunpack.c.l.b16 %v197
    %v703 = vunpack.c.h.b16 %v197
    %v704 = vunpack.c.l.b16 %v198
    %v705 = vunpack.c.h.b16 %v198
    %v706 = vunpack.c.l.b16 %v199
    %v707 = vunpack.c.h.b16 %v199
    %v708 = vunpack.c.l.b16 %v200
    %v709 = vunpack.c.h.b16 %v200
    %v710 = vunpack.c.l.b16 %v201
    %v711 = vunpack.c.h.b16 %v201
    %v712 = vunpack.c.l.b16 %v202
    %v713 = vunpack.c.h.b16 %v202
    %v714 = vunpack.c.l.b16 %v203
    %v715 = vunpack.c.h.b16 %v203
    %v716 = vunpack.c.l.b16 %v204
    %v717 = vunpack.c.h.b16 %v204
    %v718 = vunpack.c.l.b16 %v205
    %v719 = vunpack.c.h.b16 %v205
    %v720 = vunpack.c.l.b16 %v206
    %v721 = vunpack.c.h.b16 %v206
    %v722 = vunpack.c.l.b16 %v207
    %v723 = vunpack.c.h.b16 %v207
    %v724 = vunpack.c.l.b16 %v208
    %v725 = vunpack.c.h.b16 %v208
    %v726 = vunpack.c.l.b16 %v209
    %v727 = vunpack.c.h.b16 %v209
    %v728 = vunpack.c.l.b16 %v210
    %v729 = vunpack.c.h.b16 %v210
    %v730 = vunpack.c.l.b16 %v211
    %v731 = vunpack.c.h.b16 %v211
    %v732 = vunpack.c.l.b16 %v212
    %v733 = vunpack.c.h.b16 %v212
    %v734 = vunpack.c.l.b16 %v213
    %v735 = vunpack.c.h.b16 %v213
    %v736 = vunpack.c.l.b16 %v214
    %v737 = vunpack.c.h.b16 %v214
    %v738 = vunpack.c.l.b16 %v215
    %v739 = vunpack.c.h.b16 %v215
    %v740 = vunpack.c.l.b16 %v216
    %v741 = vunpack.c.h.b16 %v216
    %v742 = vunpack.c.l.b16 %v217
    %v743 = vunpack.c.h.b16 %v217
    %v744 = vunpack.c.l.b16 %v218
    %v745 = vunpack.c.h.b16 %v218
    %v746 = vunpack.c.l.b16 %v219
    %v747 = vunpack.c.h.b16 %v219
    %v748 = vunpack.c.l.b16 %v220
    %v749 = vunpack.c.h.b16 %v220
    %v750 = vunpack.c.l.b16 %v221
    %v751 = vunpack.c.h.b16 %v221
    %v752 = vunpack.c.l.b16 %v222
    %v753 = vunpack.c.h.b16 %v222
    %v754 = vunpack.c.l.b16 %v223
    %v755 = vunpack.c.h.b16 %v223
    %v756 = vunpack.c.l.b16 %v224
    %v757 = vunpack.c.h.b16 %v224
    %v758 = vunpack.c.l.b16 %v225
    %v759 = vunpack.c.h.b16 %v225
    %v760 = vunpack.c.l.b16 %v226
    %v761 = vunpack.c.h.b16 %v226
    %v762 = vunpack.c.l.b16 %v227
    %v763 = vunpack.c.h.b16 %v227
    %v764 = vunpack.c.l.b16 %v228
    %v765 = vunpack.c.h.b16 %v228
    %v766 = vunpack.c.l.b16 %v229
    %v767 = vunpack.c.h.b16 %v229
    %v768 = vunpack.c.l.b16 %v230
    %v769 = vunpack.c.h.b16 %v230
    %v770 = vunpack.c.l.b16 %v231
    %v771 = vunpack.c.h.b16 %v231
    %v772 = vunpack.c.l.b16 %v232
    %v773 = vunpack.c.h.b16 %v232
    %v774 = vunpack.c.l.b16 %v233
    %v775 = vunpack.c.h.b16 %v233
    %v776 = vunpack.c.l.b16 %v234
    %v777 = vunpack.c.h.b16 %v234
    %v778 = vunpack.c.l.b16 %v235
    %v779 = vunpack.c.h.b16 %v235
    %v780 = vunpack.c.l.b16 %v236
    %v781 = vunpack.c.h.b16 %v236
    %v782 = vunpack.c.l.b16 %v237
    %v783 = vunpack.c.h.b16 %v237
    %v784 = vunpack.c.l.b16 %v238
    %v785 = vunpack.c.h.b16 %v238
    %v786 = vunpack.c.l.b16 %v239
    %v787 = vunpack.c.h.b16 %v239
    %v788 = vunpack.c.l.b16 %v240
    %v789 = vunpack.c.h.b16 %v240
    %v790 = vunpack.c.l.b16 %v241
    %v791 = vunpack.c.h.b16 %v241
    %v792 = vunpack.c.l.b16 %v242
    %v793 = vunpack.c.h.b16 %v242
    %v794 = vunpack.c.l.b16 %v243
    %v795 = vunpack.c.h.b16 %v243
    %v796 = vunpack.c.l.b16 %v244
    %v797 = vunpack.c.h.b16 %v244
    %v798 = vunpack.c.l.b16 %v245
    %v799 = vunpack.c.h.b16 %v245
    %v800 = vunpack.c.l.b16 %v246
    %v801 = vunpack.c.h.b16 %v246
    %v802 = vunpack.c.l.b16 %v247
    %v803 = vunpack.c.h.b16 %v247
    %v804 = vunpack.c.l.b16 %v248
    %v805 = vunpack.c.h.b16 %v248
    %v806 = vunpack.c.l.b16 %v249
    %v807 = vunpack.c.h.b16 %v249
    %v808 = vunpack.c.l.b16 %v250
    %v809 = vunpack.c.h.b16 %v250
    %v810 = vunpack.c.l.b16 %v251
    %v811 = vunpack.c.h.b16 %v251
    %v812 = vunpack.c.l.b16 %v252
    %v813 = vunpack.c.h.b16 %v252
    %v814 = vunpack.c.l.b16 %v253
    %v815 = vunpack.c.h.b16 %v253
    %v816 = vunpack.c.l.b16 %v254
    %v817 = vunpack.c.h.b16 %v254
    %v818 = vunpack.c.l.b16 %v255
    %v819 = vunpack.c.h.b16 %v255
    %v820 = vunpack.c.l.b16 %v256
    %v821 = vunpack.c.h.b16 %v256
    %v822 = vunpack.c.l.b16 %v257
    %v823 = vunpack.c.h.b16 %v257
    %v824 = vunpack.c.l.b16 %v258
    %v825 = vunpack.c.h.b16 %v258
    %v826 = vunpack.c.l.b16 %v259
    %v827 = vunpack.c.h.b16 %v259
    %v828 = vunpack.c.l.b16 %v260
    %v829 = vunpack.c.h.b16 %v260
    %v830 = vunpack.c.l.b16 %v261
    %v831 = vunpack.c.h.b16 %v261
    %v832 = vunpack.c.l.b16 %v262
    %v833 = vunpack.c.h.b16 %v262
    %v834 = vunpack.c.l.b16 %v263
    %v835 = vunpack.c.h.b16 %v263
    %v836 = vunpack.c.l.b16 %v264
    %v837 = vunpack.c.h.b16 %v264
    %v838 = vunpack.c.l.b16 %v265
    %v839 = vunpack.c.h.b16 %v265
    %v840 = vunpack.c.l.b16 %v266
    %v841 = vunpack.c.h.b16 %v266
    %v842 = vunpack.c.l.b16 %v267
    %v843 = vunpack.c.h.b16 %v267
    %v844 = vunpack.c.l.b16 %v268
    %v845 = vunpack.c.h.b16 %v268
    %v846 = vunpack.c.l.b16 %v269
    %v847 = vunpack.c.h.b16 %v269
    %v848 = vunpack.c.l.b16 %v270
    %v849 = vunpack.c.h.b16 %v270
    %v850 = vunpack.c.l.b16 %v271
    %v851 = vunpack.c.h.b16 %v271
    %v852 = vunpack.c.l.b16 %v272
    %v853 = vunpack.c.h.b16 %v272
    %v854 = vunpack.c.l.b16 %v273
    %v855 = vunpack.c.h.b16 %v273
    %v856 = vunpack.c.l.b16 %v274
    %v857 = vunpack.c.h.b16 %v274
    %v858 = vunpack.c.l.b16 %v275
    %v859 = vunpack.c.h.b16 %v275
    %v860 = vunpack.c.l.b16 %v276
    %v861 = vunpack.c.h.b16 %v276
    %v862 = vunpack.c.l.b16 %v277
    %v863 = vunpack.c.h.b16 %v277
    %v864 = vunpack.c.l.b16 %v278
    %v865 = vunpack.c.h.b16 %v278
    %v866 = vunpack.c.l.b16 %v279
    %v867 = vunpack.c.h.b16 %v279
    %v868 = vunpack.c.l.b16 %v280
    %v869 = vunpack.c.h.b16 %v280
    %v870 = vunpack.c.l.b16 %v281
    %v871 = vunpack.c.h.b16 %v281
    %v872 = vunpack.c.l.b16 %v282
    %v873 = vunpack.c.h.b16 %v282
    %v874 = vunpack.c.l.b16 %v283
    %v875 = vunpack.c.h.b16 %v283
    %v876 = vunpack.c.l.b16 %v284
    %v877 = vunpack.c.h.b16 %v284
    %v878 = vunpack.c.l.b16 %v285
    %v879 = vunpack.c.h.b16 %v285
    %v880 = vunpack.c.l.b16 %v286
    %v881 = vunpack.c.h.b16 %v286
    %v882 = vunpack.c.l.b16 %v287
    %v883 = vunpack.c.h.b16 %v287
    %v884 = vunpack.c.l.b16 %v288
    %v885 = vunpack.c.h.b16 %v288
    %v886 = vunpack.c.l.b16 %v289
    %v887 = vunpack.c.h.b16 %v289
    %v888 = vunpack.c.l.b16 %v290
    %v889 = vunpack.c.h.b16 %v290
    %v890 = vunpack.c.l.b16 %v291
    %v891 = vunpack.c.h.b16 %v291
    %v892 = vunpack.c.l.b16 %v292
    %v893 = vunpack.c.h.b16 %v292
    %v894 = vunpack.c.l.b16 %v293
    %v895 = vunpack.c.h.b16 %v293
    %v896 = vunpack.c.l.b16 %v294
    %v897 = vunpack.c.h.b16 %v294
    %v898 = vunpack.c.l.b16 %v295
    %v899 = vunpack.c.h.b16 %v295
    %v900 = vunpack.c.l.b16 %v296
    %v901 = vunpack.c.h.b16 %v296
    %v902 = vunpack.c.l.b16 %v297
    %v903 = vunpack.c.h.b16 %v297
    %v904 = vunpack.c.l.b16 %v298
    %v905 = vunpack.c.h.b16 %v298
    %v906 = vunpack.c.l.b16 %v299
    %v907 = vunpack.c.h.b16 %v299
    %v908 = vunpack.c.l.b16 %v300
    %v909 = vunpack.c.h.b16 %v300
    %v910 = vunpack.c.l.b16 %v301
    %v911 = vunpack.c.h.b16 %v301
    %v912 = vunpack.c.l.b16 %v302
    %v913 = vunpack.c.h.b16 %v302
    %v914 = vunpack.c.l.b16 %v303
    %v915 = vunpack.c.h.b16 %v303
    %v916 = vunpack.c.l.b16 %v304
    %v917 = vunpack.c.h.b16 %v304
    %v918 = vunpack.c.l.b16 %v305
    %v919 = vunpack.c.h.b16 %v305
    %v920 = vunpack.c.l.b16 %v306
    %v921 = vunpack.c.h.b16 %v306
    %v922 = vunpack.c.l.b16 %v307
    %v923 = vunpack.c.h.b16 %v307
    %v924 = vunpack.c.l.b16 %v308
    %v925 = vunpack.c.h.b16 %v308
    %v926 = vunpack.c.l.b16 %v309
    %v927 = vunpack.c.h.b16 %v309
    %v928 = vunpack.c.l.b16 %v310
    %v929 = vunpack.c.h.b16 %v310
    %v930 = vpack.c.b16 %v550, %v546
    %v931 = vpack.c.b16 %v551, %v547
    %v932 = vpack.c.b16 %v552, %v548
    %v933 = vpack.c.b16 %v553, %v549
    %v934 = vpack.c.b16 %v558, %v554
    %v935 = vpack.c.b16 %v559, %v555
    %v936 = vpack.c.b16 %v560, %v556
    %v937 = vpack.c.b16 %v561, %v557
    %v938 = vpack.c.b16 %v566, %v562
    %v939 = vpack.c.b16 %v567, %v563
    %v940 = vpack.c.b16 %v568, %v564
    %v941 = vpack.c.b16 %v569, %v565
    %v942 = vpack.c.b16 %v574, %v570
    %v943 = vpack.c.b16 %v575, %v571
    %v944 = vpack.c.b16 %v576, %v572
    %v945 = vpack.c.b16 %v577, %v573
    %v946 = vpack.c.b16 %v582, %v578
    %v947 = vpack.c.b16 %v583, %v579
    %v948 = vpack.c.b16 %v584, %v580
    %v949 = vpack.c.b16 %v585, %v581
    %v950 = vpack.c.b16 %v590, %v586
    %v951 = vpack.c.b16 %v591, %v587
    %v952 = vpack.c.b16 %v592, %v588
    %v953 = vpack.c.b16 %v593, %v589
    %v954 = vpack.c.b16 %v598, %v594
    %v955 = vpack.c.b16 %v599, %v595
    %v956 = vpack.c.b16 %v600, %v596
    %v957 = vpack.c.b16 %v601, %v597
    %v958 = vpack.c.b16 %v606, %v602
    %v959 = vpack.c.b16 %v607, %v603
    %v960 = vpack.c.b16 %v608, %v604
    %v961 = vpack.c.b16 %v609, %v605
    %v962 = vpack.c.b16 %v614, %v610
    %v963 = vpack.c.b16 %v615, %v611
    %v964 = vpack.c.b16 %v616, %v612
    %v965 = vpack.c.b16 %v617, %v613
    %v966 = vpack.c.b16 %v622, %v618
    %v967 = vpack.c.b16 %v623, %v619
    %v968 = vpack.c.b16 %v624, %v620
    %v969 = vpack.c.b16 %v625, %v621
    %v970 = vpack.c.b16 %v630, %v626
    %v971 = vpack.c.b16 %v631, %v627
    %v972 = vpack.c.b16 %v632, %v628
    %v973 = vpack.c.b16 %v633, %v629
    %v974 = vpack.c.b16 %v638, %v634
    %v975 = vpack.c.b16 %v639, %v635
    %v976 = vpack.c.b16 %v640, %v636
    %v977 = vpack.c.b16 %v641, %v637
    %v978 = vpack.c.b16 %v646, %v642
    %v979 = vpack.c.b16 %v647, %v643
    %v980 = vpack.c.b16 %v648, %v644
    %v981 = vpack.c.b16 %v649, %v645
    %v982 = vpack.c.b16 %v654, %v650
    %v983 = vpack.c.b16 %v655, %v651
    %v984 = vpack.c.b16 %v656, %v652
    %v985 = vpack.c.b16 %v657, %v653
    %v986 = vpack.c.b16 %v662, %v658
    %v987 = vpack.c.b16 %v663, %v659
    %v988 = vpack.c.b16 %v664, %v660
    %v989 = vpack.c.b16 %v665, %v661
    %v990 = vpack.c.b16 %v670, %v666
    %v991 = vpack.c.b16 %v671, %v667
    %v992 = vpack.c.b16 %v672, %v668
    %v993 = vpack.c.b16 %v673, %v669
    %v994 = vpack.c.b16 %v678, %v674
    %v995 = vpack.c.b16 %v679, %v675
    %v996 = vpack.c.b16 %v680, %v676
    %v997 = vpack.c.b16 %v681, %v677
    %v998 = vpack.c.b16 %v686, %v682
    %v999 = vpack.c.b16 %v687, %v683
    %v1000 = vpack.c.b16 %v688, %v684
    %v1001 = vpack.c.b16 %v689, %v685
    %v1002 = vpack.c.b16 %v694, %v690
    %v1003 = vpack.c.b16 %v695, %v691
    %v1004 = vpack.c.b16 %v696, %v692
    %v1005 = vpack.c.b16 %v697, %v693
    %v1006 = vpack.c.b16 %v702, %v698
    %v1007 = vpack.c.b16 %v703, %v699
    %v1008 = vpack.c.b16 %v704, %v700
    %v1009 = vpack.c.b16 %v705, %v701
    %v1010 = vpack.c.b16 %v710, %v706
    %v1011 = vpack.c.b16 %v711, %v707
    %v1012 = vpack.c.b16 %v712, %v708
    %v1013 = vpack.c.b16 %v713, %v709
    %v1014 = vpack.c.b16 %v718, %v714
    %v1015 = vpack.c.b16 %v719, %v715
    %v1016 = vpack.c.b16 %v720, %v716
    %v1017 = vpack.c.b16 %v721, %v717
    %v1018 = vpack.c.b16 %v726, %v722
    %v1019 = vpack.c.b16 %v727, %v723
    %v1020 = vpack.c.b16 %v728, %v724
    %v1021 = vpack.c.b16 %v729, %v725
    %v1022 = vpack.c.b16 %v734, %v730
    %v1023 = vpack.c.b16 %v735, %v731
    %v1024 = vpack.c.b16 %v736, %v732
    %v1025 = vpack.c.b16 %v737, %v733
    %v1026 = vpack.c.b16 %v742, %v738
    %v1027 = vpack.c.b16 %v743, %v739
    %v1028 = vpack.c.b16 %v744, %v740
    %v1029 = vpack.c.b16 %v745, %v741
    %v1030 = vpack.c.b16 %v750, %v746
    %v1031 = vpack.c.b16 %v751, %v747
    %v1032 = vpack.c.b16 %v752, %v748
    %v1033 = vpack.c.b16 %v753, %v749
    %v1034 = vpack.c.b16 %v758, %v754
    %v1035 = vpack.c.b16 %v759, %v755
    %v1036 = vpack.c.b16 %v760, %v756
    %v1037 = vpack.c.b16 %v761, %v757
    %v1038 = vpack.c.b16 %v766, %v762
    %v1039 = vpack.c.b16 %v767, %v763
    %v1040 = vpack.c.b16 %v768, %v764
    %v1041 = vpack.c.b16 %v769, %v765
    %v1042 = vpack.c.b16 %v774, %v770
    %v1043 = vpack.c.b16 %v775, %v771
    %v1044 = vpack.c.b16 %v776, %v772
    %v1045 = vpack.c.b16 %v777, %v773
    %v1046 = vpack.c.b16 %v782, %v778
    %v1047 = vpack.c.b16 %v783, %v779
    %v1048 = vpack.c.b16 %v784, %v780
    %v1049 = vpack.c.b16 %v785, %v781
    %v1050 = vpack.c.b16 %v790, %v786
    %v1051 = vpack.c.b16 %v791, %v787
    %v1052 = vpack.c.b16 %v792, %v788
    %v1053 = vpack.c.b16 %v793, %v789
    %v1054 = vpack.c.b16 %v798, %v794
    %v1055 = vpack.c.b16 %v799, %v795
    %v1056 = vpack.c.b16 %v800, %v796
    %v1057 = vpack.c.b16 %v801, %v797
    %v1058 = vpack.c.b16 %v806, %v802
    %v1059 = vpack.c.b16 %v807, %v803
    %v1060 = vpack.c.b16 %v808, %v804
    %v1061 = vpack.c.b16 %v809, %v805
    %v1062 = vpack.c.b16 %v814, %v810
    %v1063 = vpack.c.b16 %v815, %v811
    %v1064 = vpack.c.b16 %v816, %v812
    %v1065 = vpack.c.b16 %v817, %v813
    %v1066 = vpack.c.b16 %v822, %v818
    %v1067 = vpack.c.b16 %v823, %v819
    %v1068 = vpack.c.b16 %v824, %v820
    %v1069 = vpack.c.b16 %v825, %v821
    %v1070 = vpack.c.b16 %v830, %v826
    %v1071 = vpack.c.b16 %v831, %v827
    %v1072 = vpack.c.b16 %v832, %v828
    %v1073 = vpack.c.b16 %v833, %v829
    %v1074 = vpack.c.b16 %v838, %v834
    %v1075 = vpack.c.b16 %v839, %v835
    %v1076 = vpack.c.b16 %v840, %v836
    %v1077 = vpack.c.b16 %v841, %v837
    %v1078 = vpack.c.b16 %v846, %v842
    %v1079 = vpack.c.b16 %v847, %v843
    %v1080 = vpack.c.b16 %v848, %v844
    %v1081 = vpack.c.b16 %v849, %v845
    %v1082 = vpack.c.b16 %v854, %v850
    %v1083 = vpack.c.b16 %v855, %v851
    %v1084 = vpack.c.b16 %v856, %v852
    %v1085 = vpack.c.b16 %v857, %v853
    %v1086 = vpack.c.b16 %v862, %v858
    %v1087 = vpack.c.b16 %v863, %v859
    %v1088 = vpack.c.b16 %v864, %v860
    %v1089 = vpack.c.b16 %v865, %v861
    %v1090 = vpack.c.b16 %v870, %v866
    %v1091 = vpack.c.b16 %v871, %v867
    %v1092 = vpack.c.b16 %v872, %v868
    %v1093 = vpack.c.b16 %v873, %v869
    %v1094 = vpack.c.b16 %v878, %v874
    %v1095 = vpack.c.b16 %v879, %v875
    %v1096 = vpack.c.b16 %v880, %v876
    %v1097 = vpack.c.b16 %v881, %v877
    %v1098 = vpack.c.b16 %v886, %v882
    %v1099 = vpack.c.b16 %v887, %v883
    %v1100 = vpack.c.b16 %v888, %v884
    %v1101 = vpack.c.b16 %v889, %v885
    %v1102 = vpack.c.b16 %v894, %v890
    %v1103 = vpack.c.b16 %v895, %v891
    %v1104 = vpack.c.b16 %v896, %v892
    %v1105 = vpack.c.b16 %v897, %v893
    %v1106 = vpack.c.b16 %v902, %v898
    %v1107 = vpack.c.b16 %v903, %v899
    %v1108 = vpack.c.b16 %v904, %v900
    %v1109 = vpack.c.b16 %v905, %v901
    %v1110 = vpack.c.b16 %v910, %v906
    %v1111 = vpack.c.b16 %v911, %v907
    %v1112 = vpack.c.b16 %v912, %v908
    %v1113 = vpack.c.b16 %v913, %v909
    %v1114 = vpack.c.b16 %v918, %v914
    %v1115 = vpack.c.b16 %v919, %v915
    %v1116 = vpack.c.b16 %v920, %v916
    %v1117 = vpack.c.b16 %v921, %v917
    %v1118 = vpack.c.b16 %v926, %v922
    %v1119 = vpack.c.b16 %v927, %v923
    %v1120 = vpack.c.b16 %v928, %v924
    %v1121 = vpack.c.b16 %v929, %v925
    %1314 = vmatprep.subr.bf16.mxu0 %v959
    %1315 = vmatpush1.bf16.msra.mxu0 %v958
    %1316 = vmatprep.subr.bf16.mxu0 %v955
    %1317 = vmatpush1.bf16.msra.mxu0 %v954
    %1318 = vmatprep.subr.bf16.mxu0 %v951
    %1319 = vmatpush1.bf16.msra.mxu0 %v950
    %1320 = vmatprep.subr.bf16.mxu0 %v947
    %1321 = vmatpush1.bf16.msra.mxu0 %v946
    %1322 = vmatprep.subr.bf16.mxu0 %v943
    %1323 = vmatpush1.bf16.msra.mxu0 %v942
    %1324 = vmatprep.subr.bf16.mxu0 %v939
    %1325 = vmatpush1.bf16.msra.mxu0 %v938
    %1326 = vmatprep.subr.bf16.mxu0 %v935
    %1327 = vmatpush1.bf16.msra.mxu0 %v934
    %1328 = vmatprep.subr.bf16.mxu0 %v931
    %1329 = vmatpush1.bf16.msra.mxu0 %v930
    %1330 = vmatprep.subr.bf16.mxu0 %v991
    %1331 = vmatpush2.bf16.msra.mxu0 %v990
    %1332 = vmatprep.subr.bf16.mxu0 %v987
    %1333 = vmatpush2.bf16.msra.mxu0 %v986
    %1334 = vmatprep.subr.bf16.mxu0 %v983
    %1335 = vmatpush2.bf16.msra.mxu0 %v982
    %1336 = vmatprep.subr.bf16.mxu0 %v979
    %1337 = vmatpush2.bf16.msra.mxu0 %v978
    %1338 = vmatprep.subr.bf16.mxu0 %v975
    %1339 = vmatpush2.bf16.msra.mxu0 %v974
    %1340 = vmatprep.subr.bf16.mxu0 %v971
    %1341 = vmatpush2.bf16.msra.mxu0 %v970
    %1342 = vmatprep.subr.bf16.mxu0 %v967
    %1343 = vmatpush2.bf16.msra.mxu0 %v966
    %1344 = vmatprep.subr.bf16.mxu0 %v963
    %1345 = vmatpush2.bf16.msra.mxu0 %v962
    %1346 = vmatprep.mubr.bf16.mxu0 %v343
    %1347 = vmatmul.mubr.bf16.gmra.mxu0 %v342
    %v1348 = vpop.f32.mrf.mxu0
    %v1349 = vadd.f32 %v316, %v1348
    %v1350 = vpop.f32.mrf.mxu0
    %v1351 = vadd.f32 %v320, %v1350
    %v1352 = vpop.f32.mrf.mxu0
    %v1353 = vpop.f32.mrf.mxu0
    %1354 = vdwg.mxu0
    %1355 = vmatprep.subr.bf16.mxu0 %v1023
    %1356 = vmatpush1.bf16.msra.mxu0 %v1022
    %1357 = vmatprep.subr.bf16.mxu0 %v1019
    %1358 = vmatpush1.bf16.msra.mxu0 %v1018
    %1359 = vmatprep.subr.bf16.mxu0 %v1015
    %1360 = vmatpush1.bf16.msra.mxu0 %v1014
    %1361 = vmatprep.subr.bf16.mxu0 %v1011
    %1362 = vmatpush1.bf16.msra.mxu0 %v1010
    %1363 = vmatprep.subr.bf16.mxu0 %v1007
    %1364 = vmatpush1.bf16.msra.mxu0 %v1006
    %1365 = vmatprep.subr.bf16.mxu0 %v1003
    %1366 = vmatpush1.bf16.msra.mxu0 %v1002
    %1367 = vmatprep.subr.bf16.mxu0 %v999
    %1368 = vmatpush1.bf16.msra.mxu0 %v998
    %1369 = vmatprep.subr.bf16.mxu0 %v995
    %1370 = vmatpush1.bf16.msra.mxu0 %v994
    %1371 = vmatprep.subr.bf16.mxu0 %v1055
    %1372 = vmatpush2.bf16.msra.mxu0 %v1054
    %1373 = vmatprep.subr.bf16.mxu0 %v1051
    %1374 = vmatpush2.bf16.msra.mxu0 %v1050
    %1375 = vmatprep.subr.bf16.mxu0 %v1047
    %1376 = vmatpush2.bf16.msra.mxu0 %v1046
    %1377 = vmatprep.subr.bf16.mxu0 %v1043
    %1378 = vmatpush2.bf16.msra.mxu0 %v1042
    %1379 = vmatprep.subr.bf16.mxu0 %v1039
    %1380 = vmatpush2.bf16.msra.mxu0 %v1038
    %1381 = vmatprep.subr.bf16.mxu0 %v1035
    %1382 = vmatpush2.bf16.msra.mxu0 %v1034
    %1383 = vmatprep.subr.bf16.mxu0 %v1031
    %1384 = vmatpush2.bf16.msra.mxu0 %v1030
    %1385 = vmatprep.subr.bf16.mxu0 %v1027
    %1386 = vmatpush2.bf16.msra.mxu0 %v1026
    %1387 = vmatprep.mubr.bf16.mxu0 %v345
    %1388 = vmatmul.mubr.bf16.gmra.mxu0 %v344
    %v1389 = vpop.f32.mrf.mxu0
    %v1390 = vadd.f32 %v1349, %v1389
    %v1391 = vpop.f32.mrf.mxu0
    %v1392 = vadd.f32 %v1351, %v1391
    %v1393 = vpop.f32.mrf.mxu0
    %v1394 = vpop.f32.mrf.mxu0
    %1395 = vdwg.mxu0
    %1396 = vmatprep.subr.bf16.mxu0 %v1087
    %1397 = vmatpush1.bf16.msra.mxu0 %v1086
    %1398 = vmatprep.subr.bf16.mxu0 %v1083
    %1399 = vmatpush1.bf16.msra.mxu0 %v1082
    %1400 = vmatprep.subr.bf16.mxu0 %v1079
    %1401 = vmatpush1.bf16.msra.mxu0 %v1078
    %1402 = vmatprep.subr.bf16.mxu0 %v1075
    %1403 = vmatpush1.bf16.msra.mxu0 %v1074
    %1404 = vmatprep.subr.bf16.mxu0 %v1071
    %1405 = vmatpush1.bf16.msra.mxu0 %v1070
    %1406 = vmatprep.subr.bf16.mxu0 %v1067
    %1407 = vmatpush1.bf16.msra.mxu0 %v1066
    %1408 = vmatprep.subr.bf16.mxu0 %v1063
    %1409 = vmatpush1.bf16.msra.mxu0 %v1062
    %1410 = vmatprep.subr.bf16.mxu0 %v1059
    %1411 = vmatpush1.bf16.msra.mxu0 %v1058
    %1412 = vmatprep.subr.bf16.mxu0 %v1119
    %1413 = vmatpush2.bf16.msra.mxu0 %v1118
    %1414 = vmatprep.subr.bf16.mxu0 %v1115
    %1415 = vmatpush2.bf16.msra.mxu0 %v1114
    %1416 = vmatprep.subr.bf16.mxu0 %v1111
    %1417 = vmatpush2.bf16.msra.mxu0 %v1110
    %1418 = vmatprep.subr.bf16.mxu0 %v1107
    %1419 = vmatpush2.bf16.msra.mxu0 %v1106
    %1420 = vmatprep.subr.bf16.mxu0 %v1103
    %1421 = vmatpush2.bf16.msra.mxu0 %v1102
    %1422 = vmatprep.subr.bf16.mxu0 %v1099
    %1423 = vmatpush2.bf16.msra.mxu0 %v1098
    %1424 = vmatprep.subr.bf16.mxu0 %v1095
    %1425 = vmatpush2.bf16.msra.mxu0 %v1094
    %1426 = vmatprep.subr.bf16.mxu0 %v1091
    %1427 = vmatpush2.bf16.msra.mxu0 %v1090
    %1428 = vmatprep.mubr.bf16.mxu0 %v347
    %1429 = vmatmul.mubr.bf16.gmra.mxu0 %v346
    %v1430 = vpop.f32.mrf.mxu0
    %v1431 = vadd.f32 %v1390, %v1430
    %v1432 = vpop.f32.mrf.mxu0
    %v1433 = vadd.f32 %v1392, %v1432
    %v1434 = vpop.f32.mrf.mxu0
    %v1435 = vpop.f32.mrf.mxu0
    %1436 = vdwg.mxu0
    %1437 = vmatprep.subr.bf16.mxu0 %v961
    %1438 = vmatpush1.bf16.msra.mxu0 %v960
    %1439 = vmatprep.subr.bf16.mxu0 %v957
    %1440 = vmatpush1.bf16.msra.mxu0 %v956
    %1441 = vmatprep.subr.bf16.mxu0 %v953
    %1442 = vmatpush1.bf16.msra.mxu0 %v952
    %1443 = vmatprep.subr.bf16.mxu0 %v949
    %1444 = vmatpush1.bf16.msra.mxu0 %v948
    %1445 = vmatprep.subr.bf16.mxu0 %v945
    %1446 = vmatpush1.bf16.msra.mxu0 %v944
    %1447 = vmatprep.subr.bf16.mxu0 %v941
    %1448 = vmatpush1.bf16.msra.mxu0 %v940
    %1449 = vmatprep.subr.bf16.mxu0 %v937
    %1450 = vmatpush1.bf16.msra.mxu0 %v936
    %1451 = vmatprep.subr.bf16.mxu0 %v933
    %1452 = vmatpush1.bf16.msra.mxu0 %v932
    %1453 = vmatprep.subr.bf16.mxu0 %v993
    %1454 = vmatpush2.bf16.msra.mxu0 %v992
    %1455 = vmatprep.subr.bf16.mxu0 %v989
    %1456 = vmatpush2.bf16.msra.mxu0 %v988
    %1457 = vmatprep.subr.bf16.mxu0 %v985
    %1458 = vmatpush2.bf16.msra.mxu0 %v984
    %1459 = vmatprep.subr.bf16.mxu0 %v981
    %1460 = vmatpush2.bf16.msra.mxu0 %v980
    %1461 = vmatprep.subr.bf16.mxu0 %v977
    %1462 = vmatpush2.bf16.msra.mxu0 %v976
    %1463 = vmatprep.subr.bf16.mxu0 %v973
    %1464 = vmatpush2.bf16.msra.mxu0 %v972
    %1465 = vmatprep.subr.bf16.mxu0 %v969
    %1466 = vmatpush2.bf16.msra.mxu0 %v968
    %1467 = vmatprep.subr.bf16.mxu0 %v965
    %1468 = vmatpush2.bf16.msra.mxu0 %v964
    %1469 = vmatprep.mubr.bf16.mxu0 %v343
    %1470 = vmatmul.mubr.bf16.gmra.mxu0 %v342
    %v1471 = vpop.f32.mrf.mxu0
    %v1472 = vadd.f32 %v324, %v1471
    %v1473 = vpop.f32.mrf.mxu0
    %v1474 = vadd.f32 %v328, %v1473
    %v1475 = vpop.f32.mrf.mxu0
    %v1476 = vpop.f32.mrf.mxu0
    %1477 = vdwg.mxu0
    %1478 = vmatprep.subr.bf16.mxu0 %v1025
    %1479 = vmatpush1.bf16.msra.mxu0 %v1024
    %1480 = vmatprep.subr.bf16.mxu0 %v1021
    %1481 = vmatpush1.bf16.msra.mxu0 %v1020
    %1482 = vmatprep.subr.bf16.mxu0 %v1017
    %1483 = vmatpush1.bf16.msra.mxu0 %v1016
    %1484 = vmatprep.subr.bf16.mxu0 %v1013
    %1485 = vmatpush1.bf16.msra.mxu0 %v1012
    %1486 = vmatprep.subr.bf16.mxu0 %v1009
    %1487 = vmatpush1.bf16.msra.mxu0 %v1008
    %1488 = vmatprep.subr.bf16.mxu0 %v1005
    %1489 = vmatpush1.bf16.msra.mxu0 %v1004
    %1490 = vmatprep.subr.bf16.mxu0 %v1001
    %1491 = vmatpush1.bf16.msra.mxu0 %v1000
    %1492 = vmatprep.subr.bf16.mxu0 %v997
    %1493 = vmatpush1.bf16.msra.mxu0 %v996
    %1494 = vmatprep.subr.bf16.mxu0 %v1057
    %1495 = vmatpush2.bf16.msra.mxu0 %v1056
    %1496 = vmatprep.subr.bf16.mxu0 %v1053
    %1497 = vmatpush2.bf16.msra.mxu0 %v1052
    %1498 = vmatprep.subr.bf16.mxu0 %v1049
    %1499 = vmatpush2.bf16.msra.mxu0 %v1048
    %1500 = vmatprep.subr.bf16.mxu0 %v1045
    %1501 = vmatpush2.bf16.msra.mxu0 %v1044
    %1502 = vmatprep.subr.bf16.mxu0 %v1041
    %1503 = vmatpush2.bf16.msra.mxu0 %v1040
    %1504 = vmatprep.subr.bf16.mxu0 %v1037
    %1505 = vmatpush2.bf16.msra.mxu0 %v1036
    %1506 = vmatprep.subr.bf16.mxu0 %v1033
    %1507 = vmatpush2.bf16.msra.mxu0 %v1032
    %1508 = vmatprep.subr.bf16.mxu0 %v1029
    %1509 = vmatpush2.bf16.msra.mxu0 %v1028
    %1510 = vmatprep.mubr.bf16.mxu0 %v345
    %1511 = vmatmul.mubr.bf16.gmra.mxu0 %v344
    %v1512 = vpop.f32.mrf.mxu0
    %v1513 = vadd.f32 %v1472, %v1512
    %v1514 = vpop.f32.mrf.mxu0
    %v1515 = vadd.f32 %v1474, %v1514
    %v1516 = vpop.f32.mrf.mxu0
    %v1517 = vpop.f32.mrf.mxu0
    %1518 = vdwg.mxu0
    %1519 = vmatprep.subr.bf16.mxu0 %v1089
    %1520 = vmatpush1.bf16.msra.mxu0 %v1088
    %1521 = vmatprep.subr.bf16.mxu0 %v1085
    %1522 = vmatpush1.bf16.msra.mxu0 %v1084
    %1523 = vmatprep.subr.bf16.mxu0 %v1081
    %1524 = vmatpush1.bf16.msra.mxu0 %v1080
    %1525 = vmatprep.subr.bf16.mxu0 %v1077
    %1526 = vmatpush1.bf16.msra.mxu0 %v1076
    %1527 = vmatprep.subr.bf16.mxu0 %v1073
    %1528 = vmatpush1.bf16.msra.mxu0 %v1072
    %1529 = vmatprep.subr.bf16.mxu0 %v1069
    %1530 = vmatpush1.bf16.msra.mxu0 %v1068
    %1531 = vmatprep.subr.bf16.mxu0 %v1065
    %1532 = vmatpush1.bf16.msra.mxu0 %v1064
    %1533 = vmatprep.subr.bf16.mxu0 %v1061
    %1534 = vmatpush1.bf16.msra.mxu0 %v1060
    %1535 = vmatprep.subr.bf16.mxu0 %v1121
    %1536 = vmatpush2.bf16.msra.mxu0 %v1120
    %1537 = vmatprep.subr.bf16.mxu0 %v1117
    %1538 = vmatpush2.bf16.msra.mxu0 %v1116
    %1539 = vmatprep.subr.bf16.mxu0 %v1113
    %1540 = vmatpush2.bf16.msra.mxu0 %v1112
    %1541 = vmatprep.subr.bf16.mxu0 %v1109
    %1542 = vmatpush2.bf16.msra.mxu0 %v1108
    %1543 = vmatprep.subr.bf16.mxu0 %v1105
    %1544 = vmatpush2.bf16.msra.mxu0 %v1104
    %1545 = vmatprep.subr.bf16.mxu0 %v1101
    %1546 = vmatpush2.bf16.msra.mxu0 %v1100
    %1547 = vmatprep.subr.bf16.mxu0 %v1097
    %1548 = vmatpush2.bf16.msra.mxu0 %v1096
    %1549 = vmatprep.subr.bf16.mxu0 %v1093
    %1550 = vmatpush2.bf16.msra.mxu0 %v1092
    %1551 = vmatprep.mubr.bf16.mxu0 %v347
    %1552 = vmatmul.mubr.bf16.gmra.mxu0 %v346
    %v1553 = vpop.f32.mrf.mxu0
    %v1554 = vadd.f32 %v1513, %v1553
    %v1555 = vpop.f32.mrf.mxu0
    %v1556 = vadd.f32 %v1515, %v1555
    %v1557 = vpop.f32.mrf.mxu0
    %v1558 = vpop.f32.mrf.mxu0
    %1559 = vdwg.mxu0
    %v1560 = vmax.f32 %v1431, 0.0
    %v1561 = vmax.f32 %v1433, 0.0
    %v1562 = vmax.f32 %v1554, 0.0
    %v1563 = vmax.f32 %v1556, 0.0
    %v1564 = vpack.c.bf16 %v1560, %v1560
    %v1565 = vpack.c.bf16 %v1561, %v1561
    %v1566 = vpack.c.bf16 %v1562, %v1562
    %v1567 = vpack.c.bf16 %v1563, %v1563
    %v1568 = vld [vmem:[#allocation5] sm:$0xff]
    %v1569 = vld [vmem:[#allocation5 + $0x8] sm:$0xff]
    %v1570 = vld [vmem:[#allocation5 + $0x10] sm:$0xff]
    %v1571 = vld [vmem:[#allocation5 + $0x18] sm:$0xff]
    %v1572 = vld [vmem:[#allocation5 + $0x20] sm:$0xff]
    %v1573 = vld [vmem:[#allocation5 + $0x28] sm:$0xff]
    %v1574 = vld [vmem:[#allocation5 + $0x30] sm:$0xff]
    %v1575 = vld [vmem:[#allocation5 + $0x38] sm:$0xff]
    %v1576 = vld [vmem:[#allocation5 + $0x40] sm:$0xff]
    %v1577 = vld [vmem:[#allocation5 + $0x48] sm:$0xff]
    %v1578 = vld [vmem:[#allocation5 + $0x50] sm:$0xff]
    %v1579 = vld [vmem:[#allocation5 + $0x58] sm:$0xff]
    %v1580 = vld [vmem:[#allocation5 + $0x60] sm:$0xff]
    %v1581 = vld [vmem:[#allocation5 + $0x68] sm:$0xff]
    %v1582 = vld [vmem:[#allocation5 + $0x70] sm:$0xff]
    %v1583 = vld [vmem:[#allocation5 + $0x78] sm:$0xff]
    %v1584 = vld [vmem:[#allocation5 + $0x80] sm:$0xff]
    %v1585 = vld [vmem:[#allocation5 + $0x88] sm:$0xff]
    %v1586 = vld [vmem:[#allocation5 + $0x90] sm:$0xff]
    %v1587 = vld [vmem:[#allocation5 + $0x98] sm:$0xff]
    %v1588 = vld [vmem:[#allocation5 + $0xa0] sm:$0xff]
    %v1589 = vld [vmem:[#allocation5 + $0xa8] sm:$0xff]
    %v1590 = vld [vmem:[#allocation5 + $0xb0] sm:$0xff]
    %v1591 = vld [vmem:[#allocation5 + $0xb8] sm:$0xff]
    %v1592 = vld [vmem:[#allocation5 + $0xc0] sm:$0xff]
    %v1593 = vld [vmem:[#allocation5 + $0xc8] sm:$0xff]
    %v1594 = vld [vmem:[#allocation5 + $0xd0] sm:$0xff]
    %v1595 = vld [vmem:[#allocation5 + $0xd8] sm:$0xff]
    %v1596 = vld [vmem:[#allocation5 + $0xe0] sm:$0xff]
    %v1597 = vld [vmem:[#allocation5 + $0xe8] sm:$0xff]
    %v1598 = vld [vmem:[#allocation5 + $0xf0] sm:$0xff]
    %v1599 = vld [vmem:[#allocation5 + $0xf8] sm:$0xff]
    %v1600 = vld [vmem:[#allocation5 + $0x100] sm:$0xff]
    %v1601 = vld [vmem:[#allocation5 + $0x108] sm:$0xff]
    %v1602 = vld [vmem:[#allocation5 + $0x110] sm:$0xff]
    %v1603 = vld [vmem:[#allocation5 + $0x118] sm:$0xff]
    %v1604 = vld [vmem:[#allocation5 + $0x120] sm:$0xff]
    %v1605 = vld [vmem:[#allocation5 + $0x128] sm:$0xff]
    %v1606 = vld [vmem:[#allocation5 + $0x130] sm:$0xff]
    %v1607 = vld [vmem:[#allocation5 + $0x138] sm:$0xff]
    %v1608 = vld [vmem:[#allocation5 + $0x140] sm:$0xff]
    %v1609 = vld [vmem:[#allocation5 + $0x148] sm:$0xff]
    %v1610 = vld [vmem:[#allocation5 + $0x150] sm:$0xff]
    %v1611 = vld [vmem:[#allocation5 + $0x158] sm:$0xff]
    %v1612 = vld [vmem:[#allocation5 + $0x160] sm:$0xff]
    %v1613 = vld [vmem:[#allocation5 + $0x168] sm:$0xff]
    %v1614 = vld [vmem:[#allocation5 + $0x170] sm:$0xff]
    %v1615 = vld [vmem:[#allocation5 + $0x178] sm:$0xff]
    %v1616 = vld [vmem:[#allocation5 + $0x180] sm:$0xff]
    %v1617 = vld [vmem:[#allocation5 + $0x188] sm:$0xff]
    %v1618 = vld [vmem:[#allocation5 + $0x190] sm:$0xff]
    %v1619 = vld [vmem:[#allocation5 + $0x198] sm:$0xff]
    %v1620 = vld [vmem:[#allocation5 + $0x1a0] sm:$0xff]
    %v1621 = vld [vmem:[#allocation5 + $0x1a8] sm:$0xff]
    %v1622 = vld [vmem:[#allocation5 + $0x1b0] sm:$0xff]
    %v1623 = vld [vmem:[#allocation5 + $0x1b8] sm:$0xff]
    %v1624 = vld [vmem:[#allocation5 + $0x1c0] sm:$0xff]
    %v1625 = vld [vmem:[#allocation5 + $0x1c8] sm:$0xff]
    %v1626 = vld [vmem:[#allocation5 + $0x1d0] sm:$0xff]
    %v1627 = vld [vmem:[#allocation5 + $0x1d8] sm:$0xff]
    %v1628 = vld [vmem:[#allocation5 + $0x1e0] sm:$0xff]
    %v1629 = vld [vmem:[#allocation5 + $0x1e8] sm:$0xff]
    %v1630 = vld [vmem:[#allocation5 + $0x1f0] sm:$0xff]
    %v1631 = vld [vmem:[#allocation5 + $0x1f8] sm:$0xff]
    %v1632 = vld [vmem:[%s4] sm:$0x3]
    %v1634 = vlaneseq
    %v1635 = vshrl.u32 %v1634, 7
    %v1636 = vsub.s32 0, %v1635
    %v1637 = vrot.slane %v1632, %v1636
    %v1638 = vlaneseq
    %v1639 = vshrl.u32 %v1638, 7
    %v1640 = vsub.s32 1, %v1639
    %v1641 = vrot.slane %v1632, %v1640
    %v1708 = vunpack.c.l.b16 %v1568
    %v1709 = vunpack.c.h.b16 %v1568
    %v1710 = vunpack.c.l.b16 %v1569
    %v1711 = vunpack.c.h.b16 %v1569
    %v1712 = vunpack.c.l.b16 %v1570
    %v1713 = vunpack.c.h.b16 %v1570
    %v1714 = vunpack.c.l.b16 %v1571
    %v1715 = vunpack.c.h.b16 %v1571
    %v1716 = vunpack.c.l.b16 %v1572
    %v1717 = vunpack.c.h.b16 %v1572
    %v1718 = vunpack.c.l.b16 %v1573
    %v1719 = vunpack.c.h.b16 %v1573
    %v1720 = vunpack.c.l.b16 %v1574
    %v1721 = vunpack.c.h.b16 %v1574
    %v1722 = vunpack.c.l.b16 %v1575
    %v1723 = vunpack.c.h.b16 %v1575
    %v1724 = vunpack.c.l.b16 %v1576
    %v1725 = vunpack.c.h.b16 %v1576
    %v1726 = vunpack.c.l.b16 %v1577
    %v1727 = vunpack.c.h.b16 %v1577
    %v1728 = vunpack.c.l.b16 %v1578
    %v1729 = vunpack.c.h.b16 %v1578
    %v1730 = vunpack.c.l.b16 %v1579
    %v1731 = vunpack.c.h.b16 %v1579
    %v1732 = vunpack.c.l.b16 %v1580
    %v1733 = vunpack.c.h.b16 %v1580
    %v1734 = vunpack.c.l.b16 %v1581
    %v1735 = vunpack.c.h.b16 %v1581
    %v1736 = vunpack.c.l.b16 %v1582
    %v1737 = vunpack.c.h.b16 %v1582
    %v1738 = vunpack.c.l.b16 %v1583
    %v1739 = vunpack.c.h.b16 %v1583
    %v1740 = vunpack.c.l.b16 %v1584
    %v1741 = vunpack.c.h.b16 %v1584
    %v1742 = vunpack.c.l.b16 %v1585
    %v1743 = vunpack.c.h.b16 %v1585
    %v1744 = vunpack.c.l.b16 %v1586
    %v1745 = vunpack.c.h.b16 %v1586
    %v1746 = vunpack.c.l.b16 %v1587
    %v1747 = vunpack.c.h.b16 %v1587
    %v1748 = vunpack.c.l.b16 %v1588
    %v1749 = vunpack.c.h.b16 %v1588
    %v1750 = vunpack.c.l.b16 %v1589
    %v1751 = vunpack.c.h.b16 %v1589
    %v1752 = vunpack.c.l.b16 %v1590
    %v1753 = vunpack.c.h.b16 %v1590
    %v1754 = vunpack.c.l.b16 %v1591
    %v1755 = vunpack.c.h.b16 %v1591
    %v1756 = vunpack.c.l.b16 %v1592
    %v1757 = vunpack.c.h.b16 %v1592
    %v1758 = vunpack.c.l.b16 %v1593
    %v1759 = vunpack.c.h.b16 %v1593
    %v1760 = vunpack.c.l.b16 %v1594
    %v1761 = vunpack.c.h.b16 %v1594
    %v1762 = vunpack.c.l.b16 %v1595
    %v1763 = vunpack.c.h.b16 %v1595
    %v1764 = vunpack.c.l.b16 %v1596
    %v1765 = vunpack.c.h.b16 %v1596
    %v1766 = vunpack.c.l.b16 %v1597
    %v1767 = vunpack.c.h.b16 %v1597
    %v1768 = vunpack.c.l.b16 %v1598
    %v1769 = vunpack.c.h.b16 %v1598
    %v1770 = vunpack.c.l.b16 %v1599
    %v1771 = vunpack.c.h.b16 %v1599
    %v1772 = vunpack.c.l.b16 %v1600
    %v1773 = vunpack.c.h.b16 %v1600
    %v1774 = vunpack.c.l.b16 %v1601
    %v1775 = vunpack.c.h.b16 %v1601
    %v1776 = vunpack.c.l.b16 %v1602
    %v1777 = vunpack.c.h.b16 %v1602
    %v1778 = vunpack.c.l.b16 %v1603
    %v1779 = vunpack.c.h.b16 %v1603
    %v1780 = vunpack.c.l.b16 %v1604
    %v1781 = vunpack.c.h.b16 %v1604
    %v1782 = vunpack.c.l.b16 %v1605
    %v1783 = vunpack.c.h.b16 %v1605
    %v1784 = vunpack.c.l.b16 %v1606
    %v1785 = vunpack.c.h.b16 %v1606
    %v1786 = vunpack.c.l.b16 %v1607
    %v1787 = vunpack.c.h.b16 %v1607
    %v1788 = vunpack.c.l.b16 %v1608
    %v1789 = vunpack.c.h.b16 %v1608
    %v1790 = vunpack.c.l.b16 %v1609
    %v1791 = vunpack.c.h.b16 %v1609
    %v1792 = vunpack.c.l.b16 %v1610
    %v1793 = vunpack.c.h.b16 %v1610
    %v1794 = vunpack.c.l.b16 %v1611
    %v1795 = vunpack.c.h.b16 %v1611
    %v1796 = vunpack.c.l.b16 %v1612
    %v1797 = vunpack.c.h.b16 %v1612
    %v1798 = vunpack.c.l.b16 %v1613
    %v1799 = vunpack.c.h.b16 %v1613
    %v1800 = vunpack.c.l.b16 %v1614
    %v1801 = vunpack.c.h.b16 %v1614
    %v1802 = vunpack.c.l.b16 %v1615
    %v1803 = vunpack.c.h.b16 %v1615
    %v1804 = vunpack.c.l.b16 %v1616
    %v1805 = vunpack.c.h.b16 %v1616
    %v1806 = vunpack.c.l.b16 %v1617
    %v1807 = vunpack.c.h.b16 %v1617
    %v1808 = vunpack.c.l.b16 %v1618
    %v1809 = vunpack.c.h.b16 %v1618
    %v1810 = vunpack.c.l.b16 %v1619
    %v1811 = vunpack.c.h.b16 %v1619
    %v1812 = vunpack.c.l.b16 %v1620
    %v1813 = vunpack.c.h.b16 %v1620
    %v1814 = vunpack.c.l.b16 %v1621
    %v1815 = vunpack.c.h.b16 %v1621
    %v1816 = vunpack.c.l.b16 %v1622
    %v1817 = vunpack.c.h.b16 %v1622
    %v1818 = vunpack.c.l.b16 %v1623
    %v1819 = vunpack.c.h.b16 %v1623
    %v1820 = vunpack.c.l.b16 %v1624
    %v1821 = vunpack.c.h.b16 %v1624
    %v1822 = vunpack.c.l.b16 %v1625
    %v1823 = vunpack.c.h.b16 %v1625
    %v1824 = vunpack.c.l.b16 %v1626
    %v1825 = vunpack.c.h.b16 %v1626
    %v1826 = vunpack.c.l.b16 %v1627
    %v1827 = vunpack.c.h.b16 %v1627
    %v1828 = vunpack.c.l.b16 %v1628
    %v1829 = vunpack.c.h.b16 %v1628
    %v1830 = vunpack.c.l.b16 %v1629
    %v1831 = vunpack.c.h.b16 %v1629
    %v1832 = vunpack.c.l.b16 %v1630
    %v1833 = vunpack.c.h.b16 %v1630
    %v1834 = vunpack.c.l.b16 %v1631
    %v1835 = vunpack.c.h.b16 %v1631
    %v1836 = vpack.c.b16 %v1710, %v1708
    %v1837 = vpack.c.b16 %v1711, %v1709
    %v1838 = vpack.c.b16 %v1714, %v1712
    %v1839 = vpack.c.b16 %v1715, %v1713
    %v1840 = vpack.c.b16 %v1718, %v1716
    %v1841 = vpack.c.b16 %v1719, %v1717
    %v1842 = vpack.c.b16 %v1722, %v1720
    %v1843 = vpack.c.b16 %v1723, %v1721
    %v1844 = vpack.c.b16 %v1726, %v1724
    %v1845 = vpack.c.b16 %v1727, %v1725
    %v1846 = vpack.c.b16 %v1730, %v1728
    %v1847 = vpack.c.b16 %v1731, %v1729
    %v1848 = vpack.c.b16 %v1734, %v1732
    %v1849 = vpack.c.b16 %v1735, %v1733
    %v1850 = vpack.c.b16 %v1738, %v1736
    %v1851 = vpack.c.b16 %v1739, %v1737
    %v1852 = vpack.c.b16 %v1742, %v1740
    %v1853 = vpack.c.b16 %v1743, %v1741
    %v1854 = vpack.c.b16 %v1746, %v1744
    %v1855 = vpack.c.b16 %v1747, %v1745
    %v1856 = vpack.c.b16 %v1750, %v1748
    %v1857 = vpack.c.b16 %v1751, %v1749
    %v1858 = vpack.c.b16 %v1754, %v1752
    %v1859 = vpack.c.b16 %v1755, %v1753
    %v1860 = vpack.c.b16 %v1758, %v1756
    %v1861 = vpack.c.b16 %v1759, %v1757
    %v1862 = vpack.c.b16 %v1762, %v1760
    %v1863 = vpack.c.b16 %v1763, %v1761
    %v1864 = vpack.c.b16 %v1766, %v1764
    %v1865 = vpack.c.b16 %v1767, %v1765
    %v1866 = vpack.c.b16 %v1770, %v1768
    %v1867 = vpack.c.b16 %v1771, %v1769
    %v1868 = vpack.c.b16 %v1774, %v1772
    %v1869 = vpack.c.b16 %v1775, %v1773
    %v1870 = vpack.c.b16 %v1778, %v1776
    %v1871 = vpack.c.b16 %v1779, %v1777
    %v1872 = vpack.c.b16 %v1782, %v1780
    %v1873 = vpack.c.b16 %v1783, %v1781
    %v1874 = vpack.c.b16 %v1786, %v1784
    %v1875 = vpack.c.b16 %v1787, %v1785
    %v1876 = vpack.c.b16 %v1790, %v1788
    %v1877 = vpack.c.b16 %v1791, %v1789
    %v1878 = vpack.c.b16 %v1794, %v1792
    %v1879 = vpack.c.b16 %v1795, %v1793
    %v1880 = vpack.c.b16 %v1798, %v1796
    %v1881 = vpack.c.b16 %v1799, %v1797
    %v1882 = vpack.c.b16 %v1802, %v1800
    %v1883 = vpack.c.b16 %v1803, %v1801
    %v1884 = vpack.c.b16 %v1806, %v1804
    %v1885 = vpack.c.b16 %v1807, %v1805
    %v1886 = vpack.c.b16 %v1810, %v1808
    %v1887 = vpack.c.b16 %v1811, %v1809
    %v1888 = vpack.c.b16 %v1814, %v1812
    %v1889 = vpack.c.b16 %v1815, %v1813
    %v1890 = vpack.c.b16 %v1818, %v1816
    %v1891 = vpack.c.b16 %v1819, %v1817
    %v1892 = vpack.c.b16 %v1822, %v1820
    %v1893 = vpack.c.b16 %v1823, %v1821
    %v1894 = vpack.c.b16 %v1826, %v1824
    %v1895 = vpack.c.b16 %v1827, %v1825
    %v1896 = vpack.c.b16 %v1830, %v1828
    %v1897 = vpack.c.b16 %v1831, %v1829
    %v1898 = vpack.c.b16 %v1834, %v1832
    %v1899 = vpack.c.b16 %v1835, %v1833
    %1964 = vmatprep.subr.bf16.mxu0 %v1851
    %1965 = vmatpush1.bf16.msra.mxu0 %v1850
    %1966 = vmatprep.subr.bf16.mxu0 %v1849
    %1967 = vmatpush1.bf16.msra.mxu0 %v1848
    %1968 = vmatprep.subr.bf16.mxu0 %v1847
    %1969 = vmatpush1.bf16.msra.mxu0 %v1846
    %1970 = vmatprep.subr.bf16.mxu0 %v1845
    %1971 = vmatpush1.bf16.msra.mxu0 %v1844
    %1972 = vmatprep.subr.bf16.mxu0 %v1843
    %1973 = vmatpush1.bf16.msra.mxu0 %v1842
    %1974 = vmatprep.subr.bf16.mxu0 %v1841
    %1975 = vmatpush1.bf16.msra.mxu0 %v1840
    %1976 = vmatprep.subr.bf16.mxu0 %v1839
    %1977 = vmatpush1.bf16.msra.mxu0 %v1838
    %1978 = vmatprep.subr.bf16.mxu0 %v1837
    %1979 = vmatpush1.bf16.msra.mxu0 %v1836
    %1980 = vmatprep.subr.bf16.mxu0 %v1867
    %1981 = vmatpush2.bf16.msra.mxu0 %v1866
    %1982 = vmatprep.subr.bf16.mxu0 %v1865
    %1983 = vmatpush2.bf16.msra.mxu0 %v1864
    %1984 = vmatprep.subr.bf16.mxu0 %v1863
    %1985 = vmatpush2.bf16.msra.mxu0 %v1862
    %1986 = vmatprep.subr.bf16.mxu0 %v1861
    %1987 = vmatpush2.bf16.msra.mxu0 %v1860
    %1988 = vmatprep.subr.bf16.mxu0 %v1859
    %1989 = vmatpush2.bf16.msra.mxu0 %v1858
    %1990 = vmatprep.subr.bf16.mxu0 %v1857
    %1991 = vmatpush2.bf16.msra.mxu0 %v1856
    %1992 = vmatprep.subr.bf16.mxu0 %v1855
    %1993 = vmatpush2.bf16.msra.mxu0 %v1854
    %1994 = vmatprep.subr.bf16.mxu0 %v1853
    %1995 = vmatpush2.bf16.msra.mxu0 %v1852
    %1996 = vmatprep.mubr.bf16.mxu0 %v1565
    %1997 = vmatmul.mubr.bf16.gmra.mxu0 %v1564
    %v1998 = vpop.f32.mrf.mxu0
    %v1999 = vadd.f32 %v1637, %v1998
    %v2000 = vpop.f32.mrf.mxu0
    %v2001 = vadd.f32 %v1641, %v2000
    %v2002 = vpop.f32.mrf.mxu0
    %v2003 = vpop.f32.mrf.mxu0
    %2004 = vdwg.mxu0
    %2005 = vmatprep.subr.bf16.mxu0 %v1883
    %2006 = vmatpush1.bf16.msra.mxu0 %v1882
    %2007 = vmatprep.subr.bf16.mxu0 %v1881
    %2008 = vmatpush1.bf16.msra.mxu0 %v1880
    %2009 = vmatprep.subr.bf16.mxu0 %v1879
    %2010 = vmatpush1.bf16.msra.mxu0 %v1878
    %2011 = vmatprep.subr.bf16.mxu0 %v1877
    %2012 = vmatpush1.bf16.msra.mxu0 %v1876
    %2013 = vmatprep.subr.bf16.mxu0 %v1875
    %2014 = vmatpush1.bf16.msra.mxu0 %v1874
    %2015 = vmatprep.subr.bf16.mxu0 %v1873
    %2016 = vmatpush1.bf16.msra.mxu0 %v1872
    %2017 = vmatprep.subr.bf16.mxu0 %v1871
    %2018 = vmatpush1.bf16.msra.mxu0 %v1870
    %2019 = vmatprep.subr.bf16.mxu0 %v1869
    %2020 = vmatpush1.bf16.msra.mxu0 %v1868
    %2021 = vmatprep.subr.bf16.mxu0 %v1899
    %2022 = vmatpush2.bf16.msra.mxu0 %v1898
    %2023 = vmatprep.subr.bf16.mxu0 %v1897
    %2024 = vmatpush2.bf16.msra.mxu0 %v1896
    %2025 = vmatprep.subr.bf16.mxu0 %v1895
    %2026 = vmatpush2.bf16.msra.mxu0 %v1894
    %2027 = vmatprep.subr.bf16.mxu0 %v1893
    %2028 = vmatpush2.bf16.msra.mxu0 %v1892
    %2029 = vmatprep.subr.bf16.mxu0 %v1891
    %2030 = vmatpush2.bf16.msra.mxu0 %v1890
    %2031 = vmatprep.subr.bf16.mxu0 %v1889
    %2032 = vmatpush2.bf16.msra.mxu0 %v1888
    %2033 = vmatprep.subr.bf16.mxu0 %v1887
    %2034 = vmatpush2.bf16.msra.mxu0 %v1886
    %2035 = vmatprep.subr.bf16.mxu0 %v1885
    %2036 = vmatpush2.bf16.msra.mxu0 %v1884
    %2037 = vmatprep.mubr.bf16.mxu0 %v1567
    %2038 = vmatmul.mubr.bf16.gmra.mxu0 %v1566
    %v2039 = vpop.f32.mrf.mxu0
    %v2040 = vadd.f32 %v1999, %v2039
    %v2041 = vpop.f32.mrf.mxu0
    %v2042 = vadd.f32 %v2001, %v2041
    %v2043 = vpop.f32.mrf.mxu0
    %v2044 = vpop.f32.mrf.mxu0
    %2045 = vdwg.mxu0
    %v2046 = vmax.f32 %v2040, 0.0
    %v2047 = vmax.f32 %v2042, 0.0
    %v2048 = vpack.c.bf16 %v2046, %v2046
    %v2049 = vpack.c.bf16 %v2047, %v2047
    %v2050 = vld [vmem:[%s5] sm:$0xf]
    %v2051 = vld [vmem:[%s5 + $0x4] sm:$0xf]
    %v2052 = vld [vmem:[%s5 + $0x8] sm:$0xf]
    %v2053 = vld [vmem:[%s5 + $0xc] sm:$0xf]
    %v2054 = vld [vmem:[%s5 + $0x10] sm:$0xf]
    %v2055 = vld [vmem:[%s5 + $0x14] sm:$0xf]
    %v2056 = vld [vmem:[%s5 + $0x18] sm:$0xf]
    %v2057 = vld [vmem:[%s5 + $0x1c] sm:$0xf]
    %v2058 = vld [vmem:[%s5 + $0x20] sm:$0xf]
    %v2059 = vld [vmem:[%s5 + $0x24] sm:$0xf]
    %v2060 = vld [vmem:[%s5 + $0x28] sm:$0xf]
    %v2061 = vld [vmem:[%s5 + $0x2c] sm:$0xf]
    %v2062 = vld [vmem:[%s5 + $0x30] sm:$0xf]
    %v2063 = vld [vmem:[%s5 + $0x34] sm:$0xf]
    %v2064 = vld [vmem:[%s5 + $0x38] sm:$0xf]
    %v2065 = vld [vmem:[%s5 + $0x3c] sm:$0xf]
    %v2066 = vld [vmem:[%s5 + $0x40] sm:$0xf]
    %v2067 = vld [vmem:[%s5 + $0x44] sm:$0xf]
    %v2068 = vld [vmem:[%s5 + $0x48] sm:$0xf]
    %v2069 = vld [vmem:[%s5 + $0x4c] sm:$0xf]
    %v2070 = vld [vmem:[%s5 + $0x50] sm:$0xf]
    %v2071 = vld [vmem:[%s5 + $0x54] sm:$0xf]
    %v2072 = vld [vmem:[%s5 + $0x58] sm:$0xf]
    %v2073 = vld [vmem:[%s5 + $0x5c] sm:$0xf]
    %v2074 = vld [vmem:[%s5 + $0x60] sm:$0xf]
    %v2075 = vld [vmem:[%s5 + $0x64] sm:$0xf]
    %v2076 = vld [vmem:[%s5 + $0x68] sm:$0xf]
    %v2077 = vld [vmem:[%s5 + $0x6c] sm:$0xf]
    %v2078 = vld [vmem:[%s5 + $0x70] sm:$0xf]
    %v2079 = vld [vmem:[%s5 + $0x74] sm:$0xf]
    %v2080 = vld [vmem:[%s5 + $0x78] sm:$0xf]
    %v2081 = vld [vmem:[%s5 + $0x7c] sm:$0xf]
    %v2082 = vld [vmem:[%s6] sm:$0x1]
    %v2084 = vlaneseq
    %v2085 = vshrl.u32 %v2084, 7
    %v2086 = vsub.s32 0, %v2085
    %v2087 = vrot.slane %v2082, %v2086
    %v2121 = vunpack.c.l.b16 %v2050
    %v2122 = vunpack.c.l.b16 %v2051
    %v2123 = vunpack.c.l.b16 %v2052
    %v2124 = vunpack.c.l.b16 %v2053
    %v2125 = vunpack.c.l.b16 %v2054
    %v2126 = vunpack.c.l.b16 %v2055
    %v2127 = vunpack.c.l.b16 %v2056
    %v2128 = vunpack.c.l.b16 %v2057
    %v2129 = vunpack.c.l.b16 %v2058
    %v2130 = vunpack.c.l.b16 %v2059
    %v2131 = vunpack.c.l.b16 %v2060
    %v2132 = vunpack.c.l.b16 %v2061
    %v2133 = vunpack.c.l.b16 %v2062
    %v2134 = vunpack.c.l.b16 %v2063
    %v2135 = vunpack.c.l.b16 %v2064
    %v2136 = vunpack.c.l.b16 %v2065
    %v2137 = vunpack.c.l.b16 %v2066
    %v2138 = vunpack.c.l.b16 %v2067
    %v2139 = vunpack.c.l.b16 %v2068
    %v2140 = vunpack.c.l.b16 %v2069
    %v2141 = vunpack.c.l.b16 %v2070
    %v2142 = vunpack.c.l.b16 %v2071
    %v2143 = vunpack.c.l.b16 %v2072
    %v2144 = vunpack.c.l.b16 %v2073
    %v2145 = vunpack.c.l.b16 %v2074
    %v2146 = vunpack.c.l.b16 %v2075
    %v2147 = vunpack.c.l.b16 %v2076
    %v2148 = vunpack.c.l.b16 %v2077
    %v2149 = vunpack.c.l.b16 %v2078
    %v2150 = vunpack.c.l.b16 %v2079
    %v2151 = vunpack.c.l.b16 %v2080
    %v2152 = vunpack.c.l.b16 %v2081
    %v2153 = vpack.c.b16 %v2122, %v2121
    %v2154 = vpack.c.b16 %v2124, %v2123
    %v2155 = vpack.c.b16 %v2126, %v2125
    %v2156 = vpack.c.b16 %v2128, %v2127
    %v2157 = vpack.c.b16 %v2130, %v2129
    %v2158 = vpack.c.b16 %v2132, %v2131
    %v2159 = vpack.c.b16 %v2134, %v2133
    %v2160 = vpack.c.b16 %v2136, %v2135
    %v2161 = vpack.c.b16 %v2138, %v2137
    %v2162 = vpack.c.b16 %v2140, %v2139
    %v2163 = vpack.c.b16 %v2142, %v2141
    %v2164 = vpack.c.b16 %v2144, %v2143
    %v2165 = vpack.c.b16 %v2146, %v2145
    %v2166 = vpack.c.b16 %v2148, %v2147
    %v2167 = vpack.c.b16 %v2150, %v2149
    %v2168 = vpack.c.b16 %v2152, %v2151
    %2185 = vmatprep.subr.bf16.mxu0 0
    %2186 = vmatpush1.bf16.msra.mxu0 %v2160
    %2187 = vmatprep.subr.bf16.mxu0 0
    %2188 = vmatpush1.bf16.msra.mxu0 %v2159
    %2189 = vmatprep.subr.bf16.mxu0 0
    %2190 = vmatpush1.bf16.msra.mxu0 %v2158
    %2191 = vmatprep.subr.bf16.mxu0 0
    %2192 = vmatpush1.bf16.msra.mxu0 %v2157
    %2193 = vmatprep.subr.bf16.mxu0 0
    %2194 = vmatpush1.bf16.msra.mxu0 %v2156
    %2195 = vmatprep.subr.bf16.mxu0 0
    %2196 = vmatpush1.bf16.msra.mxu0 %v2155
    %2197 = vmatprep.subr.bf16.mxu0 0
    %2198 = vmatpush1.bf16.msra.mxu0 %v2154
    %2199 = vmatprep.subr.bf16.mxu0 0
    %2200 = vmatpush1.bf16.msra.mxu0 %v2153
    %2201 = vmatprep.subr.bf16.mxu0 0
    %2202 = vmatpush2.bf16.msra.mxu0 %v2168
    %2203 = vmatprep.subr.bf16.mxu0 0
    %2204 = vmatpush2.bf16.msra.mxu0 %v2167
    %2205 = vmatprep.subr.bf16.mxu0 0
    %2206 = vmatpush2.bf16.msra.mxu0 %v2166
    %2207 = vmatprep.subr.bf16.mxu0 0
    %2208 = vmatpush2.bf16.msra.mxu0 %v2165
    %2209 = vmatprep.subr.bf16.mxu0 0
    %2210 = vmatpush2.bf16.msra.mxu0 %v2164
    %2211 = vmatprep.subr.bf16.mxu0 0
    %2212 = vmatpush2.bf16.msra.mxu0 %v2163
    %2213 = vmatprep.subr.bf16.mxu0 0
    %2214 = vmatpush2.bf16.msra.mxu0 %v2162
    %2215 = vmatprep.subr.bf16.mxu0 0
    %2216 = vmatpush2.bf16.msra.mxu0 %v2161
    %2217 = vmatprep.mubr.bf16.mxu0 %v2049
    %2218 = vmatmul.mubr.bf16.gmra.mxu0 %v2048
    %v2219 = vpop.f32.mrf.mxu0
    %v2220 = vadd.f32 %v2087, %v2219
    %v2221 = vpop.f32.mrf.mxu0
    %v2222 = vpop.f32.mrf.mxu0
    %v2223 = vpop.f32.mrf.mxu0
    %2224 = vdwg.mxu0
    %v2225 = vmax.f32 %v2220, 0.0
    %v2226 = vpack.c.bf16 %v2225, %v2225
    %v2227 = vld [vmem:[%s7] sm:$0xf]
    %v2228 = vld [vmem:[%s7 + $0x4] sm:$0xf]
    %v2229 = vld [vmem:[%s7 + $0x8] sm:$0xf]
    %v2230 = vld [vmem:[%s7 + $0xc] sm:$0xf]
    %v2231 = vld [vmem:[%s7 + $0x10] sm:$0xf]
    %v2232 = vld [vmem:[%s7 + $0x14] sm:$0xf]
    %v2233 = vld [vmem:[%s7 + $0x18] sm:$0xf]
    %v2234 = vld [vmem:[%s7 + $0x1c] sm:$0xf]
    %v2235 = vld [vmem:[%s7 + $0x20] sm:$0xf]
    %v2236 = vld [vmem:[%s7 + $0x24] sm:$0xf]
    %v2237 = vld [vmem:[%s7 + $0x28] sm:$0xf]
    %v2238 = vld [vmem:[%s7 + $0x2c] sm:$0xf]
    %v2239 = vld [vmem:[%s7 + $0x30] sm:$0xf]
    %v2240 = vld [vmem:[%s7 + $0x34] sm:$0xf]
    %v2241 = vld [vmem:[%s7 + $0x38] sm:$0xf]
    %v2242 = vld [vmem:[%s7 + $0x3c] sm:$0xf]
    %v2243 = vld [vmem:[%s8] sm:$0x1]
    %v2245 = vlaneseq
    %v2246 = vshrl.u32 %v2245, 7
    %v2247 = vsub.s32 0, %v2246
    %v2248 = vrot.slane %v2243, %v2247
    %v2266 = vunpack.c.l.b16 %v2227
    %v2267 = vunpack.c.l.b16 %v2228
    %v2268 = vunpack.c.l.b16 %v2229
    %v2269 = vunpack.c.l.b16 %v2230
    %v2270 = vunpack.c.l.b16 %v2231
    %v2271 = vunpack.c.l.b16 %v2232
    %v2272 = vunpack.c.l.b16 %v2233
    %v2273 = vunpack.c.l.b16 %v2234
    %v2274 = vunpack.c.l.b16 %v2235
    %v2275 = vunpack.c.l.b16 %v2236
    %v2276 = vunpack.c.l.b16 %v2237
    %v2277 = vunpack.c.l.b16 %v2238
    %v2278 = vunpack.c.l.b16 %v2239
    %v2279 = vunpack.c.l.b16 %v2240
    %v2280 = vunpack.c.l.b16 %v2241
    %v2281 = vunpack.c.l.b16 %v2242
    %v2282 = vpack.c.b16 %v2267, %v2266
    %v2283 = vpack.c.b16 %v2269, %v2268
    %v2284 = vpack.c.b16 %v2271, %v2270
    %v2285 = vpack.c.b16 %v2273, %v2272
    %v2286 = vpack.c.b16 %v2275, %v2274
    %v2287 = vpack.c.b16 %v2277, %v2276
    %v2288 = vpack.c.b16 %v2279, %v2278
    %v2289 = vpack.c.b16 %v2281, %v2280
    %2298 = vmatprep.subr.bf16.mxu0 0
    %2299 = vmatpush1.bf16.msra.mxu0 %v2289
    %2300 = vmatprep.subr.bf16.mxu0 0
    %2301 = vmatpush1.bf16.msra.mxu0 %v2288
    %2302 = vmatprep.subr.bf16.mxu0 0
    %2303 = vmatpush1.bf16.msra.mxu0 %v2287
    %2304 = vmatprep.subr.bf16.mxu0 0
    %2305 = vmatpush1.bf16.msra.mxu0 %v2286
    %2306 = vmatprep.subr.bf16.mxu0 0
    %2307 = vmatpush1.bf16.msra.mxu0 %v2285
    %2308 = vmatprep.subr.bf16.mxu0 0
    %2309 = vmatpush1.bf16.msra.mxu0 %v2284
    %2310 = vmatprep.subr.bf16.mxu0 0
    %2311 = vmatpush1.bf16.msra.mxu0 %v2283
    %2312 = vmatprep.subr.bf16.mxu0 0
    %2313 = vmatpush1.bf16.msra.mxu0 %v2282
    %2314 = vmatprep.subr.bf16.mxu0 0
    %2315 = vmatpush2.bf16.msra.mxu0 0
    %2316 = vmatprep.subr.bf16.mxu0 0
    %2317 = vmatpush2.bf16.msra.mxu0 0
    %2318 = vmatprep.subr.bf16.mxu0 0
    %2319 = vmatpush2.bf16.msra.mxu0 0
    %2320 = vmatprep.subr.bf16.mxu0 0
    %2321 = vmatpush2.bf16.msra.mxu0 0
    %2322 = vmatprep.subr.bf16.mxu0 0
    %2323 = vmatpush2.bf16.msra.mxu0 0
    %2324 = vmatprep.subr.bf16.mxu0 0
    %2325 = vmatpush2.bf16.msra.mxu0 0
    %2326 = vmatprep.subr.bf16.mxu0 0
    %2327 = vmatpush2.bf16.msra.mxu0 0
    %2328 = vmatprep.subr.bf16.mxu0 0
    %2329 = vmatpush2.bf16.msra.mxu0 0
    %2330 = vmatprep.mubr.bf16.mxu0 0
    %2331 = vmatmul.mubr.bf16.gmra.mxu0 %v2226
    %v2332 = vpop.f32.mrf.mxu0
    %v2333 = vadd.f32 %v2248, %v2332
    %v2334 = vpop.f32.mrf.mxu0
    %v2335 = vpop.f32.mrf.mxu0
    %v2336 = vpop.f32.mrf.mxu0
    %2337 = vdwg.mxu0
    %v2338 = vpack.c.bf16 %v2333, %v2333
    %2339 = vst [vmem:[#allocation10] sm:$0xf] %v2338
    %v2340 = vld [vmem:[%s9] sm:$0xf]
    %v2341 = vld [vmem:[%s9 + $0x4] sm:$0xf]
    %v2342 = vld [vmem:[%s9 + $0x8] sm:$0xf]
    %v2343 = vld [vmem:[%s9 + $0xc] sm:$0xf]
    %v2344 = vld [vmem:[%s9 + $0x10] sm:$0xf]
    %v2345 = vld [vmem:[%s9 + $0x14] sm:$0xf]
    %v2346 = vld [vmem:[%s9 + $0x18] sm:$0xf]
    %v2347 = vld [vmem:[%s9 + $0x1c] sm:$0xf]
    %v2348 = vld [vmem:[%s9 + $0x20] sm:$0xf]
    %v2349 = vld [vmem:[%s9 + $0x24] sm:$0xf]
    %v2350 = vld [vmem:[%s9 + $0x28] sm:$0xf]
    %v2351 = vld [vmem:[%s9 + $0x2c] sm:$0xf]
    %v2352 = vld [vmem:[%s9 + $0x30] sm:$0xf]
    %v2353 = vld [vmem:[%s9 + $0x34] sm:$0xf]
    %v2354 = vld [vmem:[%s9 + $0x38] sm:$0xf]
    %v2355 = vld [vmem:[%s9 + $0x3c] sm:$0xf]
    %v2356 = vld [vmem:[%s10] sm:$0x1]
    %v2358 = vlaneseq
    %v2359 = vshrl.u32 %v2358, 7
    %v2360 = vsub.s32 0, %v2359
    %v2361 = vrot.slane %v2356, %v2360
    %v2379 = vunpack.c.l.b16 %v2340
    %v2380 = vunpack.c.l.b16 %v2341
    %v2381 = vunpack.c.l.b16 %v2342
    %v2382 = vunpack.c.l.b16 %v2343
    %v2383 = vunpack.c.l.b16 %v2344
    %v2384 = vunpack.c.l.b16 %v2345
    %v2385 = vunpack.c.l.b16 %v2346
    %v2386 = vunpack.c.l.b16 %v2347
    %v2387 = vunpack.c.l.b16 %v2348
    %v2388 = vunpack.c.l.b16 %v2349
    %v2389 = vunpack.c.l.b16 %v2350
    %v2390 = vunpack.c.l.b16 %v2351
    %v2391 = vunpack.c.l.b16 %v2352
    %v2392 = vunpack.c.l.b16 %v2353
    %v2393 = vunpack.c.l.b16 %v2354
    %v2394 = vunpack.c.l.b16 %v2355
    %v2395 = vpack.c.b16 %v2380, %v2379
    %v2396 = vpack.c.b16 %v2382, %v2381
    %v2397 = vpack.c.b16 %v2384, %v2383
    %v2398 = vpack.c.b16 %v2386, %v2385
    %v2399 = vpack.c.b16 %v2388, %v2387
    %v2400 = vpack.c.b16 %v2390, %v2389
    %v2401 = vpack.c.b16 %v2392, %v2391
    %v2402 = vpack.c.b16 %v2394, %v2393
    %2411 = vmatprep.subr.bf16.mxu0 0
    %2412 = vmatpush1.bf16.msra.mxu0 %v2402
    %2413 = vmatprep.subr.bf16.mxu0 0
    %2414 = vmatpush1.bf16.msra.mxu0 %v2401
    %2415 = vmatprep.subr.bf16.mxu0 0
    %2416 = vmatpush1.bf16.msra.mxu0 %v2400
    %2417 = vmatprep.subr.bf16.mxu0 0
    %2418 = vmatpush1.bf16.msra.mxu0 %v2399
    %2419 = vmatprep.subr.bf16.mxu0 0
    %2420 = vmatpush1.bf16.msra.mxu0 %v2398
    %2421 = vmatprep.subr.bf16.mxu0 0
    %2422 = vmatpush1.bf16.msra.mxu0 %v2397
    %2423 = vmatprep.subr.bf16.mxu0 0
    %2424 = vmatpush1.bf16.msra.mxu0 %v2396
    %2425 = vmatprep.subr.bf16.mxu0 0
    %2426 = vmatpush1.bf16.msra.mxu0 %v2395
    %2427 = vmatprep.subr.bf16.mxu0 0
    %2428 = vmatpush2.bf16.msra.mxu0 0
    %2429 = vmatprep.subr.bf16.mxu0 0
    %2430 = vmatpush2.bf16.msra.mxu0 0
    %2431 = vmatprep.subr.bf16.mxu0 0
    %2432 = vmatpush2.bf16.msra.mxu0 0
    %2433 = vmatprep.subr.bf16.mxu0 0
    %2434 = vmatpush2.bf16.msra.mxu0 0
    %2435 = vmatprep.subr.bf16.mxu0 0
    %2436 = vmatpush2.bf16.msra.mxu0 0
    %2437 = vmatprep.subr.bf16.mxu0 0
    %2438 = vmatpush2.bf16.msra.mxu0 0
    %2439 = vmatprep.subr.bf16.mxu0 0
    %2440 = vmatpush2.bf16.msra.mxu0 0
    %2441 = vmatprep.subr.bf16.mxu0 0
    %2442 = vmatpush2.bf16.msra.mxu0 0
    %2443 = vmatprep.mubr.bf16.mxu0 0
    %2444 = vmatmul.mubr.bf16.gmra.mxu0 %v2338
    %v2445 = vpop.f32.mrf.mxu0
    %v2446 = vadd.f32 %v2361, %v2445
    %v2447 = vpop.f32.mrf.mxu0
    %v2448 = vpop.f32.mrf.mxu0
    %v2449 = vpop.f32.mrf.mxu0
    %2450 = vdwg.mxu0
    %v2451 = vmax.f32 %v2446, 0.0
    %v2452 = vpack.c.bf16 %v2451, %v2451
    %v2453 = vld [vmem:[%s11] sm:$0xff]
    %v2454 = vld [vmem:[%s11 + $0x8] sm:$0xff]
    %v2455 = vld [vmem:[%s11 + $0x10] sm:$0xff]
    %v2456 = vld [vmem:[%s11 + $0x18] sm:$0xff]
    %v2457 = vld [vmem:[%s11 + $0x20] sm:$0xff]
    %v2458 = vld [vmem:[%s11 + $0x28] sm:$0xff]
    %v2459 = vld [vmem:[%s11 + $0x30] sm:$0xff]
    %v2460 = vld [vmem:[%s11 + $0x38] sm:$0xff]
    %v2461 = vld [vmem:[%s11 + $0x40] sm:$0xff]
    %v2462 = vld [vmem:[%s11 + $0x48] sm:$0xff]
    %v2463 = vld [vmem:[%s11 + $0x50] sm:$0xff]
    %v2464 = vld [vmem:[%s11 + $0x58] sm:$0xff]
    %v2465 = vld [vmem:[%s11 + $0x60] sm:$0xff]
    %v2466 = vld [vmem:[%s11 + $0x68] sm:$0xff]
    %v2467 = vld [vmem:[%s11 + $0x70] sm:$0xff]
    %v2468 = vld [vmem:[%s11 + $0x78] sm:$0xff]
    %v2469 = vld [vmem:[%s12] sm:$0x3]
    %v2471 = vlaneseq
    %v2472 = vshrl.u32 %v2471, 7
    %v2473 = vsub.s32 0, %v2472
    %v2474 = vrot.slane %v2469, %v2473
    %v2475 = vlaneseq
    %v2476 = vshrl.u32 %v2475, 7
    %v2477 = vsub.s32 1, %v2476
    %v2478 = vrot.slane %v2469, %v2477
    %v2497 = vunpack.c.l.b16 %v2453
    %v2498 = vunpack.c.h.b16 %v2453
    %v2499 = vunpack.c.l.b16 %v2454
    %v2500 = vunpack.c.h.b16 %v2454
    %v2501 = vunpack.c.l.b16 %v2455
    %v2502 = vunpack.c.h.b16 %v2455
    %v2503 = vunpack.c.l.b16 %v2456
    %v2504 = vunpack.c.h.b16 %v2456
    %v2505 = vunpack.c.l.b16 %v2457
    %v2506 = vunpack.c.h.b16 %v2457
    %v2507 = vunpack.c.l.b16 %v2458
    %v2508 = vunpack.c.h.b16 %v2458
    %v2509 = vunpack.c.l.b16 %v2459
    %v2510 = vunpack.c.h.b16 %v2459
    %v2511 = vunpack.c.l.b16 %v2460
    %v2512 = vunpack.c.h.b16 %v2460
    %v2513 = vunpack.c.l.b16 %v2461
    %v2514 = vunpack.c.h.b16 %v2461
    %v2515 = vunpack.c.l.b16 %v2462
    %v2516 = vunpack.c.h.b16 %v2462
    %v2517 = vunpack.c.l.b16 %v2463
    %v2518 = vunpack.c.h.b16 %v2463
    %v2519 = vunpack.c.l.b16 %v2464
    %v2520 = vunpack.c.h.b16 %v2464
    %v2521 = vunpack.c.l.b16 %v2465
    %v2522 = vunpack.c.h.b16 %v2465
    %v2523 = vunpack.c.l.b16 %v2466
    %v2524 = vunpack.c.h.b16 %v2466
    %v2525 = vunpack.c.l.b16 %v2467
    %v2526 = vunpack.c.h.b16 %v2467
    %v2527 = vunpack.c.l.b16 %v2468
    %v2528 = vunpack.c.h.b16 %v2468
    %v2529 = vpack.c.b16 %v2499, %v2497
    %v2530 = vpack.c.b16 %v2500, %v2498
    %v2531 = vpack.c.b16 %v2503, %v2501
    %v2532 = vpack.c.b16 %v2504, %v2502
    %v2533 = vpack.c.b16 %v2507, %v2505
    %v2534 = vpack.c.b16 %v2508, %v2506
    %v2535 = vpack.c.b16 %v2511, %v2509
    %v2536 = vpack.c.b16 %v2512, %v2510
    %v2537 = vpack.c.b16 %v2515, %v2513
    %v2538 = vpack.c.b16 %v2516, %v2514
    %v2539 = vpack.c.b16 %v2519, %v2517
    %v2540 = vpack.c.b16 %v2520, %v2518
    %v2541 = vpack.c.b16 %v2523, %v2521
    %v2542 = vpack.c.b16 %v2524, %v2522
    %v2543 = vpack.c.b16 %v2527, %v2525
    %v2544 = vpack.c.b16 %v2528, %v2526
    %2561 = vmatprep.subr.bf16.mxu0 %v2544
    %2562 = vmatpush1.bf16.msra.mxu0 %v2543
    %2563 = vmatprep.subr.bf16.mxu0 %v2542
    %2564 = vmatpush1.bf16.msra.mxu0 %v2541
    %2565 = vmatprep.subr.bf16.mxu0 %v2540
    %2566 = vmatpush1.bf16.msra.mxu0 %v2539
    %2567 = vmatprep.subr.bf16.mxu0 %v2538
    %2568 = vmatpush1.bf16.msra.mxu0 %v2537
    %2569 = vmatprep.subr.bf16.mxu0 %v2536
    %2570 = vmatpush1.bf16.msra.mxu0 %v2535
    %2571 = vmatprep.subr.bf16.mxu0 %v2534
    %2572 = vmatpush1.bf16.msra.mxu0 %v2533
    %2573 = vmatprep.subr.bf16.mxu0 %v2532
    %2574 = vmatpush1.bf16.msra.mxu0 %v2531
    %2575 = vmatprep.subr.bf16.mxu0 %v2530
    %2576 = vmatpush1.bf16.msra.mxu0 %v2529
    %2577 = vmatprep.subr.bf16.mxu0 0
    %2578 = vmatpush2.bf16.msra.mxu0 0
    %2579 = vmatprep.subr.bf16.mxu0 0
    %2580 = vmatpush2.bf16.msra.mxu0 0
    %2581 = vmatprep.subr.bf16.mxu0 0
    %2582 = vmatpush2.bf16.msra.mxu0 0
    %2583 = vmatprep.subr.bf16.mxu0 0
    %2584 = vmatpush2.bf16.msra.mxu0 0
    %2585 = vmatprep.subr.bf16.mxu0 0
    %2586 = vmatpush2.bf16.msra.mxu0 0
    %2587 = vmatprep.subr.bf16.mxu0 0
    %2588 = vmatpush2.bf16.msra.mxu0 0
    %2589 = vmatprep.subr.bf16.mxu0 0
    %2590 = vmatpush2.bf16.msra.mxu0 0
    %2591 = vmatprep.subr.bf16.mxu0 0
    %2592 = vmatpush2.bf16.msra.mxu0 0
    %2593 = vmatprep.mubr.bf16.mxu0 0
    %2594 = vmatmul.mubr.bf16.gmra.mxu0 %v2452
    %v2595 = vpop.f32.mrf.mxu0
    %v2596 = vadd.f32 %v2474, %v2595
    %v2597 = vpop.f32.mrf.mxu0
    %v2598 = vadd.f32 %v2478, %v2597
    %v2599 = vpop.f32.mrf.mxu0
    %v2600 = vpop.f32.mrf.mxu0
    %2601 = vdwg.mxu0
    %v2602 = vmax.f32 %v2596, 0.0
    %v2603 = vmax.f32 %v2598, 0.0
    %v2604 = vpack.c.bf16 %v2602, %v2602
    %v2605 = vpack.c.bf16 %v2603, %v2603
    %v2606 = vld [vmem:[#allocation7] sm:$0xff]
    %v2607 = vld [vmem:[#allocation7 + $0x8] sm:$0xff]
    %v2608 = vld [vmem:[#allocation7 + $0x10] sm:$0xff]
    %v2609 = vld [vmem:[#allocation7 + $0x18] sm:$0xff]
    %v2610 = vld [vmem:[#allocation7 + $0x20] sm:$0xff]
    %v2611 = vld [vmem:[#allocation7 + $0x28] sm:$0xff]
    %v2612 = vld [vmem:[#allocation7 + $0x30] sm:$0xff]
    %v2613 = vld [vmem:[#allocation7 + $0x38] sm:$0xff]
    %v2614 = vld [vmem:[#allocation7 + $0x40] sm:$0xff]
    %v2615 = vld [vmem:[#allocation7 + $0x48] sm:$0xff]
    %v2616 = vld [vmem:[#allocation7 + $0x50] sm:$0xff]
    %v2617 = vld [vmem:[#allocation7 + $0x58] sm:$0xff]
    %v2618 = vld [vmem:[#allocation7 + $0x60] sm:$0xff]
    %v2619 = vld [vmem:[#allocation7 + $0x68] sm:$0xff]
    %v2620 = vld [vmem:[#allocation7 + $0x70] sm:$0xff]
    %v2621 = vld [vmem:[#allocation7 + $0x78] sm:$0xff]
    %v2622 = vld [vmem:[#allocation7 + $0x80] sm:$0xff]
    %v2623 = vld [vmem:[#allocation7 + $0x88] sm:$0xff]
    %v2624 = vld [vmem:[#allocation7 + $0x90] sm:$0xff]
    %v2625 = vld [vmem:[#allocation7 + $0x98] sm:$0xff]
    %v2626 = vld [vmem:[#allocation7 + $0xa0] sm:$0xff]
    %v2627 = vld [vmem:[#allocation7 + $0xa8] sm:$0xff]
    %v2628 = vld [vmem:[#allocation7 + $0xb0] sm:$0xff]
    %v2629 = vld [vmem:[#allocation7 + $0xb8] sm:$0xff]
    %v2630 = vld [vmem:[#allocation7 + $0xc0] sm:$0xff]
    %v2631 = vld [vmem:[#allocation7 + $0xc8] sm:$0xff]
    %v2632 = vld [vmem:[#allocation7 + $0xd0] sm:$0xff]
    %v2633 = vld [vmem:[#allocation7 + $0xd8] sm:$0xff]
    %v2634 = vld [vmem:[#allocation7 + $0xe0] sm:$0xff]
    %v2635 = vld [vmem:[#allocation7 + $0xe8] sm:$0xff]
    %v2636 = vld [vmem:[#allocation7 + $0xf0] sm:$0xff]
    %v2637 = vld [vmem:[#allocation7 + $0xf8] sm:$0xff]
    %v2638 = vld [vmem:[#allocation7 + $0x100] sm:$0xff]
    %v2639 = vld [vmem:[#allocation7 + $0x108] sm:$0xff]
    %v2640 = vld [vmem:[#allocation7 + $0x110] sm:$0xff]
    %v2641 = vld [vmem:[#allocation7 + $0x118] sm:$0xff]
    %v2642 = vld [vmem:[#allocation7 + $0x120] sm:$0xff]
    %v2643 = vld [vmem:[#allocation7 + $0x128] sm:$0xff]
    %v2644 = vld [vmem:[#allocation7 + $0x130] sm:$0xff]
    %v2645 = vld [vmem:[#allocation7 + $0x138] sm:$0xff]
    %v2646 = vld [vmem:[#allocation7 + $0x140] sm:$0xff]
    %v2647 = vld [vmem:[#allocation7 + $0x148] sm:$0xff]
    %v2648 = vld [vmem:[#allocation7 + $0x150] sm:$0xff]
    %v2649 = vld [vmem:[#allocation7 + $0x158] sm:$0xff]
    %v2650 = vld [vmem:[#allocation7 + $0x160] sm:$0xff]
    %v2651 = vld [vmem:[#allocation7 + $0x168] sm:$0xff]
    %v2652 = vld [vmem:[#allocation7 + $0x170] sm:$0xff]
    %v2653 = vld [vmem:[#allocation7 + $0x178] sm:$0xff]
    %v2654 = vld [vmem:[#allocation7 + $0x180] sm:$0xff]
    %v2655 = vld [vmem:[#allocation7 + $0x188] sm:$0xff]
    %v2656 = vld [vmem:[#allocation7 + $0x190] sm:$0xff]
    %v2657 = vld [vmem:[#allocation7 + $0x198] sm:$0xff]
    %v2658 = vld [vmem:[#allocation7 + $0x1a0] sm:$0xff]
    %v2659 = vld [vmem:[#allocation7 + $0x1a8] sm:$0xff]
    %v2660 = vld [vmem:[#allocation7 + $0x1b0] sm:$0xff]
    %v2661 = vld [vmem:[#allocation7 + $0x1b8] sm:$0xff]
    %v2662 = vld [vmem:[#allocation7 + $0x1c0] sm:$0xff]
    %v2663 = vld [vmem:[#allocation7 + $0x1c8] sm:$0xff]
    %v2664 = vld [vmem:[#allocation7 + $0x1d0] sm:$0xff]
    %v2665 = vld [vmem:[#allocation7 + $0x1d8] sm:$0xff]
    %v2666 = vld [vmem:[#allocation7 + $0x1e0] sm:$0xff]
    %v2667 = vld [vmem:[#allocation7 + $0x1e8] sm:$0xff]
    %v2668 = vld [vmem:[#allocation7 + $0x1f0] sm:$0xff]
    %v2669 = vld [vmem:[#allocation7 + $0x1f8] sm:$0xff]
    %v2670 = vld [vmem:[%s14] sm:$0xf]
    %v2672 = vlaneseq
    %v2673 = vshrl.u32 %v2672, 7
    %v2674 = vsub.s32 0, %v2673
    %v2675 = vrot.slane %v2670, %v2674
    %v2676 = vlaneseq
    %v2677 = vshrl.u32 %v2676, 7
    %v2678 = vsub.s32 1, %v2677
    %v2679 = vrot.slane %v2670, %v2678
    %v2680 = vlaneseq
    %v2681 = vshrl.u32 %v2680, 7
    %v2682 = vsub.s32 2, %v2681
    %v2683 = vrot.slane %v2670, %v2682
    %v2684 = vlaneseq
    %v2685 = vshrl.u32 %v2684, 7
    %v2686 = vsub.s32 3, %v2685
    %v2687 = vrot.slane %v2670, %v2686
    %v2756 = vunpack.c.l.b16 %v2606
    %v2757 = vunpack.c.h.b16 %v2606
    %v2758 = vunpack.c.l.b16 %v2607
    %v2759 = vunpack.c.h.b16 %v2607
    %v2760 = vunpack.c.l.b16 %v2608
    %v2761 = vunpack.c.h.b16 %v2608
    %v2762 = vunpack.c.l.b16 %v2609
    %v2763 = vunpack.c.h.b16 %v2609
    %v2764 = vunpack.c.l.b16 %v2610
    %v2765 = vunpack.c.h.b16 %v2610
    %v2766 = vunpack.c.l.b16 %v2611
    %v2767 = vunpack.c.h.b16 %v2611
    %v2768 = vunpack.c.l.b16 %v2612
    %v2769 = vunpack.c.h.b16 %v2612
    %v2770 = vunpack.c.l.b16 %v2613
    %v2771 = vunpack.c.h.b16 %v2613
    %v2772 = vunpack.c.l.b16 %v2614
    %v2773 = vunpack.c.h.b16 %v2614
    %v2774 = vunpack.c.l.b16 %v2615
    %v2775 = vunpack.c.h.b16 %v2615
    %v2776 = vunpack.c.l.b16 %v2616
    %v2777 = vunpack.c.h.b16 %v2616
    %v2778 = vunpack.c.l.b16 %v2617
    %v2779 = vunpack.c.h.b16 %v2617
    %v2780 = vunpack.c.l.b16 %v2618
    %v2781 = vunpack.c.h.b16 %v2618
    %v2782 = vunpack.c.l.b16 %v2619
    %v2783 = vunpack.c.h.b16 %v2619
    %v2784 = vunpack.c.l.b16 %v2620
    %v2785 = vunpack.c.h.b16 %v2620
    %v2786 = vunpack.c.l.b16 %v2621
    %v2787 = vunpack.c.h.b16 %v2621
    %v2788 = vunpack.c.l.b16 %v2622
    %v2789 = vunpack.c.h.b16 %v2622
    %v2790 = vunpack.c.l.b16 %v2623
    %v2791 = vunpack.c.h.b16 %v2623
    %v2792 = vunpack.c.l.b16 %v2624
    %v2793 = vunpack.c.h.b16 %v2624
    %v2794 = vunpack.c.l.b16 %v2625
    %v2795 = vunpack.c.h.b16 %v2625
    %v2796 = vunpack.c.l.b16 %v2626
    %v2797 = vunpack.c.h.b16 %v2626
    %v2798 = vunpack.c.l.b16 %v2627
    %v2799 = vunpack.c.h.b16 %v2627
    %v2800 = vunpack.c.l.b16 %v2628
    %v2801 = vunpack.c.h.b16 %v2628
    %v2802 = vunpack.c.l.b16 %v2629
    %v2803 = vunpack.c.h.b16 %v2629
    %v2804 = vunpack.c.l.b16 %v2630
    %v2805 = vunpack.c.h.b16 %v2630
    %v2806 = vunpack.c.l.b16 %v2631
    %v2807 = vunpack.c.h.b16 %v2631
    %v2808 = vunpack.c.l.b16 %v2632
    %v2809 = vunpack.c.h.b16 %v2632
    %v2810 = vunpack.c.l.b16 %v2633
    %v2811 = vunpack.c.h.b16 %v2633
    %v2812 = vunpack.c.l.b16 %v2634
    %v2813 = vunpack.c.h.b16 %v2634
    %v2814 = vunpack.c.l.b16 %v2635
    %v2815 = vunpack.c.h.b16 %v2635
    %v2816 = vunpack.c.l.b16 %v2636
    %v2817 = vunpack.c.h.b16 %v2636
    %v2818 = vunpack.c.l.b16 %v2637
    %v2819 = vunpack.c.h.b16 %v2637
    %v2820 = vunpack.c.l.b16 %v2638
    %v2821 = vunpack.c.h.b16 %v2638
    %v2822 = vunpack.c.l.b16 %v2639
    %v2823 = vunpack.c.h.b16 %v2639
    %v2824 = vunpack.c.l.b16 %v2640
    %v2825 = vunpack.c.h.b16 %v2640
    %v2826 = vunpack.c.l.b16 %v2641
    %v2827 = vunpack.c.h.b16 %v2641
    %v2828 = vunpack.c.l.b16 %v2642
    %v2829 = vunpack.c.h.b16 %v2642
    %v2830 = vunpack.c.l.b16 %v2643
    %v2831 = vunpack.c.h.b16 %v2643
    %v2832 = vunpack.c.l.b16 %v2644
    %v2833 = vunpack.c.h.b16 %v2644
    %v2834 = vunpack.c.l.b16 %v2645
    %v2835 = vunpack.c.h.b16 %v2645
    %v2836 = vunpack.c.l.b16 %v2646
    %v2837 = vunpack.c.h.b16 %v2646
    %v2838 = vunpack.c.l.b16 %v2647
    %v2839 = vunpack.c.h.b16 %v2647
    %v2840 = vunpack.c.l.b16 %v2648
    %v2841 = vunpack.c.h.b16 %v2648
    %v2842 = vunpack.c.l.b16 %v2649
    %v2843 = vunpack.c.h.b16 %v2649
    %v2844 = vunpack.c.l.b16 %v2650
    %v2845 = vunpack.c.h.b16 %v2650
    %v2846 = vunpack.c.l.b16 %v2651
    %v2847 = vunpack.c.h.b16 %v2651
    %v2848 = vunpack.c.l.b16 %v2652
    %v2849 = vunpack.c.h.b16 %v2652
    %v2850 = vunpack.c.l.b16 %v2653
    %v2851 = vunpack.c.h.b16 %v2653
    %v2852 = vunpack.c.l.b16 %v2654
    %v2853 = vunpack.c.h.b16 %v2654
    %v2854 = vunpack.c.l.b16 %v2655
    %v2855 = vunpack.c.h.b16 %v2655
    %v2856 = vunpack.c.l.b16 %v2656
    %v2857 = vunpack.c.h.b16 %v2656
    %v2858 = vunpack.c.l.b16 %v2657
    %v2859 = vunpack.c.h.b16 %v2657
    %v2860 = vunpack.c.l.b16 %v2658
    %v2861 = vunpack.c.h.b16 %v2658
    %v2862 = vunpack.c.l.b16 %v2659
    %v2863 = vunpack.c.h.b16 %v2659
    %v2864 = vunpack.c.l.b16 %v2660
    %v2865 = vunpack.c.h.b16 %v2660
    %v2866 = vunpack.c.l.b16 %v2661
    %v2867 = vunpack.c.h.b16 %v2661
    %v2868 = vunpack.c.l.b16 %v2662
    %v2869 = vunpack.c.h.b16 %v2662
    %v2870 = vunpack.c.l.b16 %v2663
    %v2871 = vunpack.c.h.b16 %v2663
    %v2872 = vunpack.c.l.b16 %v2664
    %v2873 = vunpack.c.h.b16 %v2664
    %v2874 = vunpack.c.l.b16 %v2665
    %v2875 = vunpack.c.h.b16 %v2665
    %v2876 = vunpack.c.l.b16 %v2666
    %v2877 = vunpack.c.h.b16 %v2666
    %v2878 = vunpack.c.l.b16 %v2667
    %v2879 = vunpack.c.h.b16 %v2667
    %v2880 = vunpack.c.l.b16 %v2668
    %v2881 = vunpack.c.h.b16 %v2668
    %v2882 = vunpack.c.l.b16 %v2669
    %v2883 = vunpack.c.h.b16 %v2669
    %v2884 = vpack.c.b16 %v2760, %v2756
    %v2885 = vpack.c.b16 %v2761, %v2757
    %v2886 = vpack.c.b16 %v2762, %v2758
    %v2887 = vpack.c.b16 %v2763, %v2759
    %v2888 = vpack.c.b16 %v2768, %v2764
    %v2889 = vpack.c.b16 %v2769, %v2765
    %v2890 = vpack.c.b16 %v2770, %v2766
    %v2891 = vpack.c.b16 %v2771, %v2767
    %v2892 = vpack.c.b16 %v2776, %v2772
    %v2893 = vpack.c.b16 %v2777, %v2773
    %v2894 = vpack.c.b16 %v2778, %v2774
    %v2895 = vpack.c.b16 %v2779, %v2775
    %v2896 = vpack.c.b16 %v2784, %v2780
    %v2897 = vpack.c.b16 %v2785, %v2781
    %v2898 = vpack.c.b16 %v2786, %v2782
    %v2899 = vpack.c.b16 %v2787, %v2783
    %v2900 = vpack.c.b16 %v2792, %v2788
    %v2901 = vpack.c.b16 %v2793, %v2789
    %v2902 = vpack.c.b16 %v2794, %v2790
    %v2903 = vpack.c.b16 %v2795, %v2791
    %v2904 = vpack.c.b16 %v2800, %v2796
    %v2905 = vpack.c.b16 %v2801, %v2797
    %v2906 = vpack.c.b16 %v2802, %v2798
    %v2907 = vpack.c.b16 %v2803, %v2799
    %v2908 = vpack.c.b16 %v2808, %v2804
    %v2909 = vpack.c.b16 %v2809, %v2805
    %v2910 = vpack.c.b16 %v2810, %v2806
    %v2911 = vpack.c.b16 %v2811, %v2807
    %v2912 = vpack.c.b16 %v2816, %v2812
    %v2913 = vpack.c.b16 %v2817, %v2813
    %v2914 = vpack.c.b16 %v2818, %v2814
    %v2915 = vpack.c.b16 %v2819, %v2815
    %v2916 = vpack.c.b16 %v2824, %v2820
    %v2917 = vpack.c.b16 %v2825, %v2821
    %v2918 = vpack.c.b16 %v2826, %v2822
    %v2919 = vpack.c.b16 %v2827, %v2823
    %v2920 = vpack.c.b16 %v2832, %v2828
    %v2921 = vpack.c.b16 %v2833, %v2829
    %v2922 = vpack.c.b16 %v2834, %v2830
    %v2923 = vpack.c.b16 %v2835, %v2831
    %v2924 = vpack.c.b16 %v2840, %v2836
    %v2925 = vpack.c.b16 %v2841, %v2837
    %v2926 = vpack.c.b16 %v2842, %v2838
    %v2927 = vpack.c.b16 %v2843, %v2839
    %v2928 = vpack.c.b16 %v2848, %v2844
    %v2929 = vpack.c.b16 %v2849, %v2845
    %v2930 = vpack.c.b16 %v2850, %v2846
    %v2931 = vpack.c.b16 %v2851, %v2847
    %v2932 = vpack.c.b16 %v2856, %v2852
    %v2933 = vpack.c.b16 %v2857, %v2853
    %v2934 = vpack.c.b16 %v2858, %v2854
    %v2935 = vpack.c.b16 %v2859, %v2855
    %v2936 = vpack.c.b16 %v2864, %v2860
    %v2937 = vpack.c.b16 %v2865, %v2861
    %v2938 = vpack.c.b16 %v2866, %v2862
    %v2939 = vpack.c.b16 %v2867, %v2863
    %v2940 = vpack.c.b16 %v2872, %v2868
    %v2941 = vpack.c.b16 %v2873, %v2869
    %v2942 = vpack.c.b16 %v2874, %v2870
    %v2943 = vpack.c.b16 %v2875, %v2871
    %v2944 = vpack.c.b16 %v2880, %v2876
    %v2945 = vpack.c.b16 %v2881, %v2877
    %v2946 = vpack.c.b16 %v2882, %v2878
    %v2947 = vpack.c.b16 %v2883, %v2879
    %3012 = vmatprep.subr.bf16.mxu0 %v2913
    %3013 = vmatpush1.bf16.msra.mxu0 %v2912
    %3014 = vmatprep.subr.bf16.mxu0 %v2909
    %3015 = vmatpush1.bf16.msra.mxu0 %v2908
    %3016 = vmatprep.subr.bf16.mxu0 %v2905
    %3017 = vmatpush1.bf16.msra.mxu0 %v2904
    %3018 = vmatprep.subr.bf16.mxu0 %v2901
    %3019 = vmatpush1.bf16.msra.mxu0 %v2900
    %3020 = vmatprep.subr.bf16.mxu0 %v2897
    %3021 = vmatpush1.bf16.msra.mxu0 %v2896
    %3022 = vmatprep.subr.bf16.mxu0 %v2893
    %3023 = vmatpush1.bf16.msra.mxu0 %v2892
    %3024 = vmatprep.subr.bf16.mxu0 %v2889
    %3025 = vmatpush1.bf16.msra.mxu0 %v2888
    %3026 = vmatprep.subr.bf16.mxu0 %v2885
    %3027 = vmatpush1.bf16.msra.mxu0 %v2884
    %3028 = vmatprep.subr.bf16.mxu0 %v2945
    %3029 = vmatpush2.bf16.msra.mxu0 %v2944
    %3030 = vmatprep.subr.bf16.mxu0 %v2941
    %3031 = vmatpush2.bf16.msra.mxu0 %v2940
    %3032 = vmatprep.subr.bf16.mxu0 %v2937
    %3033 = vmatpush2.bf16.msra.mxu0 %v2936
    %3034 = vmatprep.subr.bf16.mxu0 %v2933
    %3035 = vmatpush2.bf16.msra.mxu0 %v2932
    %3036 = vmatprep.subr.bf16.mxu0 %v2929
    %3037 = vmatpush2.bf16.msra.mxu0 %v2928
    %3038 = vmatprep.subr.bf16.mxu0 %v2925
    %3039 = vmatpush2.bf16.msra.mxu0 %v2924
    %3040 = vmatprep.subr.bf16.mxu0 %v2921
    %3041 = vmatpush2.bf16.msra.mxu0 %v2920
    %3042 = vmatprep.subr.bf16.mxu0 %v2917
    %3043 = vmatpush2.bf16.msra.mxu0 %v2916
    %3044 = vmatprep.mubr.bf16.mxu0 %v2605
    %3045 = vmatmul.mubr.bf16.gmra.mxu0 %v2604
    %v3046 = vpop.f32.mrf.mxu0
    %v3047 = vadd.f32 %v2675, %v3046
    %v3048 = vpop.f32.mrf.mxu0
    %v3049 = vadd.f32 %v2679, %v3048
    %v3050 = vpop.f32.mrf.mxu0
    %v3051 = vpop.f32.mrf.mxu0
    %3052 = vdwg.mxu0
    %3053 = vmatprep.subr.bf16.mxu0 %v2915
    %3054 = vmatpush1.bf16.msra.mxu0 %v2914
    %3055 = vmatprep.subr.bf16.mxu0 %v2911
    %3056 = vmatpush1.bf16.msra.mxu0 %v2910
    %3057 = vmatprep.subr.bf16.mxu0 %v2907
    %3058 = vmatpush1.bf16.msra.mxu0 %v2906
    %3059 = vmatprep.subr.bf16.mxu0 %v2903
    %3060 = vmatpush1.bf16.msra.mxu0 %v2902
    %3061 = vmatprep.subr.bf16.mxu0 %v2899
    %3062 = vmatpush1.bf16.msra.mxu0 %v2898
    %3063 = vmatprep.subr.bf16.mxu0 %v2895
    %3064 = vmatpush1.bf16.msra.mxu0 %v2894
    %3065 = vmatprep.subr.bf16.mxu0 %v2891
    %3066 = vmatpush1.bf16.msra.mxu0 %v2890
    %3067 = vmatprep.subr.bf16.mxu0 %v2887
    %3068 = vmatpush1.bf16.msra.mxu0 %v2886
    %3069 = vmatprep.subr.bf16.mxu0 %v2947
    %3070 = vmatpush2.bf16.msra.mxu0 %v2946
    %3071 = vmatprep.subr.bf16.mxu0 %v2943
    %3072 = vmatpush2.bf16.msra.mxu0 %v2942
    %3073 = vmatprep.subr.bf16.mxu0 %v2939
    %3074 = vmatpush2.bf16.msra.mxu0 %v2938
    %3075 = vmatprep.subr.bf16.mxu0 %v2935
    %3076 = vmatpush2.bf16.msra.mxu0 %v2934
    %3077 = vmatprep.subr.bf16.mxu0 %v2931
    %3078 = vmatpush2.bf16.msra.mxu0 %v2930
    %3079 = vmatprep.subr.bf16.mxu0 %v2927
    %3080 = vmatpush2.bf16.msra.mxu0 %v2926
    %3081 = vmatprep.subr.bf16.mxu0 %v2923
    %3082 = vmatpush2.bf16.msra.mxu0 %v2922
    %3083 = vmatprep.subr.bf16.mxu0 %v2919
    %3084 = vmatpush2.bf16.msra.mxu0 %v2918
    %3085 = vmatprep.mubr.bf16.mxu0 %v2605
    %3086 = vmatmul.mubr.bf16.gmra.mxu0 %v2604
    %v3087 = vpop.f32.mrf.mxu0
    %v3088 = vadd.f32 %v2683, %v3087
    %v3089 = vpop.f32.mrf.mxu0
    %v3090 = vadd.f32 %v2687, %v3089
    %v3091 = vpop.f32.mrf.mxu0
    %v3092 = vpop.f32.mrf.mxu0
    %3093 = vdwg.mxu0
    %v3094 = vmax.f32 %v3047, 0.0
    %v3095 = vmax.f32 %v3049, 0.0
    %v3096 = vmax.f32 %v3088, 0.0
    %v3097 = vmax.f32 %v3090, 0.0
    %v3098 = vpack.c.bf16 %v3094, %v3094
    %v3099 = vpack.c.bf16 %v3095, %v3095
    %v3100 = vpack.c.bf16 %v3096, %v3096
    %v3101 = vpack.c.bf16 %v3097, %v3097
    %v3102 = vld [vmem:[#allocation8] sm:$0xff]
    %v3103 = vld [vmem:[#allocation8 + $0x8] sm:$0xff]
    %v3104 = vld [vmem:[#allocation8 + $0x10] sm:$0xff]
    %v3105 = vld [vmem:[#allocation8 + $0x18] sm:$0xff]
    %v3106 = vld [vmem:[#allocation8 + $0x20] sm:$0xff]
    %v3107 = vld [vmem:[#allocation8 + $0x28] sm:$0xff]
    %v3108 = vld [vmem:[#allocation8 + $0x30] sm:$0xff]
    %v3109 = vld [vmem:[#allocation8 + $0x38] sm:$0xff]
    %v3110 = vld [vmem:[#allocation8 + $0x40] sm:$0xff]
    %v3111 = vld [vmem:[#allocation8 + $0x48] sm:$0xff]
    %v3112 = vld [vmem:[#allocation8 + $0x50] sm:$0xff]
    %v3113 = vld [vmem:[#allocation8 + $0x58] sm:$0xff]
    %v3114 = vld [vmem:[#allocation8 + $0x60] sm:$0xff]
    %v3115 = vld [vmem:[#allocation8 + $0x68] sm:$0xff]
    %v3116 = vld [vmem:[#allocation8 + $0x70] sm:$0xff]
    %v3117 = vld [vmem:[#allocation8 + $0x78] sm:$0xff]
    %v3118 = vld [vmem:[#allocation8 + $0x80] sm:$0xff]
    %v3119 = vld [vmem:[#allocation8 + $0x88] sm:$0xff]
    %v3120 = vld [vmem:[#allocation8 + $0x90] sm:$0xff]
    %v3121 = vld [vmem:[#allocation8 + $0x98] sm:$0xff]
    %v3122 = vld [vmem:[#allocation8 + $0xa0] sm:$0xff]
    %v3123 = vld [vmem:[#allocation8 + $0xa8] sm:$0xff]
    %v3124 = vld [vmem:[#allocation8 + $0xb0] sm:$0xff]
    %v3125 = vld [vmem:[#allocation8 + $0xb8] sm:$0xff]
    %v3126 = vld [vmem:[#allocation8 + $0xc0] sm:$0xff]
    %v3127 = vld [vmem:[#allocation8 + $0xc8] sm:$0xff]
    %v3128 = vld [vmem:[#allocation8 + $0xd0] sm:$0xff]
    %v3129 = vld [vmem:[#allocation8 + $0xd8] sm:$0xff]
    %v3130 = vld [vmem:[#allocation8 + $0xe0] sm:$0xff]
    %v3131 = vld [vmem:[#allocation8 + $0xe8] sm:$0xff]
    %v3132 = vld [vmem:[#allocation8 + $0xf0] sm:$0xff]
    %v3133 = vld [vmem:[#allocation8 + $0xf8] sm:$0xff]
    %v3134 = vld [vmem:[#allocation8 + $0x100] sm:$0xff]
    %v3135 = vld [vmem:[#allocation8 + $0x108] sm:$0xff]
    %v3136 = vld [vmem:[#allocation8 + $0x110] sm:$0xff]
    %v3137 = vld [vmem:[#allocation8 + $0x118] sm:$0xff]
    %v3138 = vld [vmem:[#allocation8 + $0x120] sm:$0xff]
    %v3139 = vld [vmem:[#allocation8 + $0x128] sm:$0xff]
    %v3140 = vld [vmem:[#allocation8 + $0x130] sm:$0xff]
    %v3141 = vld [vmem:[#allocation8 + $0x138] sm:$0xff]
    %v3142 = vld [vmem:[#allocation8 + $0x140] sm:$0xff]
    %v3143 = vld [vmem:[#allocation8 + $0x148] sm:$0xff]
    %v3144 = vld [vmem:[#allocation8 + $0x150] sm:$0xff]
    %v3145 = vld [vmem:[#allocation8 + $0x158] sm:$0xff]
    %v3146 = vld [vmem:[#allocation8 + $0x160] sm:$0xff]
    %v3147 = vld [vmem:[#allocation8 + $0x168] sm:$0xff]
    %v3148 = vld [vmem:[#allocation8 + $0x170] sm:$0xff]
    %v3149 = vld [vmem:[#allocation8 + $0x178] sm:$0xff]
    %v3150 = vld [vmem:[#allocation8 + $0x180] sm:$0xff]
    %v3151 = vld [vmem:[#allocation8 + $0x188] sm:$0xff]
    %v3152 = vld [vmem:[#allocation8 + $0x190] sm:$0xff]
    %v3153 = vld [vmem:[#allocation8 + $0x198] sm:$0xff]
    %v3154 = vld [vmem:[#allocation8 + $0x1a0] sm:$0xff]
    %v3155 = vld [vmem:[#allocation8 + $0x1a8] sm:$0xff]
    %v3156 = vld [vmem:[#allocation8 + $0x1b0] sm:$0xff]
    %v3157 = vld [vmem:[#allocation8 + $0x1b8] sm:$0xff]
    %v3158 = vld [vmem:[#allocation8 + $0x1c0] sm:$0xff]
    %v3159 = vld [vmem:[#allocation8 + $0x1c8] sm:$0xff]
    %v3160 = vld [vmem:[#allocation8 + $0x1d0] sm:$0xff]
    %v3161 = vld [vmem:[#allocation8 + $0x1d8] sm:$0xff]
    %v3162 = vld [vmem:[#allocation8 + $0x1e0] sm:$0xff]
    %v3163 = vld [vmem:[#allocation8 + $0x1e8] sm:$0xff]
    %v3164 = vld [vmem:[#allocation8 + $0x1f0] sm:$0xff]
    %v3165 = vld [vmem:[#allocation8 + $0x1f8] sm:$0xff]
    %v3166 = vld [vmem:[#allocation8 + $0x200] sm:$0xff]
    %v3167 = vld [vmem:[#allocation8 + $0x208] sm:$0xff]
    %v3168 = vld [vmem:[#allocation8 + $0x210] sm:$0xff]
    %v3169 = vld [vmem:[#allocation8 + $0x218] sm:$0xff]
    %v3170 = vld [vmem:[#allocation8 + $0x220] sm:$0xff]
    %v3171 = vld [vmem:[#allocation8 + $0x228] sm:$0xff]
    %v3172 = vld [vmem:[#allocation8 + $0x230] sm:$0xff]
    %v3173 = vld [vmem:[#allocation8 + $0x238] sm:$0xff]
    %v3174 = vld [vmem:[#allocation8 + $0x240] sm:$0xff]
    %v3175 = vld [vmem:[#allocation8 + $0x248] sm:$0xff]
    %v3176 = vld [vmem:[#allocation8 + $0x250] sm:$0xff]
    %v3177 = vld [vmem:[#allocation8 + $0x258] sm:$0xff]
    %v3178 = vld [vmem:[#allocation8 + $0x260] sm:$0xff]
    %v3179 = vld [vmem:[#allocation8 + $0x268] sm:$0xff]
    %v3180 = vld [vmem:[#allocation8 + $0x270] sm:$0xff]
    %v3181 = vld [vmem:[#allocation8 + $0x278] sm:$0xff]
    %v3182 = vld [vmem:[#allocation8 + $0x280] sm:$0xff]
    %v3183 = vld [vmem:[#allocation8 + $0x288] sm:$0xff]
    %v3184 = vld [vmem:[#allocation8 + $0x290] sm:$0xff]
    %v3185 = vld [vmem:[#allocation8 + $0x298] sm:$0xff]
    %v3186 = vld [vmem:[#allocation8 + $0x2a0] sm:$0xff]
    %v3187 = vld [vmem:[#allocation8 + $0x2a8] sm:$0xff]
    %v3188 = vld [vmem:[#allocation8 + $0x2b0] sm:$0xff]
    %v3189 = vld [vmem:[#allocation8 + $0x2b8] sm:$0xff]
    %v3190 = vld [vmem:[#allocation8 + $0x2c0] sm:$0xff]
    %v3191 = vld [vmem:[#allocation8 + $0x2c8] sm:$0xff]
    %v3192 = vld [vmem:[#allocation8 + $0x2d0] sm:$0xff]
    %v3193 = vld [vmem:[#allocation8 + $0x2d8] sm:$0xff]
    %v3194 = vld [vmem:[#allocation8 + $0x2e0] sm:$0xff]
    %v3195 = vld [vmem:[#allocation8 + $0x2e8] sm:$0xff]
    %v3196 = vld [vmem:[#allocation8 + $0x2f0] sm:$0xff]
    %v3197 = vld [vmem:[#allocation8 + $0x2f8] sm:$0xff]
    %v3198 = vld [vmem:[#allocation8 + $0x300] sm:$0xff]
    %v3199 = vld [vmem:[#allocation8 + $0x308] sm:$0xff]
    %v3200 = vld [vmem:[#allocation8 + $0x310] sm:$0xff]
    %v3201 = vld [vmem:[#allocation8 + $0x318] sm:$0xff]
    %v3202 = vld [vmem:[#allocation8 + $0x320] sm:$0xff]
    %v3203 = vld [vmem:[#allocation8 + $0x328] sm:$0xff]
    %v3204 = vld [vmem:[#allocation8 + $0x330] sm:$0xff]
    %v3205 = vld [vmem:[#allocation8 + $0x338] sm:$0xff]
    %v3206 = vld [vmem:[#allocation8 + $0x340] sm:$0xff]
    %v3207 = vld [vmem:[#allocation8 + $0x348] sm:$0xff]
    %v3208 = vld [vmem:[#allocation8 + $0x350] sm:$0xff]
    %v3209 = vld [vmem:[#allocation8 + $0x358] sm:$0xff]
    %v3210 = vld [vmem:[#allocation8 + $0x360] sm:$0xff]
    %v3211 = vld [vmem:[#allocation8 + $0x368] sm:$0xff]
    %v3212 = vld [vmem:[#allocation8 + $0x370] sm:$0xff]
    %v3213 = vld [vmem:[#allocation8 + $0x378] sm:$0xff]
    %v3214 = vld [vmem:[#allocation8 + $0x380] sm:$0xff]
    %v3215 = vld [vmem:[#allocation8 + $0x388] sm:$0xff]
    %v3216 = vld [vmem:[#allocation8 + $0x390] sm:$0xff]
    %v3217 = vld [vmem:[#allocation8 + $0x398] sm:$0xff]
    %v3218 = vld [vmem:[#allocation8 + $0x3a0] sm:$0xff]
    %v3219 = vld [vmem:[#allocation8 + $0x3a8] sm:$0xff]
    %v3220 = vld [vmem:[#allocation8 + $0x3b0] sm:$0xff]
    %v3221 = vld [vmem:[#allocation8 + $0x3b8] sm:$0xff]
    %v3222 = vld [vmem:[#allocation8 + $0x3c0] sm:$0xff]
    %v3223 = vld [vmem:[#allocation8 + $0x3c8] sm:$0xff]
    %v3224 = vld [vmem:[#allocation8 + $0x3d0] sm:$0xff]
    %v3225 = vld [vmem:[#allocation8 + $0x3d8] sm:$0xff]
    %v3226 = vld [vmem:[#allocation8 + $0x3e0] sm:$0xff]
    %v3227 = vld [vmem:[#allocation8 + $0x3e8] sm:$0xff]
    %v3228 = vld [vmem:[#allocation8 + $0x3f0] sm:$0xff]
    %v3229 = vld [vmem:[#allocation8 + $0x3f8] sm:$0xff]
    %v3230 = vld [vmem:[#allocation8 + $0x400] sm:$0xff]
    %v3231 = vld [vmem:[#allocation8 + $0x408] sm:$0xff]
    %v3232 = vld [vmem:[#allocation8 + $0x410] sm:$0xff]
    %v3233 = vld [vmem:[#allocation8 + $0x418] sm:$0xff]
    %v3234 = vld [vmem:[#allocation8 + $0x420] sm:$0xff]
    %v3235 = vld [vmem:[#allocation8 + $0x428] sm:$0xff]
    %v3236 = vld [vmem:[#allocation8 + $0x430] sm:$0xff]
    %v3237 = vld [vmem:[#allocation8 + $0x438] sm:$0xff]
    %v3238 = vld [vmem:[#allocation8 + $0x440] sm:$0xff]
    %v3239 = vld [vmem:[#allocation8 + $0x448] sm:$0xff]
    %v3240 = vld [vmem:[#allocation8 + $0x450] sm:$0xff]
    %v3241 = vld [vmem:[#allocation8 + $0x458] sm:$0xff]
    %v3242 = vld [vmem:[#allocation8 + $0x460] sm:$0xff]
    %v3243 = vld [vmem:[#allocation8 + $0x468] sm:$0xff]
    %v3244 = vld [vmem:[#allocation8 + $0x470] sm:$0xff]
    %v3245 = vld [vmem:[#allocation8 + $0x478] sm:$0xff]
    %v3246 = vld [vmem:[#allocation8 + $0x480] sm:$0xff]
    %v3247 = vld [vmem:[#allocation8 + $0x488] sm:$0xff]
    %v3248 = vld [vmem:[#allocation8 + $0x490] sm:$0xff]
    %v3249 = vld [vmem:[#allocation8 + $0x498] sm:$0xff]
    %v3250 = vld [vmem:[#allocation8 + $0x4a0] sm:$0xff]
    %v3251 = vld [vmem:[#allocation8 + $0x4a8] sm:$0xff]
    %v3252 = vld [vmem:[#allocation8 + $0x4b0] sm:$0xff]
    %v3253 = vld [vmem:[#allocation8 + $0x4b8] sm:$0xff]
    %v3254 = vld [vmem:[#allocation8 + $0x4c0] sm:$0xff]
    %v3255 = vld [vmem:[#allocation8 + $0x4c8] sm:$0xff]
    %v3256 = vld [vmem:[#allocation8 + $0x4d0] sm:$0xff]
    %v3257 = vld [vmem:[#allocation8 + $0x4d8] sm:$0xff]
    %v3258 = vld [vmem:[#allocation8 + $0x4e0] sm:$0xff]
    %v3259 = vld [vmem:[#allocation8 + $0x4e8] sm:$0xff]
    %v3260 = vld [vmem:[#allocation8 + $0x4f0] sm:$0xff]
    %v3261 = vld [vmem:[#allocation8 + $0x4f8] sm:$0xff]
    %v3262 = vld [vmem:[#allocation8 + $0x500] sm:$0xff]
    %v3263 = vld [vmem:[#allocation8 + $0x508] sm:$0xff]
    %v3264 = vld [vmem:[#allocation8 + $0x510] sm:$0xff]
    %v3265 = vld [vmem:[#allocation8 + $0x518] sm:$0xff]
    %v3266 = vld [vmem:[#allocation8 + $0x520] sm:$0xff]
    %v3267 = vld [vmem:[#allocation8 + $0x528] sm:$0xff]
    %v3268 = vld [vmem:[#allocation8 + $0x530] sm:$0xff]
    %v3269 = vld [vmem:[#allocation8 + $0x538] sm:$0xff]
    %v3270 = vld [vmem:[#allocation8 + $0x540] sm:$0xff]
    %v3271 = vld [vmem:[#allocation8 + $0x548] sm:$0xff]
    %v3272 = vld [vmem:[#allocation8 + $0x550] sm:$0xff]
    %v3273 = vld [vmem:[#allocation8 + $0x558] sm:$0xff]
    %v3274 = vld [vmem:[#allocation8 + $0x560] sm:$0xff]
    %v3275 = vld [vmem:[#allocation8 + $0x568] sm:$0xff]
    %v3276 = vld [vmem:[#allocation8 + $0x570] sm:$0xff]
    %v3277 = vld [vmem:[#allocation8 + $0x578] sm:$0xff]
    %v3278 = vld [vmem:[#allocation8 + $0x580] sm:$0xff]
    %v3279 = vld [vmem:[#allocation8 + $0x588] sm:$0xff]
    %v3280 = vld [vmem:[#allocation8 + $0x590] sm:$0xff]
    %v3281 = vld [vmem:[#allocation8 + $0x598] sm:$0xff]
    %v3282 = vld [vmem:[#allocation8 + $0x5a0] sm:$0xff]
    %v3283 = vld [vmem:[#allocation8 + $0x5a8] sm:$0xff]
    %v3284 = vld [vmem:[#allocation8 + $0x5b0] sm:$0xff]
    %v3285 = vld [vmem:[#allocation8 + $0x5b8] sm:$0xff]
    %v3286 = vld [vmem:[#allocation8 + $0x5c0] sm:$0xff]
    %v3287 = vld [vmem:[#allocation8 + $0x5c8] sm:$0xff]
    %v3288 = vld [vmem:[#allocation8 + $0x5d0] sm:$0xff]
    %v3289 = vld [vmem:[#allocation8 + $0x5d8] sm:$0xff]
    %v3290 = vld [vmem:[#allocation8 + $0x5e0] sm:$0xff]
    %v3291 = vld [vmem:[#allocation8 + $0x5e8] sm:$0xff]
    %v3292 = vld [vmem:[#allocation8 + $0x5f0] sm:$0xff]
    %v3293 = vld [vmem:[#allocation8 + $0x5f8] sm:$0xff]
    %v3294 = vld [vmem:[%s16] sm:$0x3f]
    %v3296 = vlaneseq
    %v3297 = vshrl.u32 %v3296, 7
    %v3298 = vsub.s32 0, %v3297
    %v3299 = vrot.slane %v3294, %v3298
    %v3300 = vlaneseq
    %v3301 = vshrl.u32 %v3300, 7
    %v3302 = vsub.s32 1, %v3301
    %v3303 = vrot.slane %v3294, %v3302
    %v3304 = vlaneseq
    %v3305 = vshrl.u32 %v3304, 7
    %v3306 = vsub.s32 2, %v3305
    %v3307 = vrot.slane %v3294, %v3306
    %v3308 = vlaneseq
    %v3309 = vshrl.u32 %v3308, 7
    %v3310 = vsub.s32 3, %v3309
    %v3311 = vrot.slane %v3294, %v3310
    %v3312 = vlaneseq
    %v3313 = vshrl.u32 %v3312, 7
    %v3314 = vsub.s32 4, %v3313
    %v3315 = vrot.slane %v3294, %v3314
    %v3316 = vlaneseq
    %v3317 = vshrl.u32 %v3316, 7
    %v3318 = vsub.s32 5, %v3317
    %v3319 = vrot.slane %v3294, %v3318
    %v3518 = vunpack.c.l.b16 %v3102
    %v3519 = vunpack.c.h.b16 %v3102
    %v3520 = vunpack.c.l.b16 %v3103
    %v3521 = vunpack.c.h.b16 %v3103
    %v3522 = vunpack.c.l.b16 %v3104
    %v3523 = vunpack.c.h.b16 %v3104
    %v3524 = vunpack.c.l.b16 %v3105
    %v3525 = vunpack.c.h.b16 %v3105
    %v3526 = vunpack.c.l.b16 %v3106
    %v3527 = vunpack.c.h.b16 %v3106
    %v3528 = vunpack.c.l.b16 %v3107
    %v3529 = vunpack.c.h.b16 %v3107
    %v3530 = vunpack.c.l.b16 %v3108
    %v3531 = vunpack.c.h.b16 %v3108
    %v3532 = vunpack.c.l.b16 %v3109
    %v3533 = vunpack.c.h.b16 %v3109
    %v3534 = vunpack.c.l.b16 %v3110
    %v3535 = vunpack.c.h.b16 %v3110
    %v3536 = vunpack.c.l.b16 %v3111
    %v3537 = vunpack.c.h.b16 %v3111
    %v3538 = vunpack.c.l.b16 %v3112
    %v3539 = vunpack.c.h.b16 %v3112
    %v3540 = vunpack.c.l.b16 %v3113
    %v3541 = vunpack.c.h.b16 %v3113
    %v3542 = vunpack.c.l.b16 %v3114
    %v3543 = vunpack.c.h.b16 %v3114
    %v3544 = vunpack.c.l.b16 %v3115
    %v3545 = vunpack.c.h.b16 %v3115
    %v3546 = vunpack.c.l.b16 %v3116
    %v3547 = vunpack.c.h.b16 %v3116
    %v3548 = vunpack.c.l.b16 %v3117
    %v3549 = vunpack.c.h.b16 %v3117
    %v3550 = vunpack.c.l.b16 %v3118
    %v3551 = vunpack.c.h.b16 %v3118
    %v3552 = vunpack.c.l.b16 %v3119
    %v3553 = vunpack.c.h.b16 %v3119
    %v3554 = vunpack.c.l.b16 %v3120
    %v3555 = vunpack.c.h.b16 %v3120
    %v3556 = vunpack.c.l.b16 %v3121
    %v3557 = vunpack.c.h.b16 %v3121
    %v3558 = vunpack.c.l.b16 %v3122
    %v3559 = vunpack.c.h.b16 %v3122
    %v3560 = vunpack.c.l.b16 %v3123
    %v3561 = vunpack.c.h.b16 %v3123
    %v3562 = vunpack.c.l.b16 %v3124
    %v3563 = vunpack.c.h.b16 %v3124
    %v3564 = vunpack.c.l.b16 %v3125
    %v3565 = vunpack.c.h.b16 %v3125
    %v3566 = vunpack.c.l.b16 %v3126
    %v3567 = vunpack.c.h.b16 %v3126
    %v3568 = vunpack.c.l.b16 %v3127
    %v3569 = vunpack.c.h.b16 %v3127
    %v3570 = vunpack.c.l.b16 %v3128
    %v3571 = vunpack.c.h.b16 %v3128
    %v3572 = vunpack.c.l.b16 %v3129
    %v3573 = vunpack.c.h.b16 %v3129
    %v3574 = vunpack.c.l.b16 %v3130
    %v3575 = vunpack.c.h.b16 %v3130
    %v3576 = vunpack.c.l.b16 %v3131
    %v3577 = vunpack.c.h.b16 %v3131
    %v3578 = vunpack.c.l.b16 %v3132
    %v3579 = vunpack.c.h.b16 %v3132
    %v3580 = vunpack.c.l.b16 %v3133
    %v3581 = vunpack.c.h.b16 %v3133
    %v3582 = vunpack.c.l.b16 %v3134
    %v3583 = vunpack.c.h.b16 %v3134
    %v3584 = vunpack.c.l.b16 %v3135
    %v3585 = vunpack.c.h.b16 %v3135
    %v3586 = vunpack.c.l.b16 %v3136
    %v3587 = vunpack.c.h.b16 %v3136
    %v3588 = vunpack.c.l.b16 %v3137
    %v3589 = vunpack.c.h.b16 %v3137
    %v3590 = vunpack.c.l.b16 %v3138
    %v3591 = vunpack.c.h.b16 %v3138
    %v3592 = vunpack.c.l.b16 %v3139
    %v3593 = vunpack.c.h.b16 %v3139
    %v3594 = vunpack.c.l.b16 %v3140
    %v3595 = vunpack.c.h.b16 %v3140
    %v3596 = vunpack.c.l.b16 %v3141
    %v3597 = vunpack.c.h.b16 %v3141
    %v3598 = vunpack.c.l.b16 %v3142
    %v3599 = vunpack.c.h.b16 %v3142
    %v3600 = vunpack.c.l.b16 %v3143
    %v3601 = vunpack.c.h.b16 %v3143
    %v3602 = vunpack.c.l.b16 %v3144
    %v3603 = vunpack.c.h.b16 %v3144
    %v3604 = vunpack.c.l.b16 %v3145
    %v3605 = vunpack.c.h.b16 %v3145
    %v3606 = vunpack.c.l.b16 %v3146
    %v3607 = vunpack.c.h.b16 %v3146
    %v3608 = vunpack.c.l.b16 %v3147
    %v3609 = vunpack.c.h.b16 %v3147
    %v3610 = vunpack.c.l.b16 %v3148
    %v3611 = vunpack.c.h.b16 %v3148
    %v3612 = vunpack.c.l.b16 %v3149
    %v3613 = vunpack.c.h.b16 %v3149
    %v3614 = vunpack.c.l.b16 %v3150
    %v3615 = vunpack.c.h.b16 %v3150
    %v3616 = vunpack.c.l.b16 %v3151
    %v3617 = vunpack.c.h.b16 %v3151
    %v3618 = vunpack.c.l.b16 %v3152
    %v3619 = vunpack.c.h.b16 %v3152
    %v3620 = vunpack.c.l.b16 %v3153
    %v3621 = vunpack.c.h.b16 %v3153
    %v3622 = vunpack.c.l.b16 %v3154
    %v3623 = vunpack.c.h.b16 %v3154
    %v3624 = vunpack.c.l.b16 %v3155
    %v3625 = vunpack.c.h.b16 %v3155
    %v3626 = vunpack.c.l.b16 %v3156
    %v3627 = vunpack.c.h.b16 %v3156
    %v3628 = vunpack.c.l.b16 %v3157
    %v3629 = vunpack.c.h.b16 %v3157
    %v3630 = vunpack.c.l.b16 %v3158
    %v3631 = vunpack.c.h.b16 %v3158
    %v3632 = vunpack.c.l.b16 %v3159
    %v3633 = vunpack.c.h.b16 %v3159
    %v3634 = vunpack.c.l.b16 %v3160
    %v3635 = vunpack.c.h.b16 %v3160
    %v3636 = vunpack.c.l.b16 %v3161
    %v3637 = vunpack.c.h.b16 %v3161
    %v3638 = vunpack.c.l.b16 %v3162
    %v3639 = vunpack.c.h.b16 %v3162
    %v3640 = vunpack.c.l.b16 %v3163
    %v3641 = vunpack.c.h.b16 %v3163
    %v3642 = vunpack.c.l.b16 %v3164
    %v3643 = vunpack.c.h.b16 %v3164
    %v3644 = vunpack.c.l.b16 %v3165
    %v3645 = vunpack.c.h.b16 %v3165
    %v3646 = vunpack.c.l.b16 %v3166
    %v3647 = vunpack.c.h.b16 %v3166
    %v3648 = vunpack.c.l.b16 %v3167
    %v3649 = vunpack.c.h.b16 %v3167
    %v3650 = vunpack.c.l.b16 %v3168
    %v3651 = vunpack.c.h.b16 %v3168
    %v3652 = vunpack.c.l.b16 %v3169
    %v3653 = vunpack.c.h.b16 %v3169
    %v3654 = vunpack.c.l.b16 %v3170
    %v3655 = vunpack.c.h.b16 %v3170
    %v3656 = vunpack.c.l.b16 %v3171
    %v3657 = vunpack.c.h.b16 %v3171
    %v3658 = vunpack.c.l.b16 %v3172
    %v3659 = vunpack.c.h.b16 %v3172
    %v3660 = vunpack.c.l.b16 %v3173
    %v3661 = vunpack.c.h.b16 %v3173
    %v3662 = vunpack.c.l.b16 %v3174
    %v3663 = vunpack.c.h.b16 %v3174
    %v3664 = vunpack.c.l.b16 %v3175
    %v3665 = vunpack.c.h.b16 %v3175
    %v3666 = vunpack.c.l.b16 %v3176
    %v3667 = vunpack.c.h.b16 %v3176
    %v3668 = vunpack.c.l.b16 %v3177
    %v3669 = vunpack.c.h.b16 %v3177
    %v3670 = vunpack.c.l.b16 %v3178
    %v3671 = vunpack.c.h.b16 %v3178
    %v3672 = vunpack.c.l.b16 %v3179
    %v3673 = vunpack.c.h.b16 %v3179
    %v3674 = vunpack.c.l.b16 %v3180
    %v3675 = vunpack.c.h.b16 %v3180
    %v3676 = vunpack.c.l.b16 %v3181
    %v3677 = vunpack.c.h.b16 %v3181
    %v3678 = vunpack.c.l.b16 %v3182
    %v3679 = vunpack.c.h.b16 %v3182
    %v3680 = vunpack.c.l.b16 %v3183
    %v3681 = vunpack.c.h.b16 %v3183
    %v3682 = vunpack.c.l.b16 %v3184
    %v3683 = vunpack.c.h.b16 %v3184
    %v3684 = vunpack.c.l.b16 %v3185
    %v3685 = vunpack.c.h.b16 %v3185
    %v3686 = vunpack.c.l.b16 %v3186
    %v3687 = vunpack.c.h.b16 %v3186
    %v3688 = vunpack.c.l.b16 %v3187
    %v3689 = vunpack.c.h.b16 %v3187
    %v3690 = vunpack.c.l.b16 %v3188
    %v3691 = vunpack.c.h.b16 %v3188
    %v3692 = vunpack.c.l.b16 %v3189
    %v3693 = vunpack.c.h.b16 %v3189
    %v3694 = vunpack.c.l.b16 %v3190
    %v3695 = vunpack.c.h.b16 %v3190
    %v3696 = vunpack.c.l.b16 %v3191
    %v3697 = vunpack.c.h.b16 %v3191
    %v3698 = vunpack.c.l.b16 %v3192
    %v3699 = vunpack.c.h.b16 %v3192
    %v3700 = vunpack.c.l.b16 %v3193
    %v3701 = vunpack.c.h.b16 %v3193
    %v3702 = vunpack.c.l.b16 %v3194
    %v3703 = vunpack.c.h.b16 %v3194
    %v3704 = vunpack.c.l.b16 %v3195
    %v3705 = vunpack.c.h.b16 %v3195
    %v3706 = vunpack.c.l.b16 %v3196
    %v3707 = vunpack.c.h.b16 %v3196
    %v3708 = vunpack.c.l.b16 %v3197
    %v3709 = vunpack.c.h.b16 %v3197
    %v3710 = vunpack.c.l.b16 %v3198
    %v3711 = vunpack.c.h.b16 %v3198
    %v3712 = vunpack.c.l.b16 %v3199
    %v3713 = vunpack.c.h.b16 %v3199
    %v3714 = vunpack.c.l.b16 %v3200
    %v3715 = vunpack.c.h.b16 %v3200
    %v3716 = vunpack.c.l.b16 %v3201
    %v3717 = vunpack.c.h.b16 %v3201
    %v3718 = vunpack.c.l.b16 %v3202
    %v3719 = vunpack.c.h.b16 %v3202
    %v3720 = vunpack.c.l.b16 %v3203
    %v3721 = vunpack.c.h.b16 %v3203
    %v3722 = vunpack.c.l.b16 %v3204
    %v3723 = vunpack.c.h.b16 %v3204
    %v3724 = vunpack.c.l.b16 %v3205
    %v3725 = vunpack.c.h.b16 %v3205
    %v3726 = vunpack.c.l.b16 %v3206
    %v3727 = vunpack.c.h.b16 %v3206
    %v3728 = vunpack.c.l.b16 %v3207
    %v3729 = vunpack.c.h.b16 %v3207
    %v3730 = vunpack.c.l.b16 %v3208
    %v3731 = vunpack.c.h.b16 %v3208
    %v3732 = vunpack.c.l.b16 %v3209
    %v3733 = vunpack.c.h.b16 %v3209
    %v3734 = vunpack.c.l.b16 %v3210
    %v3735 = vunpack.c.h.b16 %v3210
    %v3736 = vunpack.c.l.b16 %v3211
    %v3737 = vunpack.c.h.b16 %v3211
    %v3738 = vunpack.c.l.b16 %v3212
    %v3739 = vunpack.c.h.b16 %v3212
    %v3740 = vunpack.c.l.b16 %v3213
    %v3741 = vunpack.c.h.b16 %v3213
    %v3742 = vunpack.c.l.b16 %v3214
    %v3743 = vunpack.c.h.b16 %v3214
    %v3744 = vunpack.c.l.b16 %v3215
    %v3745 = vunpack.c.h.b16 %v3215
    %v3746 = vunpack.c.l.b16 %v3216
    %v3747 = vunpack.c.h.b16 %v3216
    %v3748 = vunpack.c.l.b16 %v3217
    %v3749 = vunpack.c.h.b16 %v3217
    %v3750 = vunpack.c.l.b16 %v3218
    %v3751 = vunpack.c.h.b16 %v3218
    %v3752 = vunpack.c.l.b16 %v3219
    %v3753 = vunpack.c.h.b16 %v3219
    %v3754 = vunpack.c.l.b16 %v3220
    %v3755 = vunpack.c.h.b16 %v3220
    %v3756 = vunpack.c.l.b16 %v3221
    %v3757 = vunpack.c.h.b16 %v3221
    %v3758 = vunpack.c.l.b16 %v3222
    %v3759 = vunpack.c.h.b16 %v3222
    %v3760 = vunpack.c.l.b16 %v3223
    %v3761 = vunpack.c.h.b16 %v3223
    %v3762 = vunpack.c.l.b16 %v3224
    %v3763 = vunpack.c.h.b16 %v3224
    %v3764 = vunpack.c.l.b16 %v3225
    %v3765 = vunpack.c.h.b16 %v3225
    %v3766 = vunpack.c.l.b16 %v3226
    %v3767 = vunpack.c.h.b16 %v3226
    %v3768 = vunpack.c.l.b16 %v3227
    %v3769 = vunpack.c.h.b16 %v3227
    %v3770 = vunpack.c.l.b16 %v3228
    %v3771 = vunpack.c.h.b16 %v3228
    %v3772 = vunpack.c.l.b16 %v3229
    %v3773 = vunpack.c.h.b16 %v3229
    %v3774 = vunpack.c.l.b16 %v3230
    %v3775 = vunpack.c.h.b16 %v3230
    %v3776 = vunpack.c.l.b16 %v3231
    %v3777 = vunpack.c.h.b16 %v3231
    %v3778 = vunpack.c.l.b16 %v3232
    %v3779 = vunpack.c.h.b16 %v3232
    %v3780 = vunpack.c.l.b16 %v3233
    %v3781 = vunpack.c.h.b16 %v3233
    %v3782 = vunpack.c.l.b16 %v3234
    %v3783 = vunpack.c.h.b16 %v3234
    %v3784 = vunpack.c.l.b16 %v3235
    %v3785 = vunpack.c.h.b16 %v3235
    %v3786 = vunpack.c.l.b16 %v3236
    %v3787 = vunpack.c.h.b16 %v3236
    %v3788 = vunpack.c.l.b16 %v3237
    %v3789 = vunpack.c.h.b16 %v3237
    %v3790 = vunpack.c.l.b16 %v3238
    %v3791 = vunpack.c.h.b16 %v3238
    %v3792 = vunpack.c.l.b16 %v3239
    %v3793 = vunpack.c.h.b16 %v3239
    %v3794 = vunpack.c.l.b16 %v3240
    %v3795 = vunpack.c.h.b16 %v3240
    %v3796 = vunpack.c.l.b16 %v3241
    %v3797 = vunpack.c.h.b16 %v3241
    %v3798 = vunpack.c.l.b16 %v3242
    %v3799 = vunpack.c.h.b16 %v3242
    %v3800 = vunpack.c.l.b16 %v3243
    %v3801 = vunpack.c.h.b16 %v3243
    %v3802 = vunpack.c.l.b16 %v3244
    %v3803 = vunpack.c.h.b16 %v3244
    %v3804 = vunpack.c.l.b16 %v3245
    %v3805 = vunpack.c.h.b16 %v3245
    %v3806 = vunpack.c.l.b16 %v3246
    %v3807 = vunpack.c.h.b16 %v3246
    %v3808 = vunpack.c.l.b16 %v3247
    %v3809 = vunpack.c.h.b16 %v3247
    %v3810 = vunpack.c.l.b16 %v3248
    %v3811 = vunpack.c.h.b16 %v3248
    %v3812 = vunpack.c.l.b16 %v3249
    %v3813 = vunpack.c.h.b16 %v3249
    %v3814 = vunpack.c.l.b16 %v3250
    %v3815 = vunpack.c.h.b16 %v3250
    %v3816 = vunpack.c.l.b16 %v3251
    %v3817 = vunpack.c.h.b16 %v3251
    %v3818 = vunpack.c.l.b16 %v3252
    %v3819 = vunpack.c.h.b16 %v3252
    %v3820 = vunpack.c.l.b16 %v3253
    %v3821 = vunpack.c.h.b16 %v3253
    %v3822 = vunpack.c.l.b16 %v3254
    %v3823 = vunpack.c.h.b16 %v3254
    %v3824 = vunpack.c.l.b16 %v3255
    %v3825 = vunpack.c.h.b16 %v3255
    %v3826 = vunpack.c.l.b16 %v3256
    %v3827 = vunpack.c.h.b16 %v3256
    %v3828 = vunpack.c.l.b16 %v3257
    %v3829 = vunpack.c.h.b16 %v3257
    %v3830 = vunpack.c.l.b16 %v3258
    %v3831 = vunpack.c.h.b16 %v3258
    %v3832 = vunpack.c.l.b16 %v3259
    %v3833 = vunpack.c.h.b16 %v3259
    %v3834 = vunpack.c.l.b16 %v3260
    %v3835 = vunpack.c.h.b16 %v3260
    %v3836 = vunpack.c.l.b16 %v3261
    %v3837 = vunpack.c.h.b16 %v3261
    %v3838 = vunpack.c.l.b16 %v3262
    %v3839 = vunpack.c.h.b16 %v3262
    %v3840 = vunpack.c.l.b16 %v3263
    %v3841 = vunpack.c.h.b16 %v3263
    %v3842 = vunpack.c.l.b16 %v3264
    %v3843 = vunpack.c.h.b16 %v3264
    %v3844 = vunpack.c.l.b16 %v3265
    %v3845 = vunpack.c.h.b16 %v3265
    %v3846 = vunpack.c.l.b16 %v3266
    %v3847 = vunpack.c.h.b16 %v3266
    %v3848 = vunpack.c.l.b16 %v3267
    %v3849 = vunpack.c.h.b16 %v3267
    %v3850 = vunpack.c.l.b16 %v3268
    %v3851 = vunpack.c.h.b16 %v3268
    %v3852 = vunpack.c.l.b16 %v3269
    %v3853 = vunpack.c.h.b16 %v3269
    %v3854 = vunpack.c.l.b16 %v3270
    %v3855 = vunpack.c.h.b16 %v3270
    %v3856 = vunpack.c.l.b16 %v3271
    %v3857 = vunpack.c.h.b16 %v3271
    %v3858 = vunpack.c.l.b16 %v3272
    %v3859 = vunpack.c.h.b16 %v3272
    %v3860 = vunpack.c.l.b16 %v3273
    %v3861 = vunpack.c.h.b16 %v3273
    %v3862 = vunpack.c.l.b16 %v3274
    %v3863 = vunpack.c.h.b16 %v3274
    %v3864 = vunpack.c.l.b16 %v3275
    %v3865 = vunpack.c.h.b16 %v3275
    %v3866 = vunpack.c.l.b16 %v3276
    %v3867 = vunpack.c.h.b16 %v3276
    %v3868 = vunpack.c.l.b16 %v3277
    %v3869 = vunpack.c.h.b16 %v3277
    %v3870 = vunpack.c.l.b16 %v3278
    %v3871 = vunpack.c.h.b16 %v3278
    %v3872 = vunpack.c.l.b16 %v3279
    %v3873 = vunpack.c.h.b16 %v3279
    %v3874 = vunpack.c.l.b16 %v3280
    %v3875 = vunpack.c.h.b16 %v3280
    %v3876 = vunpack.c.l.b16 %v3281
    %v3877 = vunpack.c.h.b16 %v3281
    %v3878 = vunpack.c.l.b16 %v3282
    %v3879 = vunpack.c.h.b16 %v3282
    %v3880 = vunpack.c.l.b16 %v3283
    %v3881 = vunpack.c.h.b16 %v3283
    %v3882 = vunpack.c.l.b16 %v3284
    %v3883 = vunpack.c.h.b16 %v3284
    %v3884 = vunpack.c.l.b16 %v3285
    %v3885 = vunpack.c.h.b16 %v3285
    %v3886 = vunpack.c.l.b16 %v3286
    %v3887 = vunpack.c.h.b16 %v3286
    %v3888 = vunpack.c.l.b16 %v3287
    %v3889 = vunpack.c.h.b16 %v3287
    %v3890 = vunpack.c.l.b16 %v3288
    %v3891 = vunpack.c.h.b16 %v3288
    %v3892 = vunpack.c.l.b16 %v3289
    %v3893 = vunpack.c.h.b16 %v3289
    %v3894 = vunpack.c.l.b16 %v3290
    %v3895 = vunpack.c.h.b16 %v3290
    %v3896 = vunpack.c.l.b16 %v3291
    %v3897 = vunpack.c.h.b16 %v3291
    %v3898 = vunpack.c.l.b16 %v3292
    %v3899 = vunpack.c.h.b16 %v3292
    %v3900 = vunpack.c.l.b16 %v3293
    %v3901 = vunpack.c.h.b16 %v3293
    %v3902 = vpack.c.b16 %v3524, %v3518
    %v3903 = vpack.c.b16 %v3525, %v3519
    %v3904 = vpack.c.b16 %v3526, %v3520
    %v3905 = vpack.c.b16 %v3527, %v3521
    %v3906 = vpack.c.b16 %v3528, %v3522
    %v3907 = vpack.c.b16 %v3529, %v3523
    %v3908 = vpack.c.b16 %v3536, %v3530
    %v3909 = vpack.c.b16 %v3537, %v3531
    %v3910 = vpack.c.b16 %v3538, %v3532
    %v3911 = vpack.c.b16 %v3539, %v3533
    %v3912 = vpack.c.b16 %v3540, %v3534
    %v3913 = vpack.c.b16 %v3541, %v3535
    %v3914 = vpack.c.b16 %v3548, %v3542
    %v3915 = vpack.c.b16 %v3549, %v3543
    %v3916 = vpack.c.b16 %v3550, %v3544
    %v3917 = vpack.c.b16 %v3551, %v3545
    %v3918 = vpack.c.b16 %v3552, %v3546
    %v3919 = vpack.c.b16 %v3553, %v3547
    %v3920 = vpack.c.b16 %v3560, %v3554
    %v3921 = vpack.c.b16 %v3561, %v3555
    %v3922 = vpack.c.b16 %v3562, %v3556
    %v3923 = vpack.c.b16 %v3563, %v3557
    %v3924 = vpack.c.b16 %v3564, %v3558
    %v3925 = vpack.c.b16 %v3565, %v3559
    %v3926 = vpack.c.b16 %v3572, %v3566
    %v3927 = vpack.c.b16 %v3573, %v3567
    %v3928 = vpack.c.b16 %v3574, %v3568
    %v3929 = vpack.c.b16 %v3575, %v3569
    %v3930 = vpack.c.b16 %v3576, %v3570
    %v3931 = vpack.c.b16 %v3577, %v3571
    %v3932 = vpack.c.b16 %v3584, %v3578
    %v3933 = vpack.c.b16 %v3585, %v3579
    %v3934 = vpack.c.b16 %v3586, %v3580
    %v3935 = vpack.c.b16 %v3587, %v3581
    %v3936 = vpack.c.b16 %v3588, %v3582
    %v3937 = vpack.c.b16 %v3589, %v3583
    %v3938 = vpack.c.b16 %v3596, %v3590
    %v3939 = vpack.c.b16 %v3597, %v3591
    %v3940 = vpack.c.b16 %v3598, %v3592
    %v3941 = vpack.c.b16 %v3599, %v3593
    %v3942 = vpack.c.b16 %v3600, %v3594
    %v3943 = vpack.c.b16 %v3601, %v3595
    %v3944 = vpack.c.b16 %v3608, %v3602
    %v3945 = vpack.c.b16 %v3609, %v3603
    %v3946 = vpack.c.b16 %v3610, %v3604
    %v3947 = vpack.c.b16 %v3611, %v3605
    %v3948 = vpack.c.b16 %v3612, %v3606
    %v3949 = vpack.c.b16 %v3613, %v3607
    %v3950 = vpack.c.b16 %v3620, %v3614
    %v3951 = vpack.c.b16 %v3621, %v3615
    %v3952 = vpack.c.b16 %v3622, %v3616
    %v3953 = vpack.c.b16 %v3623, %v3617
    %v3954 = vpack.c.b16 %v3624, %v3618
    %v3955 = vpack.c.b16 %v3625, %v3619
    %v3956 = vpack.c.b16 %v3632, %v3626
    %v3957 = vpack.c.b16 %v3633, %v3627
    %v3958 = vpack.c.b16 %v3634, %v3628
    %v3959 = vpack.c.b16 %v3635, %v3629
    %v3960 = vpack.c.b16 %v3636, %v3630
    %v3961 = vpack.c.b16 %v3637, %v3631
    %v3962 = vpack.c.b16 %v3644, %v3638
    %v3963 = vpack.c.b16 %v3645, %v3639
    %v3964 = vpack.c.b16 %v3646, %v3640
    %v3965 = vpack.c.b16 %v3647, %v3641
    %v3966 = vpack.c.b16 %v3648, %v3642
    %v3967 = vpack.c.b16 %v3649, %v3643
    %v3968 = vpack.c.b16 %v3656, %v3650
    %v3969 = vpack.c.b16 %v3657, %v3651
    %v3970 = vpack.c.b16 %v3658, %v3652
    %v3971 = vpack.c.b16 %v3659, %v3653
    %v3972 = vpack.c.b16 %v3660, %v3654
    %v3973 = vpack.c.b16 %v3661, %v3655
    %v3974 = vpack.c.b16 %v3668, %v3662
    %v3975 = vpack.c.b16 %v3669, %v3663
    %v3976 = vpack.c.b16 %v3670, %v3664
    %v3977 = vpack.c.b16 %v3671, %v3665
    %v3978 = vpack.c.b16 %v3672, %v3666
    %v3979 = vpack.c.b16 %v3673, %v3667
    %v3980 = vpack.c.b16 %v3680, %v3674
    %v3981 = vpack.c.b16 %v3681, %v3675
    %v3982 = vpack.c.b16 %v3682, %v3676
    %v3983 = vpack.c.b16 %v3683, %v3677
    %v3984 = vpack.c.b16 %v3684, %v3678
    %v3985 = vpack.c.b16 %v3685, %v3679
    %v3986 = vpack.c.b16 %v3692, %v3686
    %v3987 = vpack.c.b16 %v3693, %v3687
    %v3988 = vpack.c.b16 %v3694, %v3688
    %v3989 = vpack.c.b16 %v3695, %v3689
    %v3990 = vpack.c.b16 %v3696, %v3690
    %v3991 = vpack.c.b16 %v3697, %v3691
    %v3992 = vpack.c.b16 %v3704, %v3698
    %v3993 = vpack.c.b16 %v3705, %v3699
    %v3994 = vpack.c.b16 %v3706, %v3700
    %v3995 = vpack.c.b16 %v3707, %v3701
    %v3996 = vpack.c.b16 %v3708, %v3702
    %v3997 = vpack.c.b16 %v3709, %v3703
    %v3998 = vpack.c.b16 %v3716, %v3710
    %v3999 = vpack.c.b16 %v3717, %v3711
    %v4000 = vpack.c.b16 %v3718, %v3712
    %v4001 = vpack.c.b16 %v3719, %v3713
    %v4002 = vpack.c.b16 %v3720, %v3714
    %v4003 = vpack.c.b16 %v3721, %v3715
    %v4004 = vpack.c.b16 %v3728, %v3722
    %v4005 = vpack.c.b16 %v3729, %v3723
    %v4006 = vpack.c.b16 %v3730, %v3724
    %v4007 = vpack.c.b16 %v3731, %v3725
    %v4008 = vpack.c.b16 %v3732, %v3726
    %v4009 = vpack.c.b16 %v3733, %v3727
    %v4010 = vpack.c.b16 %v3740, %v3734
    %v4011 = vpack.c.b16 %v3741, %v3735
    %v4012 = vpack.c.b16 %v3742, %v3736
    %v4013 = vpack.c.b16 %v3743, %v3737
    %v4014 = vpack.c.b16 %v3744, %v3738
    %v4015 = vpack.c.b16 %v3745, %v3739
    %v4016 = vpack.c.b16 %v3752, %v3746
    %v4017 = vpack.c.b16 %v3753, %v3747
    %v4018 = vpack.c.b16 %v3754, %v3748
    %v4019 = vpack.c.b16 %v3755, %v3749
    %v4020 = vpack.c.b16 %v3756, %v3750
    %v4021 = vpack.c.b16 %v3757, %v3751
    %v4022 = vpack.c.b16 %v3764, %v3758
    %v4023 = vpack.c.b16 %v3765, %v3759
    %v4024 = vpack.c.b16 %v3766, %v3760
    %v4025 = vpack.c.b16 %v3767, %v3761
    %v4026 = vpack.c.b16 %v3768, %v3762
    %v4027 = vpack.c.b16 %v3769, %v3763
    %v4028 = vpack.c.b16 %v3776, %v3770
    %v4029 = vpack.c.b16 %v3777, %v3771
    %v4030 = vpack.c.b16 %v3778, %v3772
    %v4031 = vpack.c.b16 %v3779, %v3773
    %v4032 = vpack.c.b16 %v3780, %v3774
    %v4033 = vpack.c.b16 %v3781, %v3775
    %v4034 = vpack.c.b16 %v3788, %v3782
    %v4035 = vpack.c.b16 %v3789, %v3783
    %v4036 = vpack.c.b16 %v3790, %v3784
    %v4037 = vpack.c.b16 %v3791, %v3785
    %v4038 = vpack.c.b16 %v3792, %v3786
    %v4039 = vpack.c.b16 %v3793, %v3787
    %v4040 = vpack.c.b16 %v3800, %v3794
    %v4041 = vpack.c.b16 %v3801, %v3795
    %v4042 = vpack.c.b16 %v3802, %v3796
    %v4043 = vpack.c.b16 %v3803, %v3797
    %v4044 = vpack.c.b16 %v3804, %v3798
    %v4045 = vpack.c.b16 %v3805, %v3799
    %v4046 = vpack.c.b16 %v3812, %v3806
    %v4047 = vpack.c.b16 %v3813, %v3807
    %v4048 = vpack.c.b16 %v3814, %v3808
    %v4049 = vpack.c.b16 %v3815, %v3809
    %v4050 = vpack.c.b16 %v3816, %v3810
    %v4051 = vpack.c.b16 %v3817, %v3811
    %v4052 = vpack.c.b16 %v3824, %v3818
    %v4053 = vpack.c.b16 %v3825, %v3819
    %v4054 = vpack.c.b16 %v3826, %v3820
    %v4055 = vpack.c.b16 %v3827, %v3821
    %v4056 = vpack.c.b16 %v3828, %v3822
    %v4057 = vpack.c.b16 %v3829, %v3823
    %v4058 = vpack.c.b16 %v3836, %v3830
    %v4059 = vpack.c.b16 %v3837, %v3831
    %v4060 = vpack.c.b16 %v3838, %v3832
    %v4061 = vpack.c.b16 %v3839, %v3833
    %v4062 = vpack.c.b16 %v3840, %v3834
    %v4063 = vpack.c.b16 %v3841, %v3835
    %v4064 = vpack.c.b16 %v3848, %v3842
    %v4065 = vpack.c.b16 %v3849, %v3843
    %v4066 = vpack.c.b16 %v3850, %v3844
    %v4067 = vpack.c.b16 %v3851, %v3845
    %v4068 = vpack.c.b16 %v3852, %v3846
    %v4069 = vpack.c.b16 %v3853, %v3847
    %v4070 = vpack.c.b16 %v3860, %v3854
    %v4071 = vpack.c.b16 %v3861, %v3855
    %v4072 = vpack.c.b16 %v3862, %v3856
    %v4073 = vpack.c.b16 %v3863, %v3857
    %v4074 = vpack.c.b16 %v3864, %v3858
    %v4075 = vpack.c.b16 %v3865, %v3859
    %v4076 = vpack.c.b16 %v3872, %v3866
    %v4077 = vpack.c.b16 %v3873, %v3867
    %v4078 = vpack.c.b16 %v3874, %v3868
    %v4079 = vpack.c.b16 %v3875, %v3869
    %v4080 = vpack.c.b16 %v3876, %v3870
    %v4081 = vpack.c.b16 %v3877, %v3871
    %v4082 = vpack.c.b16 %v3884, %v3878
    %v4083 = vpack.c.b16 %v3885, %v3879
    %v4084 = vpack.c.b16 %v3886, %v3880
    %v4085 = vpack.c.b16 %v3887, %v3881
    %v4086 = vpack.c.b16 %v3888, %v3882
    %v4087 = vpack.c.b16 %v3889, %v3883
    %v4088 = vpack.c.b16 %v3896, %v3890
    %v4089 = vpack.c.b16 %v3897, %v3891
    %v4090 = vpack.c.b16 %v3898, %v3892
    %v4091 = vpack.c.b16 %v3899, %v3893
    %v4092 = vpack.c.b16 %v3900, %v3894
    %v4093 = vpack.c.b16 %v3901, %v3895
    %4286 = vmatprep.subr.bf16.mxu0 %v3945
    %4287 = vmatpush1.bf16.msra.mxu0 %v3944
    %4288 = vmatprep.subr.bf16.mxu0 %v3939
    %4289 = vmatpush1.bf16.msra.mxu0 %v3938
    %4290 = vmatprep.subr.bf16.mxu0 %v3933
    %4291 = vmatpush1.bf16.msra.mxu0 %v3932
    %4292 = vmatprep.subr.bf16.mxu0 %v3927
    %4293 = vmatpush1.bf16.msra.mxu0 %v3926
    %4294 = vmatprep.subr.bf16.mxu0 %v3921
    %4295 = vmatpush1.bf16.msra.mxu0 %v3920
    %4296 = vmatprep.subr.bf16.mxu0 %v3915
    %4297 = vmatpush1.bf16.msra.mxu0 %v3914
    %4298 = vmatprep.subr.bf16.mxu0 %v3909
    %4299 = vmatpush1.bf16.msra.mxu0 %v3908
    %4300 = vmatprep.subr.bf16.mxu0 %v3903
    %4301 = vmatpush1.bf16.msra.mxu0 %v3902
    %4302 = vmatprep.subr.bf16.mxu0 %v3993
    %4303 = vmatpush2.bf16.msra.mxu0 %v3992
    %4304 = vmatprep.subr.bf16.mxu0 %v3987
    %4305 = vmatpush2.bf16.msra.mxu0 %v3986
    %4306 = vmatprep.subr.bf16.mxu0 %v3981
    %4307 = vmatpush2.bf16.msra.mxu0 %v3980
    %4308 = vmatprep.subr.bf16.mxu0 %v3975
    %4309 = vmatpush2.bf16.msra.mxu0 %v3974
    %4310 = vmatprep.subr.bf16.mxu0 %v3969
    %4311 = vmatpush2.bf16.msra.mxu0 %v3968
    %4312 = vmatprep.subr.bf16.mxu0 %v3963
    %4313 = vmatpush2.bf16.msra.mxu0 %v3962
    %4314 = vmatprep.subr.bf16.mxu0 %v3957
    %4315 = vmatpush2.bf16.msra.mxu0 %v3956
    %4316 = vmatprep.subr.bf16.mxu0 %v3951
    %4317 = vmatpush2.bf16.msra.mxu0 %v3950
    %4318 = vmatprep.mubr.bf16.mxu0 %v3099
    %4319 = vmatmul.mubr.bf16.gmra.mxu0 %v3098
    %v4320 = vpop.f32.mrf.mxu0
    %v4321 = vadd.f32 %v3299, %v4320
    %v4322 = vpop.f32.mrf.mxu0
    %v4323 = vadd.f32 %v3303, %v4322
    %v4324 = vpop.f32.mrf.mxu0
    %v4325 = vpop.f32.mrf.mxu0
    %4326 = vdwg.mxu0
    %4327 = vmatprep.subr.bf16.mxu0 %v4041
    %4328 = vmatpush1.bf16.msra.mxu0 %v4040
    %4329 = vmatprep.subr.bf16.mxu0 %v4035
    %4330 = vmatpush1.bf16.msra.mxu0 %v4034
    %4331 = vmatprep.subr.bf16.mxu0 %v4029
    %4332 = vmatpush1.bf16.msra.mxu0 %v4028
    %4333 = vmatprep.subr.bf16.mxu0 %v4023
    %4334 = vmatpush1.bf16.msra.mxu0 %v4022
    %4335 = vmatprep.subr.bf16.mxu0 %v4017
    %4336 = vmatpush1.bf16.msra.mxu0 %v4016
    %4337 = vmatprep.subr.bf16.mxu0 %v4011
    %4338 = vmatpush1.bf16.msra.mxu0 %v4010
    %4339 = vmatprep.subr.bf16.mxu0 %v4005
    %4340 = vmatpush1.bf16.msra.mxu0 %v4004
    %4341 = vmatprep.subr.bf16.mxu0 %v3999
    %4342 = vmatpush1.bf16.msra.mxu0 %v3998
    %4343 = vmatprep.subr.bf16.mxu0 %v4089
    %4344 = vmatpush2.bf16.msra.mxu0 %v4088
    %4345 = vmatprep.subr.bf16.mxu0 %v4083
    %4346 = vmatpush2.bf16.msra.mxu0 %v4082
    %4347 = vmatprep.subr.bf16.mxu0 %v4077
    %4348 = vmatpush2.bf16.msra.mxu0 %v4076
    %4349 = vmatprep.subr.bf16.mxu0 %v4071
    %4350 = vmatpush2.bf16.msra.mxu0 %v4070
    %4351 = vmatprep.subr.bf16.mxu0 %v4065
    %4352 = vmatpush2.bf16.msra.mxu0 %v4064
    %4353 = vmatprep.subr.bf16.mxu0 %v4059
    %4354 = vmatpush2.bf16.msra.mxu0 %v4058
    %4355 = vmatprep.subr.bf16.mxu0 %v4053
    %4356 = vmatpush2.bf16.msra.mxu0 %v4052
    %4357 = vmatprep.subr.bf16.mxu0 %v4047
    %4358 = vmatpush2.bf16.msra.mxu0 %v4046
    %4359 = vmatprep.mubr.bf16.mxu0 %v3101
    %4360 = vmatmul.mubr.bf16.gmra.mxu0 %v3100
    %v4361 = vpop.f32.mrf.mxu0
    %v4362 = vadd.f32 %v4321, %v4361
    %v4363 = vpop.f32.mrf.mxu0
    %v4364 = vadd.f32 %v4323, %v4363
    %v4365 = vpop.f32.mrf.mxu0
    %v4366 = vpop.f32.mrf.mxu0
    %4367 = vdwg.mxu0
    %4368 = vmatprep.subr.bf16.mxu0 %v3947
    %4369 = vmatpush1.bf16.msra.mxu0 %v3946
    %4370 = vmatprep.subr.bf16.mxu0 %v3941
    %4371 = vmatpush1.bf16.msra.mxu0 %v3940
    %4372 = vmatprep.subr.bf16.mxu0 %v3935
    %4373 = vmatpush1.bf16.msra.mxu0 %v3934
    %4374 = vmatprep.subr.bf16.mxu0 %v3929
    %4375 = vmatpush1.bf16.msra.mxu0 %v3928
    %4376 = vmatprep.subr.bf16.mxu0 %v3923
    %4377 = vmatpush1.bf16.msra.mxu0 %v3922
    %4378 = vmatprep.subr.bf16.mxu0 %v3917
    %4379 = vmatpush1.bf16.msra.mxu0 %v3916
    %4380 = vmatprep.subr.bf16.mxu0 %v3911
    %4381 = vmatpush1.bf16.msra.mxu0 %v3910
    %4382 = vmatprep.subr.bf16.mxu0 %v3905
    %4383 = vmatpush1.bf16.msra.mxu0 %v3904
    %4384 = vmatprep.subr.bf16.mxu0 %v3995
    %4385 = vmatpush2.bf16.msra.mxu0 %v3994
    %4386 = vmatprep.subr.bf16.mxu0 %v3989
    %4387 = vmatpush2.bf16.msra.mxu0 %v3988
    %4388 = vmatprep.subr.bf16.mxu0 %v3983
    %4389 = vmatpush2.bf16.msra.mxu0 %v3982
    %4390 = vmatprep.subr.bf16.mxu0 %v3977
    %4391 = vmatpush2.bf16.msra.mxu0 %v3976
    %4392 = vmatprep.subr.bf16.mxu0 %v3971
    %4393 = vmatpush2.bf16.msra.mxu0 %v3970
    %4394 = vmatprep.subr.bf16.mxu0 %v3965
    %4395 = vmatpush2.bf16.msra.mxu0 %v3964
    %4396 = vmatprep.subr.bf16.mxu0 %v3959
    %4397 = vmatpush2.bf16.msra.mxu0 %v3958
    %4398 = vmatprep.subr.bf16.mxu0 %v3953
    %4399 = vmatpush2.bf16.msra.mxu0 %v3952
    %4400 = vmatprep.mubr.bf16.mxu0 %v3099
    %4401 = vmatmul.mubr.bf16.gmra.mxu0 %v3098
    %v4402 = vpop.f32.mrf.mxu0
    %v4403 = vadd.f32 %v3307, %v4402
    %v4404 = vpop.f32.mrf.mxu0
    %v4405 = vadd.f32 %v3311, %v4404
    %v4406 = vpop.f32.mrf.mxu0
    %v4407 = vpop.f32.mrf.mxu0
    %4408 = vdwg.mxu0
    %4409 = vmatprep.subr.bf16.mxu0 %v4043
    %4410 = vmatpush1.bf16.msra.mxu0 %v4042
    %4411 = vmatprep.subr.bf16.mxu0 %v4037
    %4412 = vmatpush1.bf16.msra.mxu0 %v4036
    %4413 = vmatprep.subr.bf16.mxu0 %v4031
    %4414 = vmatpush1.bf16.msra.mxu0 %v4030
    %4415 = vmatprep.subr.bf16.mxu0 %v4025
    %4416 = vmatpush1.bf16.msra.mxu0 %v4024
    %4417 = vmatprep.subr.bf16.mxu0 %v4019
    %4418 = vmatpush1.bf16.msra.mxu0 %v4018
    %4419 = vmatprep.subr.bf16.mxu0 %v4013
    %4420 = vmatpush1.bf16.msra.mxu0 %v4012
    %4421 = vmatprep.subr.bf16.mxu0 %v4007
    %4422 = vmatpush1.bf16.msra.mxu0 %v4006
    %4423 = vmatprep.subr.bf16.mxu0 %v4001
    %4424 = vmatpush1.bf16.msra.mxu0 %v4000
    %4425 = vmatprep.subr.bf16.mxu0 %v4091
    %4426 = vmatpush2.bf16.msra.mxu0 %v4090
    %4427 = vmatprep.subr.bf16.mxu0 %v4085
    %4428 = vmatpush2.bf16.msra.mxu0 %v4084
    %4429 = vmatprep.subr.bf16.mxu0 %v4079
    %4430 = vmatpush2.bf16.msra.mxu0 %v4078
    %4431 = vmatprep.subr.bf16.mxu0 %v4073
    %4432 = vmatpush2.bf16.msra.mxu0 %v4072
    %4433 = vmatprep.subr.bf16.mxu0 %v4067
    %4434 = vmatpush2.bf16.msra.mxu0 %v4066
    %4435 = vmatprep.subr.bf16.mxu0 %v4061
    %4436 = vmatpush2.bf16.msra.mxu0 %v4060
    %4437 = vmatprep.subr.bf16.mxu0 %v4055
    %4438 = vmatpush2.bf16.msra.mxu0 %v4054
    %4439 = vmatprep.subr.bf16.mxu0 %v4049
    %4440 = vmatpush2.bf16.msra.mxu0 %v4048
    %4441 = vmatprep.mubr.bf16.mxu0 %v3101
    %4442 = vmatmul.mubr.bf16.gmra.mxu0 %v3100
    %v4443 = vpop.f32.mrf.mxu0
    %v4444 = vadd.f32 %v4403, %v4443
    %v4445 = vpop.f32.mrf.mxu0
    %v4446 = vadd.f32 %v4405, %v4445
    %v4447 = vpop.f32.mrf.mxu0
    %v4448 = vpop.f32.mrf.mxu0
    %4449 = vdwg.mxu0
    %4450 = vmatprep.subr.bf16.mxu0 %v3949
    %4451 = vmatpush1.bf16.msra.mxu0 %v3948
    %4452 = vmatprep.subr.bf16.mxu0 %v3943
    %4453 = vmatpush1.bf16.msra.mxu0 %v3942
    %4454 = vmatprep.subr.bf16.mxu0 %v3937
    %4455 = vmatpush1.bf16.msra.mxu0 %v3936
    %4456 = vmatprep.subr.bf16.mxu0 %v3931
    %4457 = vmatpush1.bf16.msra.mxu0 %v3930
    %4458 = vmatprep.subr.bf16.mxu0 %v3925
    %4459 = vmatpush1.bf16.msra.mxu0 %v3924
    %4460 = vmatprep.subr.bf16.mxu0 %v3919
    %4461 = vmatpush1.bf16.msra.mxu0 %v3918
    %4462 = vmatprep.subr.bf16.mxu0 %v3913
    %4463 = vmatpush1.bf16.msra.mxu0 %v3912
    %4464 = vmatprep.subr.bf16.mxu0 %v3907
    %4465 = vmatpush1.bf16.msra.mxu0 %v3906
    %4466 = vmatprep.subr.bf16.mxu0 %v3997
    %4467 = vmatpush2.bf16.msra.mxu0 %v3996
    %4468 = vmatprep.subr.bf16.mxu0 %v3991
    %4469 = vmatpush2.bf16.msra.mxu0 %v3990
    %4470 = vmatprep.subr.bf16.mxu0 %v3985
    %4471 = vmatpush2.bf16.msra.mxu0 %v3984
    %4472 = vmatprep.subr.bf16.mxu0 %v3979
    %4473 = vmatpush2.bf16.msra.mxu0 %v3978
    %4474 = vmatprep.subr.bf16.mxu0 %v3973
    %4475 = vmatpush2.bf16.msra.mxu0 %v3972
    %4476 = vmatprep.subr.bf16.mxu0 %v3967
    %4477 = vmatpush2.bf16.msra.mxu0 %v3966
    %4478 = vmatprep.subr.bf16.mxu0 %v3961
    %4479 = vmatpush2.bf16.msra.mxu0 %v3960
    %4480 = vmatprep.subr.bf16.mxu0 %v3955
    %4481 = vmatpush2.bf16.msra.mxu0 %v3954
    %4482 = vmatprep.mubr.bf16.mxu0 %v3099
    %4483 = vmatmul.mubr.bf16.gmra.mxu0 %v3098
    %v4484 = vpop.f32.mrf.mxu0
    %v4485 = vadd.f32 %v3315, %v4484
    %v4486 = vpop.f32.mrf.mxu0
    %v4487 = vadd.f32 %v3319, %v4486
    %v4488 = vpop.f32.mrf.mxu0
    %v4489 = vpop.f32.mrf.mxu0
    %4490 = vdwg.mxu0
    %4491 = vmatprep.subr.bf16.mxu0 %v4045
    %4492 = vmatpush1.bf16.msra.mxu0 %v4044
    %4493 = vmatprep.subr.bf16.mxu0 %v4039
    %4494 = vmatpush1.bf16.msra.mxu0 %v4038
    %4495 = vmatprep.subr.bf16.mxu0 %v4033
    %4496 = vmatpush1.bf16.msra.mxu0 %v4032
    %4497 = vmatprep.subr.bf16.mxu0 %v4027
    %4498 = vmatpush1.bf16.msra.mxu0 %v4026
    %4499 = vmatprep.subr.bf16.mxu0 %v4021
    %4500 = vmatpush1.bf16.msra.mxu0 %v4020
    %4501 = vmatprep.subr.bf16.mxu0 %v4015
    %4502 = vmatpush1.bf16.msra.mxu0 %v4014
    %4503 = vmatprep.subr.bf16.mxu0 %v4009
    %4504 = vmatpush1.bf16.msra.mxu0 %v4008
    %4505 = vmatprep.subr.bf16.mxu0 %v4003
    %4506 = vmatpush1.bf16.msra.mxu0 %v4002
    %4507 = vmatprep.subr.bf16.mxu0 %v4093
    %4508 = vmatpush2.bf16.msra.mxu0 %v4092
    %4509 = vmatprep.subr.bf16.mxu0 %v4087
    %4510 = vmatpush2.bf16.msra.mxu0 %v4086
    %4511 = vmatprep.subr.bf16.mxu0 %v4081
    %4512 = vmatpush2.bf16.msra.mxu0 %v4080
    %4513 = vmatprep.subr.bf16.mxu0 %v4075
    %4514 = vmatpush2.bf16.msra.mxu0 %v4074
    %4515 = vmatprep.subr.bf16.mxu0 %v4069
    %4516 = vmatpush2.bf16.msra.mxu0 %v4068
    %4517 = vmatprep.subr.bf16.mxu0 %v4063
    %4518 = vmatpush2.bf16.msra.mxu0 %v4062
    %4519 = vmatprep.subr.bf16.mxu0 %v4057
    %4520 = vmatpush2.bf16.msra.mxu0 %v4056
    %4521 = vmatprep.subr.bf16.mxu0 %v4051
    %4522 = vmatpush2.bf16.msra.mxu0 %v4050
    %4523 = vmatprep.mubr.bf16.mxu0 %v3101
    %4524 = vmatmul.mubr.bf16.gmra.mxu0 %v3100
    %v4525 = vpop.f32.mrf.mxu0
    %v4526 = vadd.f32 %v4485, %v4525
    %v4527 = vpop.f32.mrf.mxu0
    %v4528 = vadd.f32 %v4487, %v4527
    %v4529 = vpop.f32.mrf.mxu0
    %v4530 = vpop.f32.mrf.mxu0
    %4531 = vdwg.mxu0
    %v4532 = vtanh.pop %v4362
    %v4533 = vtanh.pop %v4364
    %v4534 = vtanh.pop %v4444
    %v4535 = vtanh.pop %v4446
    %v4536 = vtanh.pop %v4526
    %v4537 = vtanh.pop %v4528
    %v4538 = vpack.c.bf16 %v4532, %v4532
    %v4539 = vpack.c.bf16 %v4533, %v4533
    %v4540 = vpack.c.bf16 %v4534, %v4534
    %v4541 = vpack.c.bf16 %v4535, %v4535
    %v4542 = vpack.c.bf16 %v4536, %v4536
    %v4543 = vpack.c.bf16 %v4537, %v4537
    %v4550 = vunpack.c.l.b16 %v4538
    %v4551 = vunpack.c.l.b16 %v4539
    %v4552 = vunpack.c.l.b16 %v4540
    %v4553 = vunpack.c.l.b16 %v4541
    %v4554 = vunpack.c.l.b16 %v4542
    %v4555 = vunpack.c.l.b16 %v4543
    %v4556 = vpack.c.b16 %v4551, %v4550
    %v4557 = vpack.c.b16 %v4553, %v4552
    %v4558 = vpack.c.b16 %v4555, %v4554
    %4562 = vst [vmem:[#allocation11] sm:$0xff] %v4556
    %4563 = vst [vmem:[#allocation11 + $0x8] sm:$0xff] %v4557
    %4564 = vst [vmem:[#allocation11 + $0x10] sm:$0xff] %v4558
    // Predicated region
    $region86: #{autoencoder_forward.1} parent=1 // pred_check
      _
    $region87: #{autoencoder_forward.1} parent=1 // pred_check_branch
      %4566 = sbr.rel (0) target = $region89
    $region88: #{autoencoder_forward.1} parent=1 // pred_region
      %s4568 = ssub.s32 64, 64
      %4569 = vsyncadd [#allocation4], %s4568
      %s4571 = sshll.u32 [#allocation10], 4
      %s4572 = int_to_ptr.vmem [resolvable:$true] %s4571
      %4574 = dma.vmem_to_hbm [thread:$0]  %s4572, 64, %s17, [#allocation4]
    $region89: #{autoencoder_forward.1} parent=1 // pred_fallthru
      _
    // Predicated region
    $region90: #{autoencoder_forward.1} parent=1 // pred_check
      _
    $region91: #{autoencoder_forward.1} parent=1 // pred_check_branch
      %4576 = sbr.rel (0) target = $region93
    $region92: #{autoencoder_forward.1} parent=1 // pred_region
      %s4578 = ssub.s32 384, 384
      %4579 = vsyncadd [#allocation12], %s4578
      %s4581 = sshll.u32 [#allocation11], 4
      %s4582 = int_to_ptr.vmem [resolvable:$true] %s4581
      %4584 = dma.vmem_to_hbm [thread:$0]  %s4582, 384, %s18, [#allocation12]
    $region93: #{autoencoder_forward.1} parent=1 // pred_fallthru
      _
    // Predicated region
    $region94: #{autoencoder_forward.1} parent=1 // pred_check
      _
    $region95: #{autoencoder_forward.1} parent=1 // pred_check_branch
      %4586 = sbr.rel (0) target = $region97
    $region96: #{autoencoder_forward.1} parent=1 // pred_region
      %4587 = dma.done [#allocation4], 64
    $region97: #{autoencoder_forward.1} parent=1 // pred_fallthru
      _
    // Predicated region
    $region98: #{autoencoder_forward.1} parent=1 // pred_check
      _
    $region99: #{autoencoder_forward.1} parent=1 // pred_check_branch
      %4589 = sbr.rel (0) target = $region101
    $region100: #{autoencoder_forward.1} parent=1 // pred_region
      %4590 = dma.done [#allocation12], 384
    $region101: #{autoencoder_forward.1} parent=1 // pred_fallthru
      _
    %4591 = vsyncpa [#allocation3], 1
    %4592 = vsyncpa [#allocation6], 1
    %4593 = vsyncpa [#allocation9], 1
    %4594 = vsyncpa [#allocation4], 1
    %4595 = vsyncpa [#allocation12], 1

</llo_original>
